<compile_context>
chip_gen: v7x
topology: tpu7x:2x2x1
jax: 0.10.0
libtpu: 0.0.40
codegen_flags: <defaults>
</compile_context>

<pallas_src>
import functools
import math

import jax
import jax.numpy as jnp
from jax.experimental import pallas as pl
from jax.experimental.pallas import tpu as pltpu


def _layer_norm(x, g, b, eps=1e-5):
    mu = jnp.mean(x, axis=-1, keepdims=True)
    xc = x - mu
    var = jnp.mean(xc * xc, axis=-1, keepdims=True)
    return xc * jax.lax.rsqrt(var + eps) * g + b


def slot_attention_kernel(
    inputs_ref, noise_ref,                     # (1,N,D), (1,NS,D)
    mu_ref, logsig_ref,                        # (1,1,D) each
    ni_g_ref, ni_b_ref,                        # norm_input LayerNorm (1,D)
    wq_ref, wkv_ref,                           # (D,D) scale-folded, (D,2D) = Wk|Wv
    ns_g_ref, ns_b_ref,                        # norm_slots LayerNorm (1,D)
    gw_ih_ref, gw_hh_ref,                      # (D,3D) fused GRU gates (r|z|n)
    gb_rz_ref, gb_in_ref, gb_hn_ref,           # (1,2D), (1,D), (1,D)
    pf_g_ref, pf_b_ref,                        # norm_pre_ff LayerNorm (1,D)
    m_w1_ref, m_b1_ref, m_w2_ref, m_b2_ref,    # residual MLP
    out_ref,                                   # (1,NS,D)
    *, iters, eps,
):
    f32 = jnp.float32
    bf16 = jnp.bfloat16
    _, N, D = inputs_ref.shape
    NS = noise_ref.shape[1]

    # ---- encoder path, hoisted out of the slot loop (k/v never depend on slots)
    x = _layer_norm(inputs_ref[0], ni_g_ref[...], ni_b_ref[...])
    kv = jnp.dot(x.astype(bf16), wkv_ref[...], preferred_element_type=f32)  # (N,2D)
    k = kv[:, :D].astype(bf16)
    v = kv[:, D:].astype(bf16)

    # slots = mu + exp(logsigma) * noise
    slots = mu_ref[0] + jnp.exp(logsig_ref[0]) * noise_ref[0]               # (NS,D)

    wq = wq_ref[...]
    w_ih = gw_ih_ref[...]
    w_hh = gw_hh_ref[...]
    b_rz = gb_rz_ref[...]
    b_in = gb_in_ref[...]
    b_hn = gb_hn_ref[...]
    ns_g = ns_g_ref[...]; ns_b = ns_b_ref[...]
    pf_g = pf_g_ref[...]; pf_b = pf_b_ref[...]
    w1 = m_w1_ref[...]; b1 = m_b1_ref[...]
    w2 = m_w2_ref[...]; b2 = m_b2_ref[...]

    def step(slots):
        h = slots
        s = _layer_norm(slots, ns_g, ns_b)
        q = jnp.dot(s.astype(bf16), wq, preferred_element_type=f32)         # (NS,D)
        # dots[i, j] = <q_i, k_j>  (attention scale already folded into Wq)
        dots = jax.lax.dot_general(
            q.astype(bf16), k, (((1,), (1,)), ((), ())),
            preferred_element_type=f32)                                     # (NS,N)
        # softmax over the SLOT axis (torch dim=1 -> axis 0 here)
        m = jnp.max(dots, axis=0, keepdims=True)
        e = jnp.exp(dots - m)
        attn = e * pl.reciprocal(jnp.sum(e, axis=0, keepdims=True),
                                 approx=True) + eps
        attn = attn * pl.reciprocal(jnp.sum(attn, axis=-1, keepdims=True),
                                    approx=True)
        updates = jnp.dot(attn.astype(bf16), v, preferred_element_type=f32)  # (NS,D)

        # fused GRUCell(updates, h): 2 matmuls instead of 6
        gi = jnp.dot(updates.astype(bf16), w_ih, preferred_element_type=f32)  # (NS,3D)
        gh = jnp.dot(h.astype(bf16), w_hh, preferred_element_type=f32)        # (NS,3D)
        rz = jax.nn.sigmoid(gi[:, :2 * D] + gh[:, :2 * D] + b_rz)
        r = rz[:, :D]
        z = rz[:, D:]
        n = jnp.tanh(gi[:, 2 * D:] + b_in + r * (gh[:, 2 * D:] + b_hn))
        hy = (1.0 - z) * n + z * h

        # residual MLP: slots + W2 relu(W1 LN(slots) + b1) + b2
        y = _layer_norm(hy, pf_g, pf_b)
        y = jnp.maximum(
            jnp.dot(y.astype(bf16), w1, preferred_element_type=f32) + b1, 0.0)
        y = jnp.dot(y.astype(bf16), w2, preferred_element_type=f32) + b2
        return hy + y

    # iters is small (3): keep fully unrolled for LLO scheduling visibility.
    for _ in range(iters):
        slots = step(slots)

    out_ref[0] = slots.astype(out_ref.dtype)


def slot_attention(inputs, noise, params, *, iters=3, eps=1e-8):
    B, N, D = inputs.shape
    NS = noise.shape[1]
    f32 = jnp.float32
    bf16 = jnp.bfloat16

    # Host-side weight prep: fold attention scale into Wq, fuse Wk|Wv and GRU gate
    # weights along the output dim, pre-sum the r/z gate biases.
    wq = (params['wq'] * (D ** -0.5)).astype(bf16)
    wkv = jnp.concatenate([params['wk'], params['wv']], axis=1).astype(bf16)
    w_ih = params['gru_w_ih'].astype(bf16)          # (D, 3D) (r|z|n)
    w_hh = params['gru_w_hh'].astype(bf16)
    b_ih = params['gru_b_ih'].astype(f32)           # (1, 3D)
    b_hh = params['gru_b_hh'].astype(f32)
    b_rz = b_ih[:, :2 * D] + b_hh[:, :2 * D]
    b_in = b_ih[:, 2 * D:]
    b_hn = b_hh[:, 2 * D:]

    operands = (
        inputs, noise,
        params['slots_mu'], params['slots_logsigma'],
        params['norm_input_g'], params['norm_input_b'],
        wq, wkv,
        params['norm_slots_g'], params['norm_slots_b'],
        w_ih, w_hh, b_rz, b_in, b_hn,
        params['norm_pre_ff_g'], params['norm_pre_ff_b'],
        params['mlp_w1'].astype(bf16), params['mlp_b1'],
        params['mlp_w2'].astype(bf16), params['mlp_b2'],
    )

    def batched(shape):      # per-batch (1, ...) block, indexed by grid axis b
        nd = len(shape)
        return pl.BlockSpec((1,) + tuple(shape[1:]),
                            lambda b, _nd=nd: (b,) + (0,) * (_nd - 1))

    def full(shape):         # grid-invariant whole-array block (stays resident)
        nd = len(shape)
        return pl.BlockSpec(tuple(shape), lambda b, _nd=nd: (0,) * _nd)

    in_specs = [batched(inputs.shape), batched(noise.shape)]
    in_specs += [full(op.shape) for op in operands[2:]]

    kernel = functools.partial(slot_attention_kernel, iters=iters, eps=eps)
    return pl.pallas_call(
        kernel,
        grid=(B,),
        in_specs=in_specs,
        out_specs=batched((B, NS, D)),
        out_shape=jax.ShapeDtypeStruct((B, NS, D), f32),
        compiler_params=pltpu.CompilerParams(
            dimension_semantics=("parallel",)),
    )(*operands)


if __name__ == "__main__":
    B, N, D, NS, ITERS = 2, 16, 32, 4, 3
    HID = max(D, 128)   # hidden_dim = max(dim, 128) in the module

    key = jax.random.PRNGKey(0)
    ks = iter(jax.random.split(key, 24))

    def unif(k, shape, fan_in):
        bound = 1.0 / math.sqrt(fan_in)
        return jax.random.uniform(k, shape, jnp.float32, -bound, bound)

    params = {}
    params['slots_mu'] = jax.random.normal(next(ks), (1, 1, D), jnp.float32)
    xav = math.sqrt(6.0 / (2.0 * D))   # xavier_uniform_ bound for (1,1,D)
    params['slots_logsigma'] = jax.random.uniform(
        next(ks), (1, 1, D), jnp.float32, -xav, xav)
    params['wq'] = unif(next(ks), (D, D), D)
    params['wk'] = unif(next(ks), (D, D), D)
    params['wv'] = unif(next(ks), (D, D), D)
    # GRU params stored transposed & gate-fused: (D, 3D) / (1, 3D), (r|z|n) order.
    params['gru_w_ih'] = unif(next(ks), (D, 3 * D), D)
    params['gru_w_hh'] = unif(next(ks), (D, 3 * D), D)
    params['gru_b_ih'] = unif(next(ks), (1, 3 * D), D)
    params['gru_b_hh'] = unif(next(ks), (1, 3 * D), D)
    params['mlp_w1'] = unif(next(ks), (D, HID), D)
    params['mlp_b1'] = unif(next(ks), (1, HID), D)
    params['mlp_w2'] = unif(next(ks), (HID, D), HID)
    params['mlp_b2'] = unif(next(ks), (1, D), HID)
    for name in ('norm_input', 'norm_slots', 'norm_pre_ff'):
        params[name + '_g'] = jnp.ones((1, D), jnp.float32)
        params[name + '_b'] = jnp.zeros((1, D), jnp.float32)

    inputs = jax.random.normal(next(ks), (B, N, D), jnp.float32)
    # TODO(synk): torch.randn slot-init noise replaced by deterministic
    # jax.random noise passed in as an input (RNG streams differ by design).
    noise = jax.random.normal(next(ks), (B, NS, D), jnp.float32)

    out = slot_attention(inputs, noise, params, iters=ITERS, eps=1e-8)
    jax.block_until_ready(out)
    assert out.shape == (B, NS, D)
    assert bool(jnp.all(jnp.isfinite(out)))
    print("KERNEL_OK")
</pallas_src>

<mosaic_0001>
module attributes {stable_mosaic.version = 11 : i64} {
  func.func @slot_attention_kernel(%arg0: i32, %arg1: memref<1x16x32xf32, #tpu.memory_space<vmem>>, %arg2: memref<1x4x32xf32, #tpu.memory_space<vmem>>, %arg3: memref<1x1x32xf32, #tpu.memory_space<vmem>>, %arg4: memref<1x1x32xf32, #tpu.memory_space<vmem>>, %arg5: memref<1x32xf32, #tpu.memory_space<vmem>>, %arg6: memref<1x32xf32, #tpu.memory_space<vmem>>, %arg7: memref<32x32xbf16, #tpu.memory_space<vmem>>, %arg8: memref<32x64xbf16, #tpu.memory_space<vmem>>, %arg9: memref<1x32xf32, #tpu.memory_space<vmem>>, %arg10: memref<1x32xf32, #tpu.memory_space<vmem>>, %arg11: memref<32x96xbf16, #tpu.memory_space<vmem>>, %arg12: memref<32x96xbf16, #tpu.memory_space<vmem>>, %arg13: memref<1x64xf32, #tpu.memory_space<vmem>>, %arg14: memref<1x32xf32, #tpu.memory_space<vmem>>, %arg15: memref<1x32xf32, #tpu.memory_space<vmem>>, %arg16: memref<1x32xf32, #tpu.memory_space<vmem>>, %arg17: memref<1x32xf32, #tpu.memory_space<vmem>>, %arg18: memref<32x128xbf16, #tpu.memory_space<vmem>>, %arg19: memref<1x128xf32, #tpu.memory_space<vmem>>, %arg20: memref<128x32xbf16, #tpu.memory_space<vmem>>, %arg21: memref<1x32xf32, #tpu.memory_space<vmem>>, %arg22: memref<1x4x32xf32, #tpu.memory_space<vmem>>) attributes {dimension_semantics = [#tpu.dimension_semantics<parallel>], iteration_bounds = array<i64: 2>, scalar_prefetch = 0 : i64, scratch_operands = 0 : i64, tpu.core_type = #tpu.core_type<tc>, window_params = [{transform_indices = @transform_0, window_bounds = array<i64: 1, 16, 32>}, {transform_indices = @transform_1, window_bounds = array<i64: 1, 4, 32>}, {pipeline_mode = #tpu.pipeline_mode<synchronous>, transform_indices = @transform_2, window_bounds = array<i64: 1, 1, 32>}, {pipeline_mode = #tpu.pipeline_mode<synchronous>, transform_indices = @transform_3, window_bounds = array<i64: 1, 1, 32>}, {pipeline_mode = #tpu.pipeline_mode<synchronous>, transform_indices = @transform_4, window_bounds = array<i64: 1, 32>}, {pipeline_mode = #tpu.pipeline_mode<synchronous>, transform_indices = @transform_5, window_bounds = array<i64: 1, 32>}, {pipeline_mode = #tpu.pipeline_mode<synchronous>, transform_indices = @transform_6, window_bounds = array<i64: 32, 32>}, {pipeline_mode = #tpu.pipeline_mode<synchronous>, transform_indices = @transform_7, window_bounds = array<i64: 32, 64>}, {pipeline_mode = #tpu.pipeline_mode<synchronous>, transform_indices = @transform_8, window_bounds = array<i64: 1, 32>}, {pipeline_mode = #tpu.pipeline_mode<synchronous>, transform_indices = @transform_9, window_bounds = array<i64: 1, 32>}, {pipeline_mode = #tpu.pipeline_mode<synchronous>, transform_indices = @transform_10, window_bounds = array<i64: 32, 96>}, {pipeline_mode = #tpu.pipeline_mode<synchronous>, transform_indices = @transform_11, window_bounds = array<i64: 32, 96>}, {pipeline_mode = #tpu.pipeline_mode<synchronous>, transform_indices = @transform_12, window_bounds = array<i64: 1, 64>}, {pipeline_mode = #tpu.pipeline_mode<synchronous>, transform_indices = @transform_13, window_bounds = array<i64: 1, 32>}, {pipeline_mode = #tpu.pipeline_mode<synchronous>, transform_indices = @transform_14, window_bounds = array<i64: 1, 32>}, {pipeline_mode = #tpu.pipeline_mode<synchronous>, transform_indices = @transform_15, window_bounds = array<i64: 1, 32>}, {pipeline_mode = #tpu.pipeline_mode<synchronous>, transform_indices = @transform_16, window_bounds = array<i64: 1, 32>}, {pipeline_mode = #tpu.pipeline_mode<synchronous>, transform_indices = @transform_17, window_bounds = array<i64: 32, 128>}, {pipeline_mode = #tpu.pipeline_mode<synchronous>, transform_indices = @transform_18, window_bounds = array<i64: 1, 128>}, {pipeline_mode = #tpu.pipeline_mode<synchronous>, transform_indices = @transform_19, window_bounds = array<i64: 128, 32>}, {pipeline_mode = #tpu.pipeline_mode<synchronous>, transform_indices = @transform_20, window_bounds = array<i64: 1, 32>}, {transform_indices = @transform_21, window_bounds = array<i64: 1, 4, 32>}]} {
    %c0 = arith.constant 0 : index
    %c0_0 = arith.constant 0 : index
    %c0_1 = arith.constant 0 : index
    %0 = vector.load %arg1[%c0, %c0_0, %c0_1] : memref<1x16x32xf32, #tpu.memory_space<vmem>>, vector<1x16x32xf32>
    %1 = vector.shape_cast %0 : vector<1x16x32xf32> to vector<16x32xf32>
    %c0_2 = arith.constant 0 : index
    %c0_3 = arith.constant 0 : index
    %2 = vector.load %arg5[%c0_2, %c0_3] : memref<1x32xf32, #tpu.memory_space<vmem>>, vector<1x32xf32>
    %c0_4 = arith.constant 0 : index
    %c0_5 = arith.constant 0 : index
    %3 = vector.load %arg6[%c0_4, %c0_5] : memref<1x32xf32, #tpu.memory_space<vmem>>, vector<1x32xf32>
    %cst = arith.constant dense<0.000000e+00> : vector<16xf32>
    %4 = vector.multi_reduction <add>, %1, %cst [1] : vector<16x32xf32> to vector<16xf32>
    %5 = vector.shape_cast %4 : vector<16xf32> to vector<16x1xf32>
    %cst_6 = arith.constant 3.200000e+01 : f32
    %6 = vector.broadcast %cst_6 : f32 to vector<16x1xf32>
    %7 = arith.divf %5, %6 : vector<16x1xf32>
    %8 = vector.broadcast %7 : vector<16x1xf32> to vector<16x32xf32>
    %9 = arith.subf %1, %8 : vector<16x32xf32>
    %10 = arith.mulf %9, %9 : vector<16x32xf32>
    %cst_7 = arith.constant dense<0.000000e+00> : vector<16xf32>
    %11 = vector.multi_reduction <add>, %10, %cst_7 [1] : vector<16x32xf32> to vector<16xf32>
    %12 = vector.shape_cast %11 : vector<16xf32> to vector<16x1xf32>
    %cst_8 = arith.constant 3.200000e+01 : f32
    %13 = vector.broadcast %cst_8 : f32 to vector<16x1xf32>
    %14 = arith.divf %12, %13 : vector<16x1xf32>
    %cst_9 = arith.constant 9.99999974E-6 : f32
    %15 = vector.broadcast %cst_9 : f32 to vector<16x1xf32>
    %16 = arith.addf %14, %15 : vector<16x1xf32>
    %17 = math.rsqrt %16 : vector<16x1xf32>
    %18 = vector.broadcast %17 : vector<16x1xf32> to vector<16x32xf32>
    %19 = arith.mulf %9, %18 : vector<16x32xf32>
    %20 = vector.broadcast %2 : vector<1x32xf32> to vector<16x32xf32>
    %21 = arith.mulf %19, %20 : vector<16x32xf32>
    %22 = vector.broadcast %3 : vector<1x32xf32> to vector<16x32xf32>
    %23 = arith.addf %21, %22 : vector<16x32xf32>
    %24 = arith.truncf %23 : vector<16x32xf32> to vector<16x32xbf16>
    %c0_10 = arith.constant 0 : index
    %c0_11 = arith.constant 0 : index
    %25 = vector.load %arg8[%c0_10, %c0_11] : memref<32x64xbf16, #tpu.memory_space<vmem>>, vector<32x64xbf16>
    %cst_12 = arith.constant dense<0.000000e+00> : vector<16x64xf32>
    %26 = tpu.matmul %24, %25, %cst_12 {dimension_numbers = #tpu.dot_dimension_numbers<[1], [0], [0], [1], [0, 0, 1, 1], [], []>} : vector<16x32xbf16>, vector<32x64xbf16>, vector<16x64xf32> -> vector<16x64xf32>
    %27 = vector.extract_strided_slice %26 {offsets = [0, 0], sizes = [16, 32], strides = [1, 1]} : vector<16x64xf32> to vector<16x32xf32>
    %28 = arith.truncf %27 : vector<16x32xf32> to vector<16x32xbf16>
    %29 = vector.extract_strided_slice %26 {offsets = [0, 32], sizes = [16, 32], strides = [1, 1]} : vector<16x64xf32> to vector<16x32xf32>
    %30 = arith.truncf %29 : vector<16x32xf32> to vector<16x32xbf16>
    %c0_13 = arith.constant 0 : index
    %c0_14 = arith.constant 0 : index
    %c0_15 = arith.constant 0 : index
    %31 = vector.load %arg3[%c0_13, %c0_14, %c0_15] : memref<1x1x32xf32, #tpu.memory_space<vmem>>, vector<1x1x32xf32>
    %32 = vector.shape_cast %31 : vector<1x1x32xf32> to vector<1x32xf32>
    %c0_16 = arith.constant 0 : index
    %c0_17 = arith.constant 0 : index
    %c0_18 = arith.constant 0 : index
    %33 = vector.load %arg4[%c0_16, %c0_17, %c0_18] : memref<1x1x32xf32, #tpu.memory_space<vmem>>, vector<1x1x32xf32>
    %34 = vector.shape_cast %33 : vector<1x1x32xf32> to vector<1x32xf32>
    %35 = math.exp %34 : vector<1x32xf32>
    %c0_19 = arith.constant 0 : index
    %c0_20 = arith.constant 0 : index
    %c0_21 = arith.constant 0 : index
    %36 = vector.load %arg2[%c0_19, %c0_20, %c0_21] : memref<1x4x32xf32, #tpu.memory_space<vmem>>, vector<1x4x32xf32>
    %37 = vector.shape_cast %36 : vector<1x4x32xf32> to vector<4x32xf32>
    %38 = vector.broadcast %35 : vector<1x32xf32> to vector<4x32xf32>
    %39 = arith.mulf %38, %37 : vector<4x32xf32>
    %40 = vector.broadcast %32 : vector<1x32xf32> to vector<4x32xf32>
    %41 = arith.addf %40, %39 : vector<4x32xf32>
    %c0_22 = arith.constant 0 : index
    %c0_23 = arith.constant 0 : index
    %42 = vector.load %arg7[%c0_22, %c0_23] : memref<32x32xbf16, #tpu.memory_space<vmem>>, vector<32x32xbf16>
    %c0_24 = arith.constant 0 : index
    %c0_25 = arith.constant 0 : index
    %43 = vector.load %arg11[%c0_24, %c0_25] : memref<32x96xbf16, #tpu.memory_space<vmem>>, vector<32x96xbf16>
    %c0_26 = arith.constant 0 : index
    %c0_27 = arith.constant 0 : index
    %44 = vector.load %arg12[%c0_26, %c0_27] : memref<32x96xbf16, #tpu.memory_space<vmem>>, vector<32x96xbf16>
    %c0_28 = arith.constant 0 : index
    %c0_29 = arith.constant 0 : index
    %45 = vector.load %arg13[%c0_28, %c0_29] : memref<1x64xf32, #tpu.memory_space<vmem>>, vector<1x64xf32>
    %c0_30 = arith.constant 0 : index
    %c0_31 = arith.constant 0 : index
    %46 = vector.load %arg14[%c0_30, %c0_31] : memref<1x32xf32, #tpu.memory_space<vmem>>, vector<1x32xf32>
    %c0_32 = arith.constant 0 : index
    %c0_33 = arith.constant 0 : index
    %47 = vector.load %arg15[%c0_32, %c0_33] : memref<1x32xf32, #tpu.memory_space<vmem>>, vector<1x32xf32>
    %c0_34 = arith.constant 0 : index
    %c0_35 = arith.constant 0 : index
    %48 = vector.load %arg9[%c0_34, %c0_35] : memref<1x32xf32, #tpu.memory_space<vmem>>, vector<1x32xf32>
    %c0_36 = arith.constant 0 : index
    %c0_37 = arith.constant 0 : index
    %49 = vector.load %arg10[%c0_36, %c0_37] : memref<1x32xf32, #tpu.memory_space<vmem>>, vector<1x32xf32>
    %c0_38 = arith.constant 0 : index
    %c0_39 = arith.constant 0 : index
    %50 = vector.load %arg16[%c0_38, %c0_39] : memref<1x32xf32, #tpu.memory_space<vmem>>, vector<1x32xf32>
    %c0_40 = arith.constant 0 : index
    %c0_41 = arith.constant 0 : index
    %51 = vector.load %arg17[%c0_40, %c0_41] : memref<1x32xf32, #tpu.memory_space<vmem>>, vector<1x32xf32>
    %c0_42 = arith.constant 0 : index
    %c0_43 = arith.constant 0 : index
    %52 = vector.load %arg18[%c0_42, %c0_43] : memref<32x128xbf16, #tpu.memory_space<vmem>>, vector<32x128xbf16>
    %c0_44 = arith.constant 0 : index
    %c0_45 = arith.constant 0 : index
    %53 = vector.load %arg19[%c0_44, %c0_45] : memref<1x128xf32, #tpu.memory_space<vmem>>, vector<1x128xf32>
    %c0_46 = arith.constant 0 : index
    %c0_47 = arith.constant 0 : index
    %54 = vector.load %arg20[%c0_46, %c0_47] : memref<128x32xbf16, #tpu.memory_space<vmem>>, vector<128x32xbf16>
    %c0_48 = arith.constant 0 : index
    %c0_49 = arith.constant 0 : index
    %55 = vector.load %arg21[%c0_48, %c0_49] : memref<1x32xf32, #tpu.memory_space<vmem>>, vector<1x32xf32>
    %cst_50 = arith.constant dense<0.000000e+00> : vector<4xf32>
    %56 = vector.multi_reduction <add>, %41, %cst_50 [1] : vector<4x32xf32> to vector<4xf32>
    %57 = vector.shape_cast %56 : vector<4xf32> to vector<4x1xf32>
    %cst_51 = arith.constant 3.200000e+01 : f32
    %58 = vector.broadcast %cst_51 : f32 to vector<4x1xf32>
    %59 = arith.divf %57, %58 : vector<4x1xf32>
    %60 = vector.broadcast %59 : vector<4x1xf32> to vector<4x32xf32>
    %61 = arith.subf %41, %60 : vector<4x32xf32>
    %62 = arith.mulf %61, %61 : vector<4x32xf32>
    %cst_52 = arith.constant dense<0.000000e+00> : vector<4xf32>
    %63 = vector.multi_reduction <add>, %62, %cst_52 [1] : vector<4x32xf32> to vector<4xf32>
    %64 = vector.shape_cast %63 : vector<4xf32> to vector<4x1xf32>
    %cst_53 = arith.constant 3.200000e+01 : f32
    %65 = vector.broadcast %cst_53 : f32 to vector<4x1xf32>
    %66 = arith.divf %64, %65 : vector<4x1xf32>
    %cst_54 = arith.constant 9.99999974E-6 : f32
    %67 = vector.broadcast %cst_54 : f32 to vector<4x1xf32>
    %68 = arith.addf %66, %67 : vector<4x1xf32>
    %69 = math.rsqrt %68 : vector<4x1xf32>
    %70 = vector.broadcast %69 : vector<4x1xf32> to vector<4x32xf32>
    %71 = arith.mulf %61, %70 : vector<4x32xf32>
    %72 = vector.broadcast %48 : vector<1x32xf32> to vector<4x32xf32>
    %73 = arith.mulf %71, %72 : vector<4x32xf32>
    %74 = vector.broadcast %49 : vector<1x32xf32> to vector<4x32xf32>
    %75 = arith.addf %73, %74 : vector<4x32xf32>
    %76 = arith.truncf %75 : vector<4x32xf32> to vector<4x32xbf16>
    %cst_55 = arith.constant dense<0.000000e+00> : vector<4x32xf32>
    %77 = tpu.matmul %76, %42, %cst_55 {dimension_numbers = #tpu.dot_dimension_numbers<[1], [0], [0], [1], [0, 0, 1, 1], [], []>} : vector<4x32xbf16>, vector<32x32xbf16>, vector<4x32xf32> -> vector<4x32xf32>
    %78 = arith.truncf %77 : vector<4x32xf32> to vector<4x32xbf16>
    %cst_56 = arith.constant dense<0.000000e+00> : vector<4x16xf32>
    %79 = tpu.matmul %78, %28, %cst_56 {dimension_numbers = #tpu.dot_dimension_numbers<[1], [1], [0], [0], [0, 0, 1, 0], [], []>} : vector<4x32xbf16>, vector<16x32xbf16>, vector<4x16xf32> -> vector<4x16xf32>
    %cst_57 = arith.constant dense<0xFF800000> : vector<16xf32>
    %80 = vector.multi_reduction <maximumf>, %79, %cst_57 [0] : vector<4x16xf32> to vector<16xf32>
    %81 = vector.shape_cast %80 : vector<16xf32> to vector<1x16xf32>
    %82 = vector.broadcast %81 : vector<1x16xf32> to vector<4x16xf32>
    %83 = arith.subf %79, %82 : vector<4x16xf32>
    %84 = math.exp %83 : vector<4x16xf32>
    %cst_58 = arith.constant dense<0.000000e+00> : vector<16xf32>
    %85 = vector.multi_reduction <add>, %84, %cst_58 [0] : vector<4x16xf32> to vector<16xf32>
    %86 = vector.shape_cast %85 : vector<16xf32> to vector<1x16xf32>
    %87 = tpu.reciprocal %86 {approx = true} : vector<1x16xf32> -> vector<1x16xf32>
    %88 = vector.broadcast %87 : vector<1x16xf32> to vector<4x16xf32>
    %89 = arith.mulf %84, %88 : vector<4x16xf32>
    %cst_59 = arith.constant 9.99999993E-9 : f32
    %90 = vector.broadcast %cst_59 : f32 to vector<4x16xf32>
    %91 = arith.addf %89, %90 : vector<4x16xf32>
    %cst_60 = arith.constant dense<0.000000e+00> : vector<4xf32>
    %92 = vector.multi_reduction <add>, %91, %cst_60 [1] : vector<4x16xf32> to vector<4xf32>
    %93 = vector.shape_cast %92 : vector<4xf32> to vector<4x1xf32>
    %94 = tpu.reciprocal %93 {approx = true} : vector<4x1xf32> -> vector<4x1xf32>
    %95 = vector.broadcast %94 : vector<4x1xf32> to vector<4x16xf32>
    %96 = arith.mulf %91, %95 : vector<4x16xf32>
    %97 = arith.truncf %96 : vector<4x16xf32> to vector<4x16xbf16>
    %cst_61 = arith.constant dense<0.000000e+00> : vector<4x32xf32>
    %98 = tpu.matmul %97, %30, %cst_61 {dimension_numbers = #tpu.dot_dimension_numbers<[1], [0], [0], [1], [0, 0, 1, 1], [], []>} : vector<4x16xbf16>, vector<16x32xbf16>, vector<4x32xf32> -> vector<4x32xf32>
    %99 = arith.truncf %98 : vector<4x32xf32> to vector<4x32xbf16>
    %cst_62 = arith.constant dense<0.000000e+00> : vector<4x96xf32>
    %100 = tpu.matmul %99, %43, %cst_62 {dimension_numbers = #tpu.dot_dimension_numbers<[1], [0], [0], [1], [0, 0, 1, 1], [], []>} : vector<4x32xbf16>, vector<32x96xbf16>, vector<4x96xf32> -> vector<4x96xf32>
    %101 = arith.truncf %41 : vector<4x32xf32> to vector<4x32xbf16>
    %cst_63 = arith.constant dense<0.000000e+00> : vector<4x96xf32>
    %102 = tpu.matmul %101, %44, %cst_63 {dimension_numbers = #tpu.dot_dimension_numbers<[1], [0], [0], [1], [0, 0, 1, 1], [], []>} : vector<4x32xbf16>, vector<32x96xbf16>, vector<4x96xf32> -> vector<4x96xf32>
    %103 = vector.extract_strided_slice %100 {offsets = [0, 0], sizes = [4, 64], strides = [1, 1]} : vector<4x96xf32> to vector<4x64xf32>
    %104 = vector.extract_strided_slice %102 {offsets = [0, 0], sizes = [4, 64], strides = [1, 1]} : vector<4x96xf32> to vector<4x64xf32>
    %105 = arith.addf %103, %104 : vector<4x64xf32>
    %106 = vector.broadcast %45 : vector<1x64xf32> to vector<4x64xf32>
    %107 = arith.addf %105, %106 : vector<4x64xf32>
    %108 = arith.negf %107 : vector<4x64xf32>
    %109 = math.exp %108 : vector<4x64xf32>
    %cst_64 = arith.constant 1.000000e+00 : f32
    %110 = vector.broadcast %cst_64 : f32 to vector<4x64xf32>
    %111 = arith.addf %110, %109 : vector<4x64xf32>
    %112 = arith.divf %110, %111 : vector<4x64xf32>
    %113 = vector.extract_strided_slice %112 {offsets = [0, 0], sizes = [4, 32], strides = [1, 1]} : vector<4x64xf32> to vector<4x32xf32>
    %114 = vector.extract_strided_slice %112 {offsets = [0, 32], sizes = [4, 32], strides = [1, 1]} : vector<4x64xf32> to vector<4x32xf32>
    %115 = vector.extract_strided_slice %100 {offsets = [0, 64], sizes = [4, 32], strides = [1, 1]} : vector<4x96xf32> to vector<4x32xf32>
    %116 = vector.broadcast %46 : vector<1x32xf32> to vector<4x32xf32>
    %117 = arith.addf %115, %116 : vector<4x32xf32>
    %118 = vector.extract_strided_slice %102 {offsets = [0, 64], sizes = [4, 32], strides = [1, 1]} : vector<4x96xf32> to vector<4x32xf32>
    %119 = vector.broadcast %47 : vector<1x32xf32> to vector<4x32xf32>
    %120 = arith.addf %118, %119 : vector<4x32xf32>
    %121 = arith.mulf %113, %120 : vector<4x32xf32>
    %122 = arith.addf %117, %121 : vector<4x32xf32>
    %123 = math.tanh %122 : vector<4x32xf32>
    %cst_65 = arith.constant 1.000000e+00 : f32
    %124 = vector.broadcast %cst_65 : f32 to vector<4x32xf32>
    %125 = arith.subf %124, %114 : vector<4x32xf32>
    %126 = arith.mulf %125, %123 : vector<4x32xf32>
    %127 = arith.mulf %114, %41 : vector<4x32xf32>
    %128 = arith.addf %126, %127 : vector<4x32xf32>
    %cst_66 = arith.constant dense<0.000000e+00> : vector<4xf32>
    %129 = vector.multi_reduction <add>, %128, %cst_66 [1] : vector<4x32xf32> to vector<4xf32>
    %130 = vector.shape_cast %129 : vector<4xf32> to vector<4x1xf32>
    %cst_67 = arith.constant 3.200000e+01 : f32
    %131 = vector.broadcast %cst_67 : f32 to vector<4x1xf32>
    %132 = arith.divf %130, %131 : vector<4x1xf32>
    %133 = vector.broadcast %132 : vector<4x1xf32> to vector<4x32xf32>
    %134 = arith.subf %128, %133 : vector<4x32xf32>
    %135 = arith.mulf %134, %134 : vector<4x32xf32>
    %cst_68 = arith.constant dense<0.000000e+00> : vector<4xf32>
    %136 = vector.multi_reduction <add>, %135, %cst_68 [1] : vector<4x32xf32> to vector<4xf32>
    %137 = vector.shape_cast %136 : vector<4xf32> to vector<4x1xf32>
    %cst_69 = arith.constant 3.200000e+01 : f32
    %138 = vector.broadcast %cst_69 : f32 to vector<4x1xf32>
    %139 = arith.divf %137, %138 : vector<4x1xf32>
    %cst_70 = arith.constant 9.99999974E-6 : f32
    %140 = vector.broadcast %cst_70 : f32 to vector<4x1xf32>
    %141 = arith.addf %139, %140 : vector<4x1xf32>
    %142 = math.rsqrt %141 : vector<4x1xf32>
    %143 = vector.broadcast %142 : vector<4x1xf32> to vector<4x32xf32>
    %144 = arith.mulf %134, %143 : vector<4x32xf32>
    %145 = vector.broadcast %50 : vector<1x32xf32> to vector<4x32xf32>
    %146 = arith.mulf %144, %145 : vector<4x32xf32>
    %147 = vector.broadcast %51 : vector<1x32xf32> to vector<4x32xf32>
    %148 = arith.addf %146, %147 : vector<4x32xf32>
    %149 = arith.truncf %148 : vector<4x32xf32> to vector<4x32xbf16>
    %cst_71 = arith.constant dense<0.000000e+00> : vector<4x128xf32>
    %150 = tpu.matmul %149, %52, %cst_71 {dimension_numbers = #tpu.dot_dimension_numbers<[1], [0], [0], [1], [0, 0, 1, 1], [], []>} : vector<4x32xbf16>, vector<32x128xbf16>, vector<4x128xf32> -> vector<4x128xf32>
    %151 = vector.broadcast %53 : vector<1x128xf32> to vector<4x128xf32>
    %152 = arith.addf %150, %151 : vector<4x128xf32>
    %cst_72 = arith.constant 0.000000e+00 : f32
    %153 = vector.broadcast %cst_72 : f32 to vector<4x128xf32>
    %154 = arith.maximumf %152, %153 : vector<4x128xf32>
    %155 = arith.truncf %154 : vector<4x128xf32> to vector<4x128xbf16>
    %cst_73 = arith.constant dense<0.000000e+00> : vector<4x32xf32>
    %156 = tpu.matmul %155, %54, %cst_73 {dimension_numbers = #tpu.dot_dimension_numbers<[1], [0], [0], [1], [0, 0, 1, 1], [], []>} : vector<4x128xbf16>, vector<128x32xbf16>, vector<4x32xf32> -> vector<4x32xf32>
    %157 = vector.broadcast %55 : vector<1x32xf32> to vector<4x32xf32>
    %158 = arith.addf %156, %157 : vector<4x32xf32>
    %159 = arith.addf %128, %158 : vector<4x32xf32>
    %cst_74 = arith.constant dense<0.000000e+00> : vector<4xf32>
    %160 = vector.multi_reduction <add>, %159, %cst_74 [1] : vector<4x32xf32> to vector<4xf32>
    %161 = vector.shape_cast %160 : vector<4xf32> to vector<4x1xf32>
    %cst_75 = arith.constant 3.200000e+01 : f32
    %162 = vector.broadcast %cst_75 : f32 to vector<4x1xf32>
    %163 = arith.divf %161, %162 : vector<4x1xf32>
    %164 = vector.broadcast %163 : vector<4x1xf32> to vector<4x32xf32>
    %165 = arith.subf %159, %164 : vector<4x32xf32>
    %166 = arith.mulf %165, %165 : vector<4x32xf32>
    %cst_76 = arith.constant dense<0.000000e+00> : vector<4xf32>
    %167 = vector.multi_reduction <add>, %166, %cst_76 [1] : vector<4x32xf32> to vector<4xf32>
    %168 = vector.shape_cast %167 : vector<4xf32> to vector<4x1xf32>
    %cst_77 = arith.constant 3.200000e+01 : f32
    %169 = vector.broadcast %cst_77 : f32 to vector<4x1xf32>
    %170 = arith.divf %168, %169 : vector<4x1xf32>
    %cst_78 = arith.constant 9.99999974E-6 : f32
    %171 = vector.broadcast %cst_78 : f32 to vector<4x1xf32>
    %172 = arith.addf %170, %171 : vector<4x1xf32>
    %173 = math.rsqrt %172 : vector<4x1xf32>
    %174 = vector.broadcast %173 : vector<4x1xf32> to vector<4x32xf32>
    %175 = arith.mulf %165, %174 : vector<4x32xf32>
    %176 = vector.broadcast %48 : vector<1x32xf32> to vector<4x32xf32>
    %177 = arith.mulf %175, %176 : vector<4x32xf32>
    %178 = vector.broadcast %49 : vector<1x32xf32> to vector<4x32xf32>
    %179 = arith.addf %177, %178 : vector<4x32xf32>
    %180 = arith.truncf %179 : vector<4x32xf32> to vector<4x32xbf16>
    %cst_79 = arith.constant dense<0.000000e+00> : vector<4x32xf32>
    %181 = tpu.matmul %180, %42, %cst_79 {dimension_numbers = #tpu.dot_dimension_numbers<[1], [0], [0], [1], [0, 0, 1, 1], [], []>} : vector<4x32xbf16>, vector<32x32xbf16>, vector<4x32xf32> -> vector<4x32xf32>
    %182 = arith.truncf %181 : vector<4x32xf32> to vector<4x32xbf16>
    %cst_80 = arith.constant dense<0.000000e+00> : vector<4x16xf32>
    %183 = tpu.matmul %182, %28, %cst_80 {dimension_numbers = #tpu.dot_dimension_numbers<[1], [1], [0], [0], [0, 0, 1, 0], [], []>} : vector<4x32xbf16>, vector<16x32xbf16>, vector<4x16xf32> -> vector<4x16xf32>
    %cst_81 = arith.constant dense<0xFF800000> : vector<16xf32>
    %184 = vector.multi_reduction <maximumf>, %183, %cst_81 [0] : vector<4x16xf32> to vector<16xf32>
    %185 = vector.shape_cast %184 : vector<16xf32> to vector<1x16xf32>
    %186 = vector.broadcast %185 : vector<1x16xf32> to vector<4x16xf32>
    %187 = arith.subf %183, %186 : vector<4x16xf32>
    %188 = math.exp %187 : vector<4x16xf32>
    %cst_82 = arith.constant dense<0.000000e+00> : vector<16xf32>
    %189 = vector.multi_reduction <add>, %188, %cst_82 [0] : vector<4x16xf32> to vector<16xf32>
    %190 = vector.shape_cast %189 : vector<16xf32> to vector<1x16xf32>
    %191 = tpu.reciprocal %190 {approx = true} : vector<1x16xf32> -> vector<1x16xf32>
    %192 = vector.broadcast %191 : vector<1x16xf32> to vector<4x16xf32>
    %193 = arith.mulf %188, %192 : vector<4x16xf32>
    %cst_83 = arith.constant 9.99999993E-9 : f32
    %194 = vector.broadcast %cst_83 : f32 to vector<4x16xf32>
    %195 = arith.addf %193, %194 : vector<4x16xf32>
    %cst_84 = arith.constant dense<0.000000e+00> : vector<4xf32>
    %196 = vector.multi_reduction <add>, %195, %cst_84 [1] : vector<4x16xf32> to vector<4xf32>
    %197 = vector.shape_cast %196 : vector<4xf32> to vector<4x1xf32>
    %198 = tpu.reciprocal %197 {approx = true} : vector<4x1xf32> -> vector<4x1xf32>
    %199 = vector.broadcast %198 : vector<4x1xf32> to vector<4x16xf32>
    %200 = arith.mulf %195, %199 : vector<4x16xf32>
    %201 = arith.truncf %200 : vector<4x16xf32> to vector<4x16xbf16>
    %cst_85 = arith.constant dense<0.000000e+00> : vector<4x32xf32>
    %202 = tpu.matmul %201, %30, %cst_85 {dimension_numbers = #tpu.dot_dimension_numbers<[1], [0], [0], [1], [0, 0, 1, 1], [], []>} : vector<4x16xbf16>, vector<16x32xbf16>, vector<4x32xf32> -> vector<4x32xf32>
    %203 = arith.truncf %202 : vector<4x32xf32> to vector<4x32xbf16>
    %cst_86 = arith.constant dense<0.000000e+00> : vector<4x96xf32>
    %204 = tpu.matmul %203, %43, %cst_86 {dimension_numbers = #tpu.dot_dimension_numbers<[1], [0], [0], [1], [0, 0, 1, 1], [], []>} : vector<4x32xbf16>, vector<32x96xbf16>, vector<4x96xf32> -> vector<4x96xf32>
    %205 = arith.truncf %159 : vector<4x32xf32> to vector<4x32xbf16>
    %cst_87 = arith.constant dense<0.000000e+00> : vector<4x96xf32>
    %206 = tpu.matmul %205, %44, %cst_87 {dimension_numbers = #tpu.dot_dimension_numbers<[1], [0], [0], [1], [0, 0, 1, 1], [], []>} : vector<4x32xbf16>, vector<32x96xbf16>, vector<4x96xf32> -> vector<4x96xf32>
    %207 = vector.extract_strided_slice %204 {offsets = [0, 0], sizes = [4, 64], strides = [1, 1]} : vector<4x96xf32> to vector<4x64xf32>
    %208 = vector.extract_strided_slice %206 {offsets = [0, 0], sizes = [4, 64], strides = [1, 1]} : vector<4x96xf32> to vector<4x64xf32>
    %209 = arith.addf %207, %208 : vector<4x64xf32>
    %210 = vector.broadcast %45 : vector<1x64xf32> to vector<4x64xf32>
    %211 = arith.addf %209, %210 : vector<4x64xf32>
    %212 = arith.negf %211 : vector<4x64xf32>
    %213 = math.exp %212 : vector<4x64xf32>
    %cst_88 = arith.constant 1.000000e+00 : f32
    %214 = vector.broadcast %cst_88 : f32 to vector<4x64xf32>
    %215 = arith.addf %214, %213 : vector<4x64xf32>
    %216 = arith.divf %214, %215 : vector<4x64xf32>
    %217 = vector.extract_strided_slice %216 {offsets = [0, 0], sizes = [4, 32], strides = [1, 1]} : vector<4x64xf32> to vector<4x32xf32>
    %218 = vector.extract_strided_slice %216 {offsets = [0, 32], sizes = [4, 32], strides = [1, 1]} : vector<4x64xf32> to vector<4x32xf32>
    %219 = vector.extract_strided_slice %204 {offsets = [0, 64], sizes = [4, 32], strides = [1, 1]} : vector<4x96xf32> to vector<4x32xf32>
    %220 = vector.broadcast %46 : vector<1x32xf32> to vector<4x32xf32>
    %221 = arith.addf %219, %220 : vector<4x32xf32>
    %222 = vector.extract_strided_slice %206 {offsets = [0, 64], sizes = [4, 32], strides = [1, 1]} : vector<4x96xf32> to vector<4x32xf32>
    %223 = vector.broadcast %47 : vector<1x32xf32> to vector<4x32xf32>
    %224 = arith.addf %222, %223 : vector<4x32xf32>
    %225 = arith.mulf %217, %224 : vector<4x32xf32>
    %226 = arith.addf %221, %225 : vector<4x32xf32>
    %227 = math.tanh %226 : vector<4x32xf32>
    %cst_89 = arith.constant 1.000000e+00 : f32
    %228 = vector.broadcast %cst_89 : f32 to vector<4x32xf32>
    %229 = arith.subf %228, %218 : vector<4x32xf32>
    %230 = arith.mulf %229, %227 : vector<4x32xf32>
    %231 = arith.mulf %218, %159 : vector<4x32xf32>
    %232 = arith.addf %230, %231 : vector<4x32xf32>
    %cst_90 = arith.constant dense<0.000000e+00> : vector<4xf32>
    %233 = vector.multi_reduction <add>, %232, %cst_90 [1] : vector<4x32xf32> to vector<4xf32>
    %234 = vector.shape_cast %233 : vector<4xf32> to vector<4x1xf32>
    %cst_91 = arith.constant 3.200000e+01 : f32
    %235 = vector.broadcast %cst_91 : f32 to vector<4x1xf32>
    %236 = arith.divf %234, %235 : vector<4x1xf32>
    %237 = vector.broadcast %236 : vector<4x1xf32> to vector<4x32xf32>
    %238 = arith.subf %232, %237 : vector<4x32xf32>
    %239 = arith.mulf %238, %238 : vector<4x32xf32>
    %cst_92 = arith.constant dense<0.000000e+00> : vector<4xf32>
    %240 = vector.multi_reduction <add>, %239, %cst_92 [1] : vector<4x32xf32> to vector<4xf32>
    %241 = vector.shape_cast %240 : vector<4xf32> to vector<4x1xf32>
    %cst_93 = arith.constant 3.200000e+01 : f32
    %242 = vector.broadcast %cst_93 : f32 to vector<4x1xf32>
    %243 = arith.divf %241, %242 : vector<4x1xf32>
    %cst_94 = arith.constant 9.99999974E-6 : f32
    %244 = vector.broadcast %cst_94 : f32 to vector<4x1xf32>
    %245 = arith.addf %243, %244 : vector<4x1xf32>
    %246 = math.rsqrt %245 : vector<4x1xf32>
    %247 = vector.broadcast %246 : vector<4x1xf32> to vector<4x32xf32>
    %248 = arith.mulf %238, %247 : vector<4x32xf32>
    %249 = vector.broadcast %50 : vector<1x32xf32> to vector<4x32xf32>
    %250 = arith.mulf %248, %249 : vector<4x32xf32>
    %251 = vector.broadcast %51 : vector<1x32xf32> to vector<4x32xf32>
    %252 = arith.addf %250, %251 : vector<4x32xf32>
    %253 = arith.truncf %252 : vector<4x32xf32> to vector<4x32xbf16>
    %cst_95 = arith.constant dense<0.000000e+00> : vector<4x128xf32>
    %254 = tpu.matmul %253, %52, %cst_95 {dimension_numbers = #tpu.dot_dimension_numbers<[1], [0], [0], [1], [0, 0, 1, 1], [], []>} : vector<4x32xbf16>, vector<32x128xbf16>, vector<4x128xf32> -> vector<4x128xf32>
    %255 = vector.broadcast %53 : vector<1x128xf32> to vector<4x128xf32>
    %256 = arith.addf %254, %255 : vector<4x128xf32>
    %cst_96 = arith.constant 0.000000e+00 : f32
    %257 = vector.broadcast %cst_96 : f32 to vector<4x128xf32>
    %258 = arith.maximumf %256, %257 : vector<4x128xf32>
    %259 = arith.truncf %258 : vector<4x128xf32> to vector<4x128xbf16>
    %cst_97 = arith.constant dense<0.000000e+00> : vector<4x32xf32>
    %260 = tpu.matmul %259, %54, %cst_97 {dimension_numbers = #tpu.dot_dimension_numbers<[1], [0], [0], [1], [0, 0, 1, 1], [], []>} : vector<4x128xbf16>, vector<128x32xbf16>, vector<4x32xf32> -> vector<4x32xf32>
    %261 = vector.broadcast %55 : vector<1x32xf32> to vector<4x32xf32>
    %262 = arith.addf %260, %261 : vector<4x32xf32>
    %263 = arith.addf %232, %262 : vector<4x32xf32>
    %cst_98 = arith.constant dense<0.000000e+00> : vector<4xf32>
    %264 = vector.multi_reduction <add>, %263, %cst_98 [1] : vector<4x32xf32> to vector<4xf32>
    %265 = vector.shape_cast %264 : vector<4xf32> to vector<4x1xf32>
    %cst_99 = arith.constant 3.200000e+01 : f32
    %266 = vector.broadcast %cst_99 : f32 to vector<4x1xf32>
    %267 = arith.divf %265, %266 : vector<4x1xf32>
    %268 = vector.broadcast %267 : vector<4x1xf32> to vector<4x32xf32>
    %269 = arith.subf %263, %268 : vector<4x32xf32>
    %270 = arith.mulf %269, %269 : vector<4x32xf32>
    %cst_100 = arith.constant dense<0.000000e+00> : vector<4xf32>
    %271 = vector.multi_reduction <add>, %270, %cst_100 [1] : vector<4x32xf32> to vector<4xf32>
    %272 = vector.shape_cast %271 : vector<4xf32> to vector<4x1xf32>
    %cst_101 = arith.constant 3.200000e+01 : f32
    %273 = vector.broadcast %cst_101 : f32 to vector<4x1xf32>
    %274 = arith.divf %272, %273 : vector<4x1xf32>
    %cst_102 = arith.constant 9.99999974E-6 : f32
    %275 = vector.broadcast %cst_102 : f32 to vector<4x1xf32>
    %276 = arith.addf %274, %275 : vector<4x1xf32>
    %277 = math.rsqrt %276 : vector<4x1xf32>
    %278 = vector.broadcast %277 : vector<4x1xf32> to vector<4x32xf32>
    %279 = arith.mulf %269, %278 : vector<4x32xf32>
    %280 = vector.broadcast %48 : vector<1x32xf32> to vector<4x32xf32>
    %281 = arith.mulf %279, %280 : vector<4x32xf32>
    %282 = vector.broadcast %49 : vector<1x32xf32> to vector<4x32xf32>
    %283 = arith.addf %281, %282 : vector<4x32xf32>
    %284 = arith.truncf %283 : vector<4x32xf32> to vector<4x32xbf16>
    %cst_103 = arith.constant dense<0.000000e+00> : vector<4x32xf32>
    %285 = tpu.matmul %284, %42, %cst_103 {dimension_numbers = #tpu.dot_dimension_numbers<[1], [0], [0], [1], [0, 0, 1, 1], [], []>} : vector<4x32xbf16>, vector<32x32xbf16>, vector<4x32xf32> -> vector<4x32xf32>
    %286 = arith.truncf %285 : vector<4x32xf32> to vector<4x32xbf16>
    %cst_104 = arith.constant dense<0.000000e+00> : vector<4x16xf32>
    %287 = tpu.matmul %286, %28, %cst_104 {dimension_numbers = #tpu.dot_dimension_numbers<[1], [1], [0], [0], [0, 0, 1, 0], [], []>} : vector<4x32xbf16>, vector<16x32xbf16>, vector<4x16xf32> -> vector<4x16xf32>
    %cst_105 = arith.constant dense<0xFF800000> : vector<16xf32>
    %288 = vector.multi_reduction <maximumf>, %287, %cst_105 [0] : vector<4x16xf32> to vector<16xf32>
    %289 = vector.shape_cast %288 : vector<16xf32> to vector<1x16xf32>
    %290 = vector.broadcast %289 : vector<1x16xf32> to vector<4x16xf32>
    %291 = arith.subf %287, %290 : vector<4x16xf32>
    %292 = math.exp %291 : vector<4x16xf32>
    %cst_106 = arith.constant dense<0.000000e+00> : vector<16xf32>
    %293 = vector.multi_reduction <add>, %292, %cst_106 [0] : vector<4x16xf32> to vector<16xf32>
    %294 = vector.shape_cast %293 : vector<16xf32> to vector<1x16xf32>
    %295 = tpu.reciprocal %294 {approx = true} : vector<1x16xf32> -> vector<1x16xf32>
    %296 = vector.broadcast %295 : vector<1x16xf32> to vector<4x16xf32>
    %297 = arith.mulf %292, %296 : vector<4x16xf32>
    %cst_107 = arith.constant 9.99999993E-9 : f32
    %298 = vector.broadcast %cst_107 : f32 to vector<4x16xf32>
    %299 = arith.addf %297, %298 : vector<4x16xf32>
    %cst_108 = arith.constant dense<0.000000e+00> : vector<4xf32>
    %300 = vector.multi_reduction <add>, %299, %cst_108 [1] : vector<4x16xf32> to vector<4xf32>
    %301 = vector.shape_cast %300 : vector<4xf32> to vector<4x1xf32>
    %302 = tpu.reciprocal %301 {approx = true} : vector<4x1xf32> -> vector<4x1xf32>
    %303 = vector.broadcast %302 : vector<4x1xf32> to vector<4x16xf32>
    %304 = arith.mulf %299, %303 : vector<4x16xf32>
    %305 = arith.truncf %304 : vector<4x16xf32> to vector<4x16xbf16>
    %cst_109 = arith.constant dense<0.000000e+00> : vector<4x32xf32>
    %306 = tpu.matmul %305, %30, %cst_109 {dimension_numbers = #tpu.dot_dimension_numbers<[1], [0], [0], [1], [0, 0, 1, 1], [], []>} : vector<4x16xbf16>, vector<16x32xbf16>, vector<4x32xf32> -> vector<4x32xf32>
    %307 = arith.truncf %306 : vector<4x32xf32> to vector<4x32xbf16>
    %cst_110 = arith.constant dense<0.000000e+00> : vector<4x96xf32>
    %308 = tpu.matmul %307, %43, %cst_110 {dimension_numbers = #tpu.dot_dimension_numbers<[1], [0], [0], [1], [0, 0, 1, 1], [], []>} : vector<4x32xbf16>, vector<32x96xbf16>, vector<4x96xf32> -> vector<4x96xf32>
    %309 = arith.truncf %263 : vector<4x32xf32> to vector<4x32xbf16>
    %cst_111 = arith.constant dense<0.000000e+00> : vector<4x96xf32>
    %310 = tpu.matmul %309, %44, %cst_111 {dimension_numbers = #tpu.dot_dimension_numbers<[1], [0], [0], [1], [0, 0, 1, 1], [], []>} : vector<4x32xbf16>, vector<32x96xbf16>, vector<4x96xf32> -> vector<4x96xf32>
    %311 = vector.extract_strided_slice %308 {offsets = [0, 0], sizes = [4, 64], strides = [1, 1]} : vector<4x96xf32> to vector<4x64xf32>
    %312 = vector.extract_strided_slice %310 {offsets = [0, 0], sizes = [4, 64], strides = [1, 1]} : vector<4x96xf32> to vector<4x64xf32>
    %313 = arith.addf %311, %312 : vector<4x64xf32>
    %314 = vector.broadcast %45 : vector<1x64xf32> to vector<4x64xf32>
    %315 = arith.addf %313, %314 : vector<4x64xf32>
    %316 = arith.negf %315 : vector<4x64xf32>
    %317 = math.exp %316 : vector<4x64xf32>
    %cst_112 = arith.constant 1.000000e+00 : f32
    %318 = vector.broadcast %cst_112 : f32 to vector<4x64xf32>
    %319 = arith.addf %318, %317 : vector<4x64xf32>
    %320 = arith.divf %318, %319 : vector<4x64xf32>
    %321 = vector.extract_strided_slice %320 {offsets = [0, 0], sizes = [4, 32], strides = [1, 1]} : vector<4x64xf32> to vector<4x32xf32>
    %322 = vector.extract_strided_slice %320 {offsets = [0, 32], sizes = [4, 32], strides = [1, 1]} : vector<4x64xf32> to vector<4x32xf32>
    %323 = vector.extract_strided_slice %308 {offsets = [0, 64], sizes = [4, 32], strides = [1, 1]} : vector<4x96xf32> to vector<4x32xf32>
    %324 = vector.broadcast %46 : vector<1x32xf32> to vector<4x32xf32>
    %325 = arith.addf %323, %324 : vector<4x32xf32>
    %326 = vector.extract_strided_slice %310 {offsets = [0, 64], sizes = [4, 32], strides = [1, 1]} : vector<4x96xf32> to vector<4x32xf32>
    %327 = vector.broadcast %47 : vector<1x32xf32> to vector<4x32xf32>
    %328 = arith.addf %326, %327 : vector<4x32xf32>
    %329 = arith.mulf %321, %328 : vector<4x32xf32>
    %330 = arith.addf %325, %329 : vector<4x32xf32>
    %331 = math.tanh %330 : vector<4x32xf32>
    %cst_113 = arith.constant 1.000000e+00 : f32
    %332 = vector.broadcast %cst_113 : f32 to vector<4x32xf32>
    %333 = arith.subf %332, %322 : vector<4x32xf32>
    %334 = arith.mulf %333, %331 : vector<4x32xf32>
    %335 = arith.mulf %322, %263 : vector<4x32xf32>
    %336 = arith.addf %334, %335 : vector<4x32xf32>
    %cst_114 = arith.constant dense<0.000000e+00> : vector<4xf32>
    %337 = vector.multi_reduction <add>, %336, %cst_114 [1] : vector<4x32xf32> to vector<4xf32>
    %338 = vector.shape_cast %337 : vector<4xf32> to vector<4x1xf32>
    %cst_115 = arith.constant 3.200000e+01 : f32
    %339 = vector.broadcast %cst_115 : f32 to vector<4x1xf32>
    %340 = arith.divf %338, %339 : vector<4x1xf32>
    %341 = vector.broadcast %340 : vector<4x1xf32> to vector<4x32xf32>
    %342 = arith.subf %336, %341 : vector<4x32xf32>
    %343 = arith.mulf %342, %342 : vector<4x32xf32>
    %cst_116 = arith.constant dense<0.000000e+00> : vector<4xf32>
    %344 = vector.multi_reduction <add>, %343, %cst_116 [1] : vector<4x32xf32> to vector<4xf32>
    %345 = vector.shape_cast %344 : vector<4xf32> to vector<4x1xf32>
    %cst_117 = arith.constant 3.200000e+01 : f32
    %346 = vector.broadcast %cst_117 : f32 to vector<4x1xf32>
    %347 = arith.divf %345, %346 : vector<4x1xf32>
    %cst_118 = arith.constant 9.99999974E-6 : f32
    %348 = vector.broadcast %cst_118 : f32 to vector<4x1xf32>
    %349 = arith.addf %347, %348 : vector<4x1xf32>
    %350 = math.rsqrt %349 : vector<4x1xf32>
    %351 = vector.broadcast %350 : vector<4x1xf32> to vector<4x32xf32>
    %352 = arith.mulf %342, %351 : vector<4x32xf32>
    %353 = vector.broadcast %50 : vector<1x32xf32> to vector<4x32xf32>
    %354 = arith.mulf %352, %353 : vector<4x32xf32>
    %355 = vector.broadcast %51 : vector<1x32xf32> to vector<4x32xf32>
    %356 = arith.addf %354, %355 : vector<4x32xf32>
    %357 = arith.truncf %356 : vector<4x32xf32> to vector<4x32xbf16>
    %cst_119 = arith.constant dense<0.000000e+00> : vector<4x128xf32>
    %358 = tpu.matmul %357, %52, %cst_119 {dimension_numbers = #tpu.dot_dimension_numbers<[1], [0], [0], [1], [0, 0, 1, 1], [], []>} : vector<4x32xbf16>, vector<32x128xbf16>, vector<4x128xf32> -> vector<4x128xf32>
    %359 = vector.broadcast %53 : vector<1x128xf32> to vector<4x128xf32>
    %360 = arith.addf %358, %359 : vector<4x128xf32>
    %cst_120 = arith.constant 0.000000e+00 : f32
    %361 = vector.broadcast %cst_120 : f32 to vector<4x128xf32>
    %362 = arith.maximumf %360, %361 : vector<4x128xf32>
    %363 = arith.truncf %362 : vector<4x128xf32> to vector<4x128xbf16>
    %cst_121 = arith.constant dense<0.000000e+00> : vector<4x32xf32>
    %364 = tpu.matmul %363, %54, %cst_121 {dimension_numbers = #tpu.dot_dimension_numbers<[1], [0], [0], [1], [0, 0, 1, 1], [], []>} : vector<4x128xbf16>, vector<128x32xbf16>, vector<4x32xf32> -> vector<4x32xf32>
    %365 = vector.broadcast %55 : vector<1x32xf32> to vector<4x32xf32>
    %366 = arith.addf %364, %365 : vector<4x32xf32>
    %367 = arith.addf %336, %366 : vector<4x32xf32>
    %c0_122 = arith.constant 0 : index
    %c0_123 = arith.constant 0 : index
    %c0_124 = arith.constant 0 : index
    %368 = vector.load %arg22[%c0_122, %c0_123, %c0_124] : memref<1x4x32xf32, #tpu.memory_space<vmem>>, vector<1x4x32xf32>
    %369 = vector.shape_cast %368 : vector<1x4x32xf32> to vector<4x32xf32>
    %370 = vector.shape_cast %367 : vector<4x32xf32> to vector<1x4x32xf32>
    tpu.vector_store %arg22[%c0_122, %c0_123, %c0_124], %370 {strides = array<i32>} : memref<1x4x32xf32, #tpu.memory_space<vmem>>, vector<1x4x32xf32>,
    return
  }
  func.func @transform_0(%arg0: i32) -> (i32, i32, i32) {
    %c0_i32 = arith.constant 0 : i32
    %c0_i32_0 = arith.constant 0 : i32
    %c0_i32_1 = arith.constant 0 : i32
    return %arg0, %c0_i32, %c0_i32_0 : i32, i32, i32
  }
  func.func @transform_1(%arg0: i32) -> (i32, i32, i32) {
    %c0_i32 = arith.constant 0 : i32
    %c0_i32_0 = arith.constant 0 : i32
    %c0_i32_1 = arith.constant 0 : i32
    return %arg0, %c0_i32, %c0_i32_0 : i32, i32, i32
  }
  func.func @transform_2(%arg0: i32) -> (i32, i32, i32) {
    %c0_i32 = arith.constant 0 : i32
    %c0_i32_0 = arith.constant 0 : i32
    %c0_i32_1 = arith.constant 0 : i32
    %c0_i32_2 = arith.constant 0 : i32
    return %c0_i32, %c0_i32_0, %c0_i32_1 : i32, i32, i32
  }
  func.func @transform_3(%arg0: i32) -> (i32, i32, i32) {
    %c0_i32 = arith.constant 0 : i32
    %c0_i32_0 = arith.constant 0 : i32
    %c0_i32_1 = arith.constant 0 : i32
    %c0_i32_2 = arith.constant 0 : i32
    return %c0_i32, %c0_i32_0, %c0_i32_1 : i32, i32, i32
  }
  func.func @transform_4(%arg0: i32) -> (i32, i32) {
    %c0_i32 = arith.constant 0 : i32
    %c0_i32_0 = arith.constant 0 : i32
    %c0_i32_1 = arith.constant 0 : i32
    return %c0_i32, %c0_i32_0 : i32, i32
  }
  func.func @transform_5(%arg0: i32) -> (i32, i32) {
    %c0_i32 = arith.constant 0 : i32
    %c0_i32_0 = arith.constant 0 : i32
    %c0_i32_1 = arith.constant 0 : i32
    return %c0_i32, %c0_i32_0 : i32, i32
  }
  func.func @transform_6(%arg0: i32) -> (i32, i32) {
    %c0_i32 = arith.constant 0 : i32
    %c0_i32_0 = arith.constant 0 : i32
    %c0_i32_1 = arith.constant 0 : i32
    return %c0_i32, %c0_i32_0 : i32, i32
  }
  func.func @transform_7(%arg0: i32) -> (i32, i32) {
    %c0_i32 = arith.constant 0 : i32
    %c0_i32_0 = arith.constant 0 : i32
    %c0_i32_1 = arith.constant 0 : i32
    return %c0_i32, %c0_i32_0 : i32, i32
  }
  func.func @transform_8(%arg0: i32) -> (i32, i32) {
    %c0_i32 = arith.constant 0 : i32
    %c0_i32_0 = arith.constant 0 : i32
    %c0_i32_1 = arith.constant 0 : i32
    return %c0_i32, %c0_i32_0 : i32, i32
  }
  func.func @transform_9(%arg0: i32) -> (i32, i32) {
    %c0_i32 = arith.constant 0 : i32
    %c0_i32_0 = arith.constant 0 : i32
    %c0_i32_1 = arith.constant 0 : i32
    return %c0_i32, %c0_i32_0 : i32, i32
  }
  func.func @transform_10(%arg0: i32) -> (i32, i32) {
    %c0_i32 = arith.constant 0 : i32
    %c0_i32_0 = arith.constant 0 : i32
    %c0_i32_1 = arith.constant 0 : i32
    return %c0_i32, %c0_i32_0 : i32, i32
  }
  func.func @transform_11(%arg0: i32) -> (i32, i32) {
    %c0_i32 = arith.constant 0 : i32
    %c0_i32_0 = arith.constant 0 : i32
    %c0_i32_1 = arith.constant 0 : i32
    return %c0_i32, %c0_i32_0 : i32, i32
  }
  func.func @transform_12(%arg0: i32) -> (i32, i32) {
    %c0_i32 = arith.constant 0 : i32
    %c0_i32_0 = arith.constant 0 : i32
    %c0_i32_1 = arith.constant 0 : i32
    return %c0_i32, %c0_i32_0 : i32, i32
  }
  func.func @transform_13(%arg0: i32) -> (i32, i32) {
    %c0_i32 = arith.constant 0 : i32
    %c0_i32_0 = arith.constant 0 : i32
    %c0_i32_1 = arith.constant 0 : i32
    return %c0_i32, %c0_i32_0 : i32, i32
  }
  func.func @transform_14(%arg0: i32) -> (i32, i32) {
    %c0_i32 = arith.constant 0 : i32
    %c0_i32_0 = arith.constant 0 : i32
    %c0_i32_1 = arith.constant 0 : i32
    return %c0_i32, %c0_i32_0 : i32, i32
  }
  func.func @transform_15(%arg0: i32) -> (i32, i32) {
    %c0_i32 = arith.constant 0 : i32
    %c0_i32_0 = arith.constant 0 : i32
    %c0_i32_1 = arith.constant 0 : i32
    return %c0_i32, %c0_i32_0 : i32, i32
  }
  func.func @transform_16(%arg0: i32) -> (i32, i32) {
    %c0_i32 = arith.constant 0 : i32
    %c0_i32_0 = arith.constant 0 : i32
    %c0_i32_1 = arith.constant 0 : i32
    return %c0_i32, %c0_i32_0 : i32, i32
  }
  func.func @transform_17(%arg0: i32) -> (i32, i32) {
    %c0_i32 = arith.constant 0 : i32
    %c0_i32_0 = arith.constant 0 : i32
    %c0_i32_1 = arith.constant 0 : i32
    return %c0_i32, %c0_i32_0 : i32, i32
  }
  func.func @transform_18(%arg0: i32) -> (i32, i32) {
    %c0_i32 = arith.constant 0 : i32
    %c0_i32_0 = arith.constant 0 : i32
    %c0_i32_1 = arith.constant 0 : i32
    return %c0_i32, %c0_i32_0 : i32, i32
  }
  func.func @transform_19(%arg0: i32) -> (i32, i32) {
    %c0_i32 = arith.constant 0 : i32
    %c0_i32_0 = arith.constant 0 : i32
    %c0_i32_1 = arith.constant 0 : i32
    return %c0_i32, %c0_i32_0 : i32, i32
  }
  func.func @transform_20(%arg0: i32) -> (i32, i32) {
    %c0_i32 = arith.constant 0 : i32
    %c0_i32_0 = arith.constant 0 : i32
    %c0_i32_1 = arith.constant 0 : i32
    return %c0_i32, %c0_i32_0 : i32, i32
  }
  func.func @transform_21(%arg0: i32) -> (i32, i32, i32) {
    %c0_i32 = arith.constant 0 : i32
    %c0_i32_0 = arith.constant 0 : i32
    %c0_i32_1 = arith.constant 0 : i32
    return %arg0, %c0_i32, %c0_i32_0 : i32, i32, i32
  }
}

</mosaic_0001>

<llo_original>
// kernel: tpu_custom_call.1
$region0: #{tpu_custom_call.1}
  #allocation0 [shape = 'u32[]', space=smem, size = 0x4, offset = 0x4, fixed_abs, tag = 'smem constant byte address 0x4 - core index']
  #allocation1 [shape = 'u32[144,128]{1,0:T(1,128)}', space=vmem, size = 0x12000, scoped, tag = 'internal scratch']
  %s0 = inlined_call_operand.vmem [shape: f32[2,16,32], index: 0, kind: input, shape index: {}]
  %s1 = inlined_call_operand.hbm [shape: f32[2,4,32], index: 1, kind: input, shape index: {}]
  %s2 = inlined_call_operand.vmem [shape: f32[1,1,32], index: 2, kind: input, shape index: {}]
  %s3 = inlined_call_operand.hbm [shape: f32[1,1,32], index: 3, kind: input, shape index: {}]
  %s4 = inlined_call_operand.hbm [shape: f32[1,32], index: 4, kind: input, shape index: {}]
  %s5 = inlined_call_operand.hbm [shape: f32[1,32], index: 5, kind: input, shape index: {}]
  %s6 = inlined_call_operand.vmem [shape: bf16[32,32], index: 6, kind: input, shape index: {}]
  %s7 = inlined_call_operand.vmem [shape: bf16[32,64], index: 7, kind: input, shape index: {}]
  %s8 = inlined_call_operand.hbm [shape: f32[1,32], index: 8, kind: input, shape index: {}]
  %s9 = inlined_call_operand.hbm [shape: f32[1,32], index: 9, kind: input, shape index: {}]
  %s10 = inlined_call_operand.vmem [shape: bf16[32,96], index: 10, kind: input, shape index: {}]
  %s11 = inlined_call_operand.vmem [shape: bf16[32,96], index: 11, kind: input, shape index: {}]
  %s12 = inlined_call_operand.hbm [shape: f32[1,64], index: 12, kind: input, shape index: {}]
  %s13 = inlined_call_operand.hbm [shape: f32[1,32], index: 13, kind: input, shape index: {}]
  %s14 = inlined_call_operand.vmem [shape: f32[1,32], index: 14, kind: input, shape index: {}]
  %s15 = inlined_call_operand.vmem [shape: f32[1,32], index: 15, kind: input, shape index: {}]
  %s16 = inlined_call_operand.vmem [shape: f32[1,32], index: 16, kind: input, shape index: {}]
  %s17 = inlined_call_operand.vmem [shape: bf16[32,128], index: 17, kind: input, shape index: {}]
  %s18 = inlined_call_operand.vmem [shape: f32[1,128], index: 18, kind: input, shape index: {}]
  %s19 = inlined_call_operand.vmem [shape: bf16[128,32], index: 19, kind: input, shape index: {}]
  %s20 = inlined_call_operand.vmem [shape: f32[1,32], index: 20, kind: input, shape index: {}]
  %s21 = inlined_call_operand.hbm [shape: f32[2,4,32], index: 21, kind: output, shape index: {}]
  %s22 = sld [smem:[#allocation0]]
  $region149: #{tpu_custom_call.1} parent=0
    _
  %s24 = ssub.s32 1, %s22
  %s25 = scalar_select 0, %s24, %s22
  $region1: #{tpu_custom_call.1} parent=0
    #allocation2 [shape = 'u8[4096]{0}', space=vmem, size = 0x1000, scoped, tag = 'input window, operand 1']
    #allocation3 [shape = 's32[2]{0}', space=sflag, size = 0x8, scoped, tag = 'scoped memory for tpu_custom_call.1']
    #allocation4 [shape = 's32[2]{0}', space=sflag, size = 0x8, scoped, tag = 'scoped memory for tpu_custom_call.1']
    #allocation5 [shape = 'u8[512]{0}', space=vmem, size = 0x400, scoped, tag = 'input window, operand 3, single buffered']
    #allocation6 [shape = 's32[1]{0}', space=sflag, size = 0x4, scoped, tag = 'scoped memory for tpu_custom_call.1']
    #allocation7 [shape = 'u8[512]{0}', space=vmem, size = 0x400, scoped, tag = 'input window, operand 4, single buffered']
    #allocation8 [shape = 'u8[512]{0}', space=vmem, size = 0x400, scoped, tag = 'input window, operand 5, single buffered']
    #allocation9 [shape = 's32[1]{0}', space=sflag, size = 0x4, scoped, tag = 'scoped memory for tpu_custom_call.1']
    #allocation10 [shape = 'u8[512]{0}', space=vmem, size = 0x400, scoped, tag = 'input window, operand 8, single buffered']
    #allocation11 [shape = 'u8[512]{0}', space=vmem, size = 0x400, scoped, tag = 'input window, operand 9, single buffered']
    #allocation12 [shape = 's32[1]{0}', space=sflag, size = 0x4, scoped, tag = 'scoped memory for tpu_custom_call.1']
    #allocation13 [shape = 'u8[512]{0}', space=vmem, size = 0x400, scoped, tag = 'input window, operand 12, single buffered']
    #allocation14 [shape = 'u8[512]{0}', space=vmem, size = 0x400, scoped, tag = 'input window, operand 13, single buffered']
    #allocation15 [shape = 's32[1]{0}', space=sflag, size = 0x4, scoped, tag = 'scoped memory for tpu_custom_call.1']
    #allocation16 [shape = 'u8[4096]{0}', space=vmem, size = 0x1000, scoped, tag = 'output window, operand 0']
    %26 = vsyncpa [#allocation3], 0
    %s27 = scalar_lea.sflag [#allocation3], 1
    %28 = vsyncpa %s27, 0
    %29 = vsyncpa [#allocation6], 0
    %30 = vsyncpa [#allocation9], 0
    %31 = vsyncpa [#allocation12], 0
    %32 = vsyncpa [#allocation15], 0
    %33 = vsyncpa [#allocation4], 0
    %s34 = scalar_lea.sflag [#allocation4], 1
    %35 = vsyncpa %s34, 0
    loop: start=0, step=1, limit=4
    $region2: #{tpu_custom_call.1} parent=1 // loop_pre_header
      _
    $region3: #{tpu_custom_call.1} parent=1 // loop_header
      %s37 = sphi 0, %s41
      %p38 = scmp.ge.s32.totalorder %s37, 4
      %s47 = sphi 0, %s49
      %s50 = sphi 0, %s47
      %s51 = sphi 0, %s50
      %s67 = sphi 0, %s51
      %s73 = sphi 0, %s75
      %s76 = sphi 0, %s73
      %s77 = sphi 0, %s76
      %s93 = sphi 0, %s77
      %s97 = sphi 0, %s97
      %s99 = sphi 0, %s97
      %s100 = sphi 0, %s99
      %s114 = sphi 0, %s100
      %s118 = sphi 0, %s118
      %s120 = sphi 0, %s118
      %s121 = sphi 0, %s120
      %s135 = sphi 0, %s121
      %s139 = sphi 0, %s139
      %s141 = sphi 0, %s139
      %s142 = sphi 0, %s141
      %s156 = sphi 0, %s142
      %s160 = sphi 0, %s160
      %s162 = sphi 0, %s160
      %s163 = sphi 0, %s162
      %s177 = sphi 0, %s163
      %s181 = sphi 0, %s181
      %s183 = sphi 0, %s181
      %s184 = sphi 0, %s183
      %s198 = sphi 0, %s184
      %s202 = sphi 0, %s202
      %s204 = sphi 0, %s202
      %s205 = sphi 0, %s204
      %s219 = sphi 0, %s205
      %s223 = sphi 0, %s223
      %s225 = sphi 0, %s223
      %s226 = sphi 0, %s225
      %s240 = sphi 0, %s226
      %s244 = sphi 0, %s244
      %s246 = sphi 0, %s244
      %s247 = sphi 0, %s246
      %s261 = sphi 0, %s247
      %s265 = sphi 0, %s265
      %s267 = sphi 0, %s265
      %s268 = sphi 0, %s267
      %s282 = sphi 0, %s268
      %s286 = sphi 0, %s286
      %s288 = sphi 0, %s286
      %s289 = sphi 0, %s288
      %s303 = sphi 0, %s289
      %s307 = sphi 0, %s307
      %s309 = sphi 0, %s307
      %s310 = sphi 0, %s309
      %s324 = sphi 0, %s310
      %s328 = sphi 0, %s328
      %s330 = sphi 0, %s328
      %s331 = sphi 0, %s330
      %s345 = sphi 0, %s331
      %s349 = sphi 0, %s349
      %s351 = sphi 0, %s349
      %s352 = sphi 0, %s351
      %s366 = sphi 0, %s352
      %s370 = sphi 0, %s370
      %s372 = sphi 0, %s370
      %s373 = sphi 0, %s372
      %s387 = sphi 0, %s373
      %s391 = sphi 0, %s391
      %s393 = sphi 0, %s391
      %s394 = sphi 0, %s393
      %s408 = sphi 0, %s394
      %s412 = sphi 0, %s412
      %s414 = sphi 0, %s412
      %s415 = sphi 0, %s414
      %s429 = sphi 0, %s415
      %s433 = sphi 0, %s433
      %s435 = sphi 0, %s433
      %s436 = sphi 0, %s435
      %s450 = sphi 0, %s436
      %s454 = sphi 0, %s454
      %s456 = sphi 0, %s454
      %s457 = sphi 0, %s456
      %s471 = sphi 0, %s457
      %s475 = sphi 0, %s475
      %s477 = sphi 0, %s475
      %s478 = sphi 0, %s477
      %s492 = sphi 0, %s478
      %s498 = sphi 0, %s500
      %s501 = sphi 0, %s498
      %s502 = sphi 0, %s501
      %s518 = sphi 0, %s502
    $region4: #{tpu_custom_call.1} parent=1 // loop_header_branch
      %40 = sbr.rel (%p38) target = $region8
    $region5: #{tpu_custom_call.1} parent=1 // loop_body
      %s42 = ssub.s32 %s37, 1
      %s43 = ssub.s32 %s37, 2
      %s44 = sadd.s32 %s37, 1
      %s45 = ssub.s32 %s37, %s44
      %p46 = scmp.eq.s32.totalorder %s45, 0
      %s48 = sadd.s32 %s47, 1
      %s49 = scalar_select %p46, %s47, %s48
      %p52 = pneg %p46
      %p53 = scmp.eq.s32.totalorder %s37, 1
      %p54 = por %p52, %p53
      %p55 = scmp.ne.s32.totalorder %s47, %s50
      %p56 = scmp.eq.s32.totalorder %s37, 0
      %p57 = por %p55, %p56
      %p58 = scmp.ne.s32.totalorder %s47, %s50
      %p59 = scmp.eq.s32.totalorder %s42, 1
      %p60 = por %p58, %p59
      %p61 = scmp.ne.s32.totalorder %s50, %s51
      %p62 = scmp.eq.s32.totalorder %s42, 0
      %p63 = por %p61, %p62
      %p64 = scmp.ne.s32.totalorder %s50, %s51
      %p65 = scmp.eq.s32.totalorder %s43, 1
      %p66 = por %p64, %p65
      %p68 = scmp.ne.s32.totalorder %s51, %s67
      %p69 = scmp.eq.s32.totalorder %s43, 0
      %p70 = por %p68, %p69
      %s71 = ssub.s32 %s37, %s44
      %p72 = scmp.eq.s32.totalorder %s71, 0
      %s74 = sadd.s32 %s73, 1
      %s75 = scalar_select %p72, %s73, %s74
      %p78 = pneg %p72
      %p79 = scmp.eq.s32.totalorder %s37, 1
      %p80 = por %p78, %p79
      %p81 = scmp.ne.s32.totalorder %s73, %s76
      %p82 = scmp.eq.s32.totalorder %s37, 0
      %p83 = por %p81, %p82
      %p84 = scmp.ne.s32.totalorder %s73, %s76
      %p85 = scmp.eq.s32.totalorder %s42, 1
      %p86 = por %p84, %p85
      %p87 = scmp.ne.s32.totalorder %s76, %s77
      %p88 = scmp.eq.s32.totalorder %s42, 0
      %p89 = por %p87, %p88
      %p90 = scmp.ne.s32.totalorder %s76, %s77
      %p91 = scmp.eq.s32.totalorder %s43, 1
      %p92 = por %p90, %p91
      %p94 = scmp.ne.s32.totalorder %s77, %s93
      %p95 = scmp.eq.s32.totalorder %s43, 0
      %p96 = por %p94, %p95
      %s98 = sadd.s32 %s97, 1
      %p101 = scmp.eq.s32.totalorder %s37, 1
      %p102 = scmp.ne.s32.totalorder %s97, %s99
      %p103 = scmp.eq.s32.totalorder %s37, 0
      %p104 = por %p102, %p103
      %p105 = scmp.ne.s32.totalorder %s97, %s99
      %p106 = scmp.eq.s32.totalorder %s42, 1
      %p107 = por %p105, %p106
      %p108 = scmp.ne.s32.totalorder %s99, %s100
      %p109 = scmp.eq.s32.totalorder %s42, 0
      %p110 = por %p108, %p109
      %p111 = scmp.ne.s32.totalorder %s99, %s100
      %p112 = scmp.eq.s32.totalorder %s43, 1
      %p113 = por %p111, %p112
      %p115 = scmp.ne.s32.totalorder %s100, %s114
      %p116 = scmp.eq.s32.totalorder %s43, 0
      %p117 = por %p115, %p116
      %s119 = sadd.s32 %s118, 1
      %p122 = scmp.eq.s32.totalorder %s37, 1
      %p123 = scmp.ne.s32.totalorder %s118, %s120
      %p124 = scmp.eq.s32.totalorder %s37, 0
      %p125 = por %p123, %p124
      %p126 = scmp.ne.s32.totalorder %s118, %s120
      %p127 = scmp.eq.s32.totalorder %s42, 1
      %p128 = por %p126, %p127
      %p129 = scmp.ne.s32.totalorder %s120, %s121
      %p130 = scmp.eq.s32.totalorder %s42, 0
      %p131 = por %p129, %p130
      %p132 = scmp.ne.s32.totalorder %s120, %s121
      %p133 = scmp.eq.s32.totalorder %s43, 1
      %p134 = por %p132, %p133
      %p136 = scmp.ne.s32.totalorder %s121, %s135
      %p137 = scmp.eq.s32.totalorder %s43, 0
      %p138 = por %p136, %p137
      %s140 = sadd.s32 %s139, 1
      %p143 = scmp.eq.s32.totalorder %s37, 1
      %p144 = scmp.ne.s32.totalorder %s139, %s141
      %p145 = scmp.eq.s32.totalorder %s37, 0
      %p146 = por %p144, %p145
      %p147 = scmp.ne.s32.totalorder %s139, %s141
      %p148 = scmp.eq.s32.totalorder %s42, 1
      %p149 = por %p147, %p148
      %p150 = scmp.ne.s32.totalorder %s141, %s142
      %p151 = scmp.eq.s32.totalorder %s42, 0
      %p152 = por %p150, %p151
      %p153 = scmp.ne.s32.totalorder %s141, %s142
      %p154 = scmp.eq.s32.totalorder %s43, 1
      %p155 = por %p153, %p154
      %p157 = scmp.ne.s32.totalorder %s142, %s156
      %p158 = scmp.eq.s32.totalorder %s43, 0
      %p159 = por %p157, %p158
      %s161 = sadd.s32 %s160, 1
      %p164 = scmp.eq.s32.totalorder %s37, 1
      %p165 = scmp.ne.s32.totalorder %s160, %s162
      %p166 = scmp.eq.s32.totalorder %s37, 0
      %p167 = por %p165, %p166
      %p168 = scmp.ne.s32.totalorder %s160, %s162
      %p169 = scmp.eq.s32.totalorder %s42, 1
      %p170 = por %p168, %p169
      %p171 = scmp.ne.s32.totalorder %s162, %s163
      %p172 = scmp.eq.s32.totalorder %s42, 0
      %p173 = por %p171, %p172
      %p174 = scmp.ne.s32.totalorder %s162, %s163
      %p175 = scmp.eq.s32.totalorder %s43, 1
      %p176 = por %p174, %p175
      %p178 = scmp.ne.s32.totalorder %s163, %s177
      %p179 = scmp.eq.s32.totalorder %s43, 0
      %p180 = por %p178, %p179
      %s182 = sadd.s32 %s181, 1
      %p185 = scmp.eq.s32.totalorder %s37, 1
      %p186 = scmp.ne.s32.totalorder %s181, %s183
      %p187 = scmp.eq.s32.totalorder %s37, 0
      %p188 = por %p186, %p187
      %p189 = scmp.ne.s32.totalorder %s181, %s183
      %p190 = scmp.eq.s32.totalorder %s42, 1
      %p191 = por %p189, %p190
      %p192 = scmp.ne.s32.totalorder %s183, %s184
      %p193 = scmp.eq.s32.totalorder %s42, 0
      %p194 = por %p192, %p193
      %p195 = scmp.ne.s32.totalorder %s183, %s184
      %p196 = scmp.eq.s32.totalorder %s43, 1
      %p197 = por %p195, %p196
      %p199 = scmp.ne.s32.totalorder %s184, %s198
      %p200 = scmp.eq.s32.totalorder %s43, 0
      %p201 = por %p199, %p200
      %s203 = sadd.s32 %s202, 1
      %p206 = scmp.eq.s32.totalorder %s37, 1
      %p207 = scmp.ne.s32.totalorder %s202, %s204
      %p208 = scmp.eq.s32.totalorder %s37, 0
      %p209 = por %p207, %p208
      %p210 = scmp.ne.s32.totalorder %s202, %s204
      %p211 = scmp.eq.s32.totalorder %s42, 1
      %p212 = por %p210, %p211
      %p213 = scmp.ne.s32.totalorder %s204, %s205
      %p214 = scmp.eq.s32.totalorder %s42, 0
      %p215 = por %p213, %p214
      %p216 = scmp.ne.s32.totalorder %s204, %s205
      %p217 = scmp.eq.s32.totalorder %s43, 1
      %p218 = por %p216, %p217
      %p220 = scmp.ne.s32.totalorder %s205, %s219
      %p221 = scmp.eq.s32.totalorder %s43, 0
      %p222 = por %p220, %p221
      %s224 = sadd.s32 %s223, 1
      %p227 = scmp.eq.s32.totalorder %s37, 1
      %p228 = scmp.ne.s32.totalorder %s223, %s225
      %p229 = scmp.eq.s32.totalorder %s37, 0
      %p230 = por %p228, %p229
      %p231 = scmp.ne.s32.totalorder %s223, %s225
      %p232 = scmp.eq.s32.totalorder %s42, 1
      %p233 = por %p231, %p232
      %p234 = scmp.ne.s32.totalorder %s225, %s226
      %p235 = scmp.eq.s32.totalorder %s42, 0
      %p236 = por %p234, %p235
      %p237 = scmp.ne.s32.totalorder %s225, %s226
      %p238 = scmp.eq.s32.totalorder %s43, 1
      %p239 = por %p237, %p238
      %p241 = scmp.ne.s32.totalorder %s226, %s240
      %p242 = scmp.eq.s32.totalorder %s43, 0
      %p243 = por %p241, %p242
      %s245 = sadd.s32 %s244, 1
      %p248 = scmp.eq.s32.totalorder %s37, 1
      %p249 = scmp.ne.s32.totalorder %s244, %s246
      %p250 = scmp.eq.s32.totalorder %s37, 0
      %p251 = por %p249, %p250
      %p252 = scmp.ne.s32.totalorder %s244, %s246
      %p253 = scmp.eq.s32.totalorder %s42, 1
      %p254 = por %p252, %p253
      %p255 = scmp.ne.s32.totalorder %s246, %s247
      %p256 = scmp.eq.s32.totalorder %s42, 0
      %p257 = por %p255, %p256
      %p258 = scmp.ne.s32.totalorder %s246, %s247
      %p259 = scmp.eq.s32.totalorder %s43, 1
      %p260 = por %p258, %p259
      %p262 = scmp.ne.s32.totalorder %s247, %s261
      %p263 = scmp.eq.s32.totalorder %s43, 0
      %p264 = por %p262, %p263
      %s266 = sadd.s32 %s265, 1
      %p269 = scmp.eq.s32.totalorder %s37, 1
      %p270 = scmp.ne.s32.totalorder %s265, %s267
      %p271 = scmp.eq.s32.totalorder %s37, 0
      %p272 = por %p270, %p271
      %p273 = scmp.ne.s32.totalorder %s265, %s267
      %p274 = scmp.eq.s32.totalorder %s42, 1
      %p275 = por %p273, %p274
      %p276 = scmp.ne.s32.totalorder %s267, %s268
      %p277 = scmp.eq.s32.totalorder %s42, 0
      %p278 = por %p276, %p277
      %p279 = scmp.ne.s32.totalorder %s267, %s268
      %p280 = scmp.eq.s32.totalorder %s43, 1
      %p281 = por %p279, %p280
      %p283 = scmp.ne.s32.totalorder %s268, %s282
      %p284 = scmp.eq.s32.totalorder %s43, 0
      %p285 = por %p283, %p284
      %s287 = sadd.s32 %s286, 1
      %p290 = scmp.eq.s32.totalorder %s37, 1
      %p291 = scmp.ne.s32.totalorder %s286, %s288
      %p292 = scmp.eq.s32.totalorder %s37, 0
      %p293 = por %p291, %p292
      %p294 = scmp.ne.s32.totalorder %s286, %s288
      %p295 = scmp.eq.s32.totalorder %s42, 1
      %p296 = por %p294, %p295
      %p297 = scmp.ne.s32.totalorder %s288, %s289
      %p298 = scmp.eq.s32.totalorder %s42, 0
      %p299 = por %p297, %p298
      %p300 = scmp.ne.s32.totalorder %s288, %s289
      %p301 = scmp.eq.s32.totalorder %s43, 1
      %p302 = por %p300, %p301
      %p304 = scmp.ne.s32.totalorder %s289, %s303
      %p305 = scmp.eq.s32.totalorder %s43, 0
      %p306 = por %p304, %p305
      %s308 = sadd.s32 %s307, 1
      %p311 = scmp.eq.s32.totalorder %s37, 1
      %p312 = scmp.ne.s32.totalorder %s307, %s309
      %p313 = scmp.eq.s32.totalorder %s37, 0
      %p314 = por %p312, %p313
      %p315 = scmp.ne.s32.totalorder %s307, %s309
      %p316 = scmp.eq.s32.totalorder %s42, 1
      %p317 = por %p315, %p316
      %p318 = scmp.ne.s32.totalorder %s309, %s310
      %p319 = scmp.eq.s32.totalorder %s42, 0
      %p320 = por %p318, %p319
      %p321 = scmp.ne.s32.totalorder %s309, %s310
      %p322 = scmp.eq.s32.totalorder %s43, 1
      %p323 = por %p321, %p322
      %p325 = scmp.ne.s32.totalorder %s310, %s324
      %p326 = scmp.eq.s32.totalorder %s43, 0
      %p327 = por %p325, %p326
      %s329 = sadd.s32 %s328, 1
      %p332 = scmp.eq.s32.totalorder %s37, 1
      %p333 = scmp.ne.s32.totalorder %s328, %s330
      %p334 = scmp.eq.s32.totalorder %s37, 0
      %p335 = por %p333, %p334
      %p336 = scmp.ne.s32.totalorder %s328, %s330
      %p337 = scmp.eq.s32.totalorder %s42, 1
      %p338 = por %p336, %p337
      %p339 = scmp.ne.s32.totalorder %s330, %s331
      %p340 = scmp.eq.s32.totalorder %s42, 0
      %p341 = por %p339, %p340
      %p342 = scmp.ne.s32.totalorder %s330, %s331
      %p343 = scmp.eq.s32.totalorder %s43, 1
      %p344 = por %p342, %p343
      %p346 = scmp.ne.s32.totalorder %s331, %s345
      %p347 = scmp.eq.s32.totalorder %s43, 0
      %p348 = por %p346, %p347
      %s350 = sadd.s32 %s349, 1
      %p353 = scmp.eq.s32.totalorder %s37, 1
      %p354 = scmp.ne.s32.totalorder %s349, %s351
      %p355 = scmp.eq.s32.totalorder %s37, 0
      %p356 = por %p354, %p355
      %p357 = scmp.ne.s32.totalorder %s349, %s351
      %p358 = scmp.eq.s32.totalorder %s42, 1
      %p359 = por %p357, %p358
      %p360 = scmp.ne.s32.totalorder %s351, %s352
      %p361 = scmp.eq.s32.totalorder %s42, 0
      %p362 = por %p360, %p361
      %p363 = scmp.ne.s32.totalorder %s351, %s352
      %p364 = scmp.eq.s32.totalorder %s43, 1
      %p365 = por %p363, %p364
      %p367 = scmp.ne.s32.totalorder %s352, %s366
      %p368 = scmp.eq.s32.totalorder %s43, 0
      %p369 = por %p367, %p368
      %s371 = sadd.s32 %s370, 1
      %p374 = scmp.eq.s32.totalorder %s37, 1
      %p375 = scmp.ne.s32.totalorder %s370, %s372
      %p376 = scmp.eq.s32.totalorder %s37, 0
      %p377 = por %p375, %p376
      %p378 = scmp.ne.s32.totalorder %s370, %s372
      %p379 = scmp.eq.s32.totalorder %s42, 1
      %p380 = por %p378, %p379
      %p381 = scmp.ne.s32.totalorder %s372, %s373
      %p382 = scmp.eq.s32.totalorder %s42, 0
      %p383 = por %p381, %p382
      %p384 = scmp.ne.s32.totalorder %s372, %s373
      %p385 = scmp.eq.s32.totalorder %s43, 1
      %p386 = por %p384, %p385
      %p388 = scmp.ne.s32.totalorder %s373, %s387
      %p389 = scmp.eq.s32.totalorder %s43, 0
      %p390 = por %p388, %p389
      %s392 = sadd.s32 %s391, 1
      %p395 = scmp.eq.s32.totalorder %s37, 1
      %p396 = scmp.ne.s32.totalorder %s391, %s393
      %p397 = scmp.eq.s32.totalorder %s37, 0
      %p398 = por %p396, %p397
      %p399 = scmp.ne.s32.totalorder %s391, %s393
      %p400 = scmp.eq.s32.totalorder %s42, 1
      %p401 = por %p399, %p400
      %p402 = scmp.ne.s32.totalorder %s393, %s394
      %p403 = scmp.eq.s32.totalorder %s42, 0
      %p404 = por %p402, %p403
      %p405 = scmp.ne.s32.totalorder %s393, %s394
      %p406 = scmp.eq.s32.totalorder %s43, 1
      %p407 = por %p405, %p406
      %p409 = scmp.ne.s32.totalorder %s394, %s408
      %p410 = scmp.eq.s32.totalorder %s43, 0
      %p411 = por %p409, %p410
      %s413 = sadd.s32 %s412, 1
      %p416 = scmp.eq.s32.totalorder %s37, 1
      %p417 = scmp.ne.s32.totalorder %s412, %s414
      %p418 = scmp.eq.s32.totalorder %s37, 0
      %p419 = por %p417, %p418
      %p420 = scmp.ne.s32.totalorder %s412, %s414
      %p421 = scmp.eq.s32.totalorder %s42, 1
      %p422 = por %p420, %p421
      %p423 = scmp.ne.s32.totalorder %s414, %s415
      %p424 = scmp.eq.s32.totalorder %s42, 0
      %p425 = por %p423, %p424
      %p426 = scmp.ne.s32.totalorder %s414, %s415
      %p427 = scmp.eq.s32.totalorder %s43, 1
      %p428 = por %p426, %p427
      %p430 = scmp.ne.s32.totalorder %s415, %s429
      %p431 = scmp.eq.s32.totalorder %s43, 0
      %p432 = por %p430, %p431
      %s434 = sadd.s32 %s433, 1
      %p437 = scmp.eq.s32.totalorder %s37, 1
      %p438 = scmp.ne.s32.totalorder %s433, %s435
      %p439 = scmp.eq.s32.totalorder %s37, 0
      %p440 = por %p438, %p439
      %p441 = scmp.ne.s32.totalorder %s433, %s435
      %p442 = scmp.eq.s32.totalorder %s42, 1
      %p443 = por %p441, %p442
      %p444 = scmp.ne.s32.totalorder %s435, %s436
      %p445 = scmp.eq.s32.totalorder %s42, 0
      %p446 = por %p444, %p445
      %p447 = scmp.ne.s32.totalorder %s435, %s436
      %p448 = scmp.eq.s32.totalorder %s43, 1
      %p449 = por %p447, %p448
      %p451 = scmp.ne.s32.totalorder %s436, %s450
      %p452 = scmp.eq.s32.totalorder %s43, 0
      %p453 = por %p451, %p452
      %s455 = sadd.s32 %s454, 1
      %p458 = scmp.eq.s32.totalorder %s37, 1
      %p459 = scmp.ne.s32.totalorder %s454, %s456
      %p460 = scmp.eq.s32.totalorder %s37, 0
      %p461 = por %p459, %p460
      %p462 = scmp.ne.s32.totalorder %s454, %s456
      %p463 = scmp.eq.s32.totalorder %s42, 1
      %p464 = por %p462, %p463
      %p465 = scmp.ne.s32.totalorder %s456, %s457
      %p466 = scmp.eq.s32.totalorder %s42, 0
      %p467 = por %p465, %p466
      %p468 = scmp.ne.s32.totalorder %s456, %s457
      %p469 = scmp.eq.s32.totalorder %s43, 1
      %p470 = por %p468, %p469
      %p472 = scmp.ne.s32.totalorder %s457, %s471
      %p473 = scmp.eq.s32.totalorder %s43, 0
      %p474 = por %p472, %p473
      %s476 = sadd.s32 %s475, 1
      %p479 = scmp.eq.s32.totalorder %s37, 1
      %p480 = scmp.ne.s32.totalorder %s475, %s477
      %p481 = scmp.eq.s32.totalorder %s37, 0
      %p482 = por %p480, %p481
      %p483 = scmp.ne.s32.totalorder %s475, %s477
      %p484 = scmp.eq.s32.totalorder %s42, 1
      %p485 = por %p483, %p484
      %p486 = scmp.ne.s32.totalorder %s477, %s478
      %p487 = scmp.eq.s32.totalorder %s42, 0
      %p488 = por %p486, %p487
      %p489 = scmp.ne.s32.totalorder %s477, %s478
      %p490 = scmp.eq.s32.totalorder %s43, 1
      %p491 = por %p489, %p490
      %p493 = scmp.ne.s32.totalorder %s478, %s492
      %p494 = scmp.eq.s32.totalorder %s43, 0
      %p495 = por %p493, %p494
      %s496 = ssub.s32 %s37, %s44
      %p497 = scmp.eq.s32.totalorder %s496, 0
      %s499 = sadd.s32 %s498, 1
      %s500 = scalar_select %p497, %s498, %s499
      %p503 = pneg %p497
      %p504 = scmp.eq.s32.totalorder %s37, 1
      %p505 = por %p503, %p504
      %p506 = scmp.ne.s32.totalorder %s498, %s501
      %p507 = scmp.eq.s32.totalorder %s37, 0
      %p508 = por %p506, %p507
      %p509 = scmp.ne.s32.totalorder %s498, %s501
      %p510 = scmp.eq.s32.totalorder %s42, 1
      %p511 = por %p509, %p510
      %p512 = scmp.ne.s32.totalorder %s501, %s502
      %p513 = scmp.eq.s32.totalorder %s42, 0
      %p514 = por %p512, %p513
      %p515 = scmp.ne.s32.totalorder %s501, %s502
      %p516 = scmp.eq.s32.totalorder %s43, 1
      %p517 = por %p515, %p516
      %p519 = scmp.ne.s32.totalorder %s502, %s518
      %p520 = scmp.eq.s32.totalorder %s43, 0
      %p521 = por %p519, %p520
      %p522 = scmp.le.s32.totalorder 1, %s37
      %p523 = scmp.lt.s32.totalorder %s37, 3
      %p524 = pnand %p522, %p523
      %p525 = pneg %p524
      // Predicated region
      $region9: #{tpu_custom_call.1} parent=5 // pred_check
        _
      $region10: #{tpu_custom_call.1} parent=5 // pred_check_branch
        %527 = sbr.rel (%p524) target = $region12
      $region11: #{tpu_custom_call.1} parent=5 // pred_region
        %s528 = ssub.s32 %s37, 1
        // Predicated region
        $region13: #{tpu_custom_call.1} parent=11 // pred_check
          %p529 = pneg %p110
        $region14: #{tpu_custom_call.1} parent=11 // pred_check_branch
          %531 = sbr.rel (%p529) target = $region16
        $region15: #{tpu_custom_call.1} parent=11 // pred_region
          _
        $region16: #{tpu_custom_call.1} parent=11 // pred_fallthru
          _
        // Predicated region
        $region17: #{tpu_custom_call.1} parent=11 // pred_check
          %p532 = pneg %p131
        $region18: #{tpu_custom_call.1} parent=11 // pred_check_branch
          %534 = sbr.rel (%p532) target = $region20
        $region19: #{tpu_custom_call.1} parent=11 // pred_region
          %s536 = ssub.s32 16, 16
          %537 = vsyncadd [#allocation6], %s536
          %s539 = sshll.u32 [#allocation5], 4
          %s540 = int_to_ptr.vmem [resolvable:$true] %s539
          %542 = dma.hbm_to_vmem [thread:$0]  %s3, 16, %s540, [#allocation6]
        $region20: #{tpu_custom_call.1} parent=11 // pred_fallthru
          _
        // Predicated region
        $region21: #{tpu_custom_call.1} parent=11 // pred_check
          %p543 = pneg %p152
        $region22: #{tpu_custom_call.1} parent=11 // pred_check_branch
          %545 = sbr.rel (%p543) target = $region24
        $region23: #{tpu_custom_call.1} parent=11 // pred_region
          %s547 = ssub.s32 16, 16
          %548 = vsyncadd [#allocation6], %s547
          %s550 = sshll.u32 [#allocation7], 4
          %s551 = int_to_ptr.vmem [resolvable:$true] %s550
          %553 = dma.hbm_to_vmem [thread:$0]  %s4, 16, %s551, [#allocation6]
        $region24: #{tpu_custom_call.1} parent=11 // pred_fallthru
          _
        // Predicated region
        $region25: #{tpu_custom_call.1} parent=11 // pred_check
          %p554 = pneg %p173
        $region26: #{tpu_custom_call.1} parent=11 // pred_check_branch
          %556 = sbr.rel (%p554) target = $region28
        $region27: #{tpu_custom_call.1} parent=11 // pred_region
          %s558 = ssub.s32 16, 16
          %559 = vsyncadd [#allocation9], %s558
          %s561 = sshll.u32 [#allocation8], 4
          %s562 = int_to_ptr.vmem [resolvable:$true] %s561
          %564 = dma.hbm_to_vmem [thread:$0]  %s5, 16, %s562, [#allocation9]
        $region28: #{tpu_custom_call.1} parent=11 // pred_fallthru
          _
        // Predicated region
        $region29: #{tpu_custom_call.1} parent=11 // pred_check
          %p565 = pneg %p194
        $region30: #{tpu_custom_call.1} parent=11 // pred_check_branch
          %567 = sbr.rel (%p565) target = $region32
        $region31: #{tpu_custom_call.1} parent=11 // pred_region
          _
        $region32: #{tpu_custom_call.1} parent=11 // pred_fallthru
          _
        // Predicated region
        $region33: #{tpu_custom_call.1} parent=11 // pred_check
          %p568 = pneg %p215
        $region34: #{tpu_custom_call.1} parent=11 // pred_check_branch
          %570 = sbr.rel (%p568) target = $region36
        $region35: #{tpu_custom_call.1} parent=11 // pred_region
          _
        $region36: #{tpu_custom_call.1} parent=11 // pred_fallthru
          _
        // Predicated region
        $region37: #{tpu_custom_call.1} parent=11 // pred_check
          %p571 = pneg %p236
        $region38: #{tpu_custom_call.1} parent=11 // pred_check_branch
          %573 = sbr.rel (%p571) target = $region40
        $region39: #{tpu_custom_call.1} parent=11 // pred_region
          %s575 = ssub.s32 16, 16
          %576 = vsyncadd [#allocation9], %s575
          %s578 = sshll.u32 [#allocation10], 4
          %s579 = int_to_ptr.vmem [resolvable:$true] %s578
          %581 = dma.hbm_to_vmem [thread:$0]  %s8, 16, %s579, [#allocation9]
        $region40: #{tpu_custom_call.1} parent=11 // pred_fallthru
          _
        // Predicated region
        $region41: #{tpu_custom_call.1} parent=11 // pred_check
          %p582 = pneg %p257
        $region42: #{tpu_custom_call.1} parent=11 // pred_check_branch
          %584 = sbr.rel (%p582) target = $region44
        $region43: #{tpu_custom_call.1} parent=11 // pred_region
          %s586 = ssub.s32 16, 16
          %587 = vsyncadd [#allocation12], %s586
          %s589 = sshll.u32 [#allocation11], 4
          %s590 = int_to_ptr.vmem [resolvable:$true] %s589
          %592 = dma.hbm_to_vmem [thread:$0]  %s9, 16, %s590, [#allocation12]
        $region44: #{tpu_custom_call.1} parent=11 // pred_fallthru
          _
        // Predicated region
        $region45: #{tpu_custom_call.1} parent=11 // pred_check
          %p593 = pneg %p278
        $region46: #{tpu_custom_call.1} parent=11 // pred_check_branch
          %595 = sbr.rel (%p593) target = $region48
        $region47: #{tpu_custom_call.1} parent=11 // pred_region
          _
        $region48: #{tpu_custom_call.1} parent=11 // pred_fallthru
          _
        // Predicated region
        $region49: #{tpu_custom_call.1} parent=11 // pred_check
          %p596 = pneg %p299
        $region50: #{tpu_custom_call.1} parent=11 // pred_check_branch
          %598 = sbr.rel (%p596) target = $region52
        $region51: #{tpu_custom_call.1} parent=11 // pred_region
          _
        $region52: #{tpu_custom_call.1} parent=11 // pred_fallthru
          _
        // Predicated region
        $region53: #{tpu_custom_call.1} parent=11 // pred_check
          %p599 = pneg %p320
        $region54: #{tpu_custom_call.1} parent=11 // pred_check_branch
          %601 = sbr.rel (%p599) target = $region56
        $region55: #{tpu_custom_call.1} parent=11 // pred_region
          %s603 = ssub.s32 16, 16
          %604 = vsyncadd [#allocation12], %s603
          %s606 = sshll.u32 [#allocation13], 4
          %s607 = int_to_ptr.vmem [resolvable:$true] %s606
          %609 = dma.hbm_to_vmem [thread:$0]  %s12, 16, %s607, [#allocation12]
        $region56: #{tpu_custom_call.1} parent=11 // pred_fallthru
          _
        // Predicated region
        $region57: #{tpu_custom_call.1} parent=11 // pred_check
          %p610 = pneg %p341
        $region58: #{tpu_custom_call.1} parent=11 // pred_check_branch
          %612 = sbr.rel (%p610) target = $region60
        $region59: #{tpu_custom_call.1} parent=11 // pred_region
          %s614 = ssub.s32 16, 16
          %615 = vsyncadd [#allocation15], %s614
          %s617 = sshll.u32 [#allocation14], 4
          %s618 = int_to_ptr.vmem [resolvable:$true] %s617
          %620 = dma.hbm_to_vmem [thread:$0]  %s13, 16, %s618, [#allocation15]
        $region60: #{tpu_custom_call.1} parent=11 // pred_fallthru
          _
        // Predicated region
        $region61: #{tpu_custom_call.1} parent=11 // pred_check
          %p621 = pneg %p362
        $region62: #{tpu_custom_call.1} parent=11 // pred_check_branch
          %623 = sbr.rel (%p621) target = $region64
        $region63: #{tpu_custom_call.1} parent=11 // pred_region
          _
        $region64: #{tpu_custom_call.1} parent=11 // pred_fallthru
          _
        // Predicated region
        $region65: #{tpu_custom_call.1} parent=11 // pred_check
          %p624 = pneg %p383
        $region66: #{tpu_custom_call.1} parent=11 // pred_check_branch
          %626 = sbr.rel (%p624) target = $region68
        $region67: #{tpu_custom_call.1} parent=11 // pred_region
          _
        $region68: #{tpu_custom_call.1} parent=11 // pred_fallthru
          _
        // Predicated region
        $region69: #{tpu_custom_call.1} parent=11 // pred_check
          %p627 = pneg %p404
        $region70: #{tpu_custom_call.1} parent=11 // pred_check_branch
          %629 = sbr.rel (%p627) target = $region72
        $region71: #{tpu_custom_call.1} parent=11 // pred_region
          _
        $region72: #{tpu_custom_call.1} parent=11 // pred_fallthru
          _
        // Predicated region
        $region73: #{tpu_custom_call.1} parent=11 // pred_check
          %p630 = pneg %p425
        $region74: #{tpu_custom_call.1} parent=11 // pred_check_branch
          %632 = sbr.rel (%p630) target = $region76
        $region75: #{tpu_custom_call.1} parent=11 // pred_region
          _
        $region76: #{tpu_custom_call.1} parent=11 // pred_fallthru
          _
        // Predicated region
        $region77: #{tpu_custom_call.1} parent=11 // pred_check
          %p633 = pneg %p446
        $region78: #{tpu_custom_call.1} parent=11 // pred_check_branch
          %635 = sbr.rel (%p633) target = $region80
        $region79: #{tpu_custom_call.1} parent=11 // pred_region
          _
        $region80: #{tpu_custom_call.1} parent=11 // pred_fallthru
          _
        // Predicated region
        $region81: #{tpu_custom_call.1} parent=11 // pred_check
          %p636 = pneg %p467
        $region82: #{tpu_custom_call.1} parent=11 // pred_check_branch
          %638 = sbr.rel (%p636) target = $region84
        $region83: #{tpu_custom_call.1} parent=11 // pred_region
          _
        $region84: #{tpu_custom_call.1} parent=11 // pred_fallthru
          _
        // Predicated region
        $region85: #{tpu_custom_call.1} parent=11 // pred_check
          %p639 = pneg %p488
        $region86: #{tpu_custom_call.1} parent=11 // pred_check_branch
          %641 = sbr.rel (%p639) target = $region88
        $region87: #{tpu_custom_call.1} parent=11 // pred_region
          _
        $region88: #{tpu_custom_call.1} parent=11 // pred_fallthru
          _
      $region12: #{tpu_custom_call.1} parent=5 // pred_fallthru
        _
      %p642 = scmp.lt.s32.totalorder %s37, 2
      // Predicated region
      $region89: #{tpu_custom_call.1} parent=5 // pred_check
        %p643 = pneg %p642
      $region90: #{tpu_custom_call.1} parent=5 // pred_check_branch
        %645 = sbr.rel (%p643) target = $region92
      $region91: #{tpu_custom_call.1} parent=5 // pred_region
        // Predicated region
        $region93: #{tpu_custom_call.1} parent=91 // pred_check
          %p646 = pneg %p57
        $region94: #{tpu_custom_call.1} parent=91 // pred_check_branch
          %648 = sbr.rel (%p646) target = $region96
        $region95: #{tpu_custom_call.1} parent=91 // pred_region
          %p649 = scmp.lt.s32.totalorder %s37, 1
          %s650 = scalar_select %p649, %s37, 1
          %s651 = smul.addr %s650, 2
          %s652 = smul.addr %s651, 8
          %s653 = scalar_lea.vmem %s0, %s652
        $region96: #{tpu_custom_call.1} parent=91 // pred_fallthru
          _
        // Predicated region
        $region97: #{tpu_custom_call.1} parent=91 // pred_check
          %p654 = pneg %p83
        $region98: #{tpu_custom_call.1} parent=91 // pred_check_branch
          %656 = sbr.rel (%p654) target = $region100
        $region99: #{tpu_custom_call.1} parent=91 // pred_region
          %s657 = sand.u32 %s73, 1
          %s658 = scalar_lea.sflag [#allocation3], %s657
          %s659 = sand.u32 %s73, 1
          %s660 = smul.addr %s659, 4
          %s661 = scalar_lea.vmem [#allocation2], %s660
          %s663 = ssub.s32 64, 64
          %664 = vsyncadd %s658, %s663
          %s665 = smul.addr %s37, 64
          %s666 = scalar_lea.hbm %s1, %s665
          %s668 = sshll.u32 %s661, 4
          %s669 = int_to_ptr.vmem [resolvable:$true] %s668
          %671 = dma.hbm_to_vmem [thread:$0]  %s666, 64, %s669, %s658
        $region100: #{tpu_custom_call.1} parent=91 // pred_fallthru
          _
      $region92: #{tpu_custom_call.1} parent=5 // pred_fallthru
        _
      %p672 = scmp.le.s32.totalorder 1, %s37
      %p673 = scmp.lt.s32.totalorder %s37, 3
      %p674 = pnand %p672, %p673
      %p675 = pneg %p674
      // Predicated region
      $region101: #{tpu_custom_call.1} parent=5 // pred_check
        _
      $region102: #{tpu_custom_call.1} parent=5 // pred_check_branch
        %677 = sbr.rel (%p674) target = $region104
      $region103: #{tpu_custom_call.1} parent=5 // pred_region
        %s678 = ssub.s32 %s37, 1
        %s679 = sand.u32 %s76, 1
        %s680 = scalar_lea.sflag [#allocation3], %s679
        %s681 = sand.u32 %s76, 1
        %s682 = smul.addr %s681, 4
        %s683 = scalar_lea.vmem [#allocation2], %s682
        // Predicated region
        $region105: #{tpu_custom_call.1} parent=103 // pred_check
          %p684 = pneg %p89
        $region106: #{tpu_custom_call.1} parent=103 // pred_check_branch
          %686 = sbr.rel (%p684) target = $region108
        $region107: #{tpu_custom_call.1} parent=103 // pred_region
          %687 = dma.done %s680, 64
        $region108: #{tpu_custom_call.1} parent=103 // pred_fallthru
          _
        // Predicated region
        $region109: #{tpu_custom_call.1} parent=103 // pred_check
          %p688 = pneg %p131
        $region110: #{tpu_custom_call.1} parent=103 // pred_check_branch
          %690 = sbr.rel (%p688) target = $region112
        $region111: #{tpu_custom_call.1} parent=103 // pred_region
          %691 = dma.done [#allocation6], 16
        $region112: #{tpu_custom_call.1} parent=103 // pred_fallthru
          _
        // Predicated region
        $region113: #{tpu_custom_call.1} parent=103 // pred_check
          %p692 = pneg %p152
        $region114: #{tpu_custom_call.1} parent=103 // pred_check_branch
          %694 = sbr.rel (%p692) target = $region116
        $region115: #{tpu_custom_call.1} parent=103 // pred_region
          %695 = dma.done [#allocation6], 16
        $region116: #{tpu_custom_call.1} parent=103 // pred_fallthru
          _
        // Predicated region
        $region117: #{tpu_custom_call.1} parent=103 // pred_check
          %p696 = pneg %p173
        $region118: #{tpu_custom_call.1} parent=103 // pred_check_branch
          %698 = sbr.rel (%p696) target = $region120
        $region119: #{tpu_custom_call.1} parent=103 // pred_region
          %699 = dma.done [#allocation9], 16
        $region120: #{tpu_custom_call.1} parent=103 // pred_fallthru
          _
        // Predicated region
        $region121: #{tpu_custom_call.1} parent=103 // pred_check
          %p700 = pneg %p236
        $region122: #{tpu_custom_call.1} parent=103 // pred_check_branch
          %702 = sbr.rel (%p700) target = $region124
        $region123: #{tpu_custom_call.1} parent=103 // pred_region
          %703 = dma.done [#allocation9], 16
        $region124: #{tpu_custom_call.1} parent=103 // pred_fallthru
          _
        // Predicated region
        $region125: #{tpu_custom_call.1} parent=103 // pred_check
          %p704 = pneg %p257
        $region126: #{tpu_custom_call.1} parent=103 // pred_check_branch
          %706 = sbr.rel (%p704) target = $region128
        $region127: #{tpu_custom_call.1} parent=103 // pred_region
          %707 = dma.done [#allocation12], 16
        $region128: #{tpu_custom_call.1} parent=103 // pred_fallthru
          _
        // Predicated region
        $region129: #{tpu_custom_call.1} parent=103 // pred_check
          %p708 = pneg %p320
        $region130: #{tpu_custom_call.1} parent=103 // pred_check_branch
          %710 = sbr.rel (%p708) target = $region132
        $region131: #{tpu_custom_call.1} parent=103 // pred_region
          %711 = dma.done [#allocation12], 16
        $region132: #{tpu_custom_call.1} parent=103 // pred_fallthru
          _
        // Predicated region
        $region133: #{tpu_custom_call.1} parent=103 // pred_check
          %p712 = pneg %p341
        $region134: #{tpu_custom_call.1} parent=103 // pred_check_branch
          %714 = sbr.rel (%p712) target = $region136
        $region135: #{tpu_custom_call.1} parent=103 // pred_region
          %715 = dma.done [#allocation15], 16
        $region136: #{tpu_custom_call.1} parent=103 // pred_fallthru
          _
        %p716 = scmp.lt.s32.totalorder %s42, 1
        %s717 = scalar_select %p716, %s42, 1
        %s718 = smul.addr %s717, 2
        %s719 = smul.addr %s718, 8
        %s720 = scalar_lea.vmem %s0, %s719
        %p721 = pneg %p63
        %p722 = pneg %p60
        %s723 = sand.u32 %s76, 1
        %s724 = scalar_lea.sflag [#allocation3], %s723
        %s725 = sand.u32 %s76, 1
        %s726 = smul.addr %s725, 4
        %s727 = scalar_lea.vmem [#allocation2], %s726
        %p728 = pneg %p89
        %p729 = pneg %p86
        %p730 = pneg %p110
        %p731 = pneg %p107
        %p732 = pneg %p131
        %p733 = pneg %p128
        %p734 = pneg %p152
        %p735 = pneg %p149
        %p736 = pneg %p173
        %p737 = pneg %p170
        %p738 = pneg %p194
        %p739 = pneg %p191
        %p740 = pneg %p215
        %p741 = pneg %p212
        %p742 = pneg %p236
        %p743 = pneg %p233
        %p744 = pneg %p257
        %p745 = pneg %p254
        %p746 = pneg %p278
        %p747 = pneg %p275
        %p748 = pneg %p299
        %p749 = pneg %p296
        %p750 = pneg %p320
        %p751 = pneg %p317
        %p752 = pneg %p341
        %p753 = pneg %p338
        %p754 = pneg %p362
        %p755 = pneg %p359
        %p756 = pneg %p383
        %p757 = pneg %p380
        %p758 = pneg %p404
        %p759 = pneg %p401
        %p760 = pneg %p425
        %p761 = pneg %p422
        %p762 = pneg %p446
        %p763 = pneg %p443
        %p764 = pneg %p467
        %p765 = pneg %p464
        %p766 = pneg %p488
        %p767 = pneg %p485
        %p768 = pneg %p514
        %p769 = pneg %p511
        %s770 = sand.u32 %s501, 1
        %s771 = scalar_lea.sflag [#allocation4], %s770
        %s772 = sand.u32 %s501, 1
        %s773 = smul.addr %s772, 4
        %s774 = scalar_lea.vmem [#allocation16], %s773
        %p775 = scmp.lt.s32.totalorder %s42, 1
        %s776 = scalar_select %p775, %s42, 1
        %s777 = smul.addr %s776, 2
        %s778 = smul.addr %s777, 8
        %s779 = scalar_lea.vmem %s0, %s778
        %v781 = vld [vmem:[%s779] sm:$0xff]
        %v782 = vld [vmem:[%s779 + $0x8] sm:$0xff]
        %v783 = vld [vmem:[#allocation7] sm:$0x1]
        %v784 = vld [vmem:[#allocation8] sm:$0x1]
        %vm785 = vcmask 261120
        %v786 = vsel %vm785, %v781, 0.0
        %787 = vadd.xlane.f32.xlu0 %v786
        %v788 = vpop.xlane.xlu0 %787
        %v789 = vsel %vm785, %v782, 0.0
        %790 = vadd.xlane.f32.xlu0 %v789
        %v791 = vpop.xlane.xlu0 %790
        %v792 = vrcp.pop 32.0
        %v793 = vmul.f32 %v788, %v792
        %v794 = vmul.f32 %v791, %v792
        %v795 = vsub.f32 %v781, %v793
        %v796 = vsub.f32 %v782, %v794
        %v797 = vmul.f32 %v795, %v795
        %v798 = vmul.f32 %v796, %v796
        %v799 = vsel %vm785, %v797, 0.0
        %800 = vadd.xlane.f32.xlu0 %v799
        %v801 = vpop.xlane.xlu0 %800
        %v802 = vsel %vm785, %v798, 0.0
        %803 = vadd.xlane.f32.xlu0 %v802
        %v804 = vpop.xlane.xlu0 %803
        %v805 = vmul.f32 %v801, %v792
        %v806 = vmul.f32 %v804, %v792
        %v807 = vadd.f32 %v805, 1e-05
        %v808 = vadd.f32 %v806, 1e-05
        %v809 = vrsqrt.pop %v807
        %v810 = vrsqrt.pop %v808
        %v811 = vmul.f32 %v795, %v809
        %v812 = vmul.f32 %v796, %v810
        %v814 = vlaneseq
        %v815 = vshrl.u32 %v814, 7
        %v816 = vsub.s32 0, %v815
        %v817 = vrot.slane %v783, %v816
        %v819 = vmul.f32 %v811, %v817
        %v820 = vmul.f32 %v812, %v817
        %v822 = vlaneseq
        %v823 = vshrl.u32 %v822, 7
        %v824 = vsub.s32 0, %v823
        %v825 = vrot.slane %v784, %v824
        %v827 = vadd.f32 %v819, %v825
        %v828 = vadd.f32 %v820, %v825
        %v829 = vpack.c.bf16 %v828, %v827
        %v830 = vld [vmem:[%s7] sm:$0xf]
        %v831 = vld [vmem:[%s7 + $0x4] sm:$0xf]
        %v832 = vld [vmem:[%s7 + $0x8] sm:$0xf]
        %v833 = vld [vmem:[%s7 + $0xc] sm:$0xf]
        %v838 = vunpack.c.l.b16 %v830
        %v839 = vunpack.c.l.b16 %v831
        %v840 = vunpack.c.l.b16 %v832
        %v841 = vunpack.c.l.b16 %v833
        %v842 = vpack.c.b16 %v839, %v838
        %v843 = vpack.c.b16 %v841, %v840
        %v847 = vsel %vm785, %v829, 0
        %849 = vmatprep.subr.bf16.mxu0 0
        %850 = vmatpush1.bf16.msra.mxu0 %v842
        %851 = vmatprep.subr.bf16.mxu0 0
        %852 = vmatpush1.bf16.msra.mxu0 %v843
        %853 = vmatprep.subr.bf16.mxu0 0
        %854 = vmatpush1.bf16.msra.mxu0 0
        %855 = vmatprep.subr.bf16.mxu0 0
        %856 = vmatpush1.bf16.msra.mxu0 0
        %857 = vmatprep.subr.bf16.mxu0 0
        %858 = vmatpush1.bf16.msra.mxu0 0
        %859 = vmatprep.subr.bf16.mxu0 0
        %860 = vmatpush1.bf16.msra.mxu0 0
        %861 = vmatprep.subr.bf16.mxu0 0
        %862 = vmatpush1.bf16.msra.mxu0 0
        %863 = vmatprep.subr.bf16.mxu0 0
        %864 = vmatpush1.bf16.msra.mxu0 0
        %865 = vmatprep.subr.bf16.mxu0 0
        %866 = vmatpush1.bf16.msra.mxu0 0
        %867 = vmatprep.subr.bf16.mxu0 0
        %868 = vmatpush1.bf16.msra.mxu0 0
        %869 = vmatprep.subr.bf16.mxu0 0
        %870 = vmatpush1.bf16.msra.mxu0 0
        %871 = vmatprep.subr.bf16.mxu0 0
        %872 = vmatpush1.bf16.msra.mxu0 0
        %873 = vmatprep.subr.bf16.mxu0 0
        %874 = vmatpush1.bf16.msra.mxu0 0
        %875 = vmatprep.subr.bf16.mxu0 0
        %876 = vmatpush1.bf16.msra.mxu0 0
        %877 = vmatprep.subr.bf16.mxu0 0
        %878 = vmatpush1.bf16.msra.mxu0 0
        %879 = vmatprep.subr.bf16.mxu0 0
        %880 = vmatpush1.bf16.msra.mxu0 0
        %881 = vmatprep.mubr.bf16.mxu0 0
        %882 = vmatmul.mubr.bf16.gmra.mrb[0].mxu0 %v847
        %v883 = vpop.f32.mrb[0].mxu0
        %v884 = vadd.f32 0.0, %v883
        %v885 = vpop.f32.mrb[0].mxu0
        %v886 = vpop.f32.mrb[0].mxu0
        %v887 = vadd.f32 0.0, %v886
        %v888 = vpop.f32.mrb[0].mxu0
        %889 = vdwg.mxu0
        %v890 = vpack.c.bf16 %v887, %v884
        %v891 = vld [vmem:[%s2] sm:$0x1]
        %v892 = vld [vmem:[#allocation5] sm:$0x1]
        %v893 = vmul.f32 %v892, 1.442695
        %v894 = vpow.pop %v893
        %v895 = vld [vmem:[%s683] sm:$0xf]
        %v897 = vlaneseq
        %v898 = vshrl.u32 %v897, 7
        %v899 = vsub.s32 0, %v898
        %v900 = vrot.slane %v894, %v899
        %v902 = vmul.f32 %v900, %v895
        %v904 = vlaneseq
        %v905 = vshrl.u32 %v904, 7
        %v906 = vsub.s32 0, %v905
        %v907 = vrot.slane %v891, %v906
        %v909 = vadd.f32 %v907, %v902
        %v910 = vld [vmem:[%s6] sm:$0xf]
        %v911 = vld [vmem:[%s6 + $0x4] sm:$0xf]
        %v912 = vld [vmem:[%s6 + $0x8] sm:$0xf]
        %v913 = vld [vmem:[%s6 + $0xc] sm:$0xf]
        %v914 = vld [vmem:[%s10] sm:$0xf]
        %v915 = vld [vmem:[%s10 + $0x4] sm:$0xf]
        %v916 = vld [vmem:[%s10 + $0x8] sm:$0xf]
        %v917 = vld [vmem:[%s10 + $0xc] sm:$0xf]
        %v918 = vld [vmem:[%s11] sm:$0xf]
        %v919 = vld [vmem:[%s11 + $0x4] sm:$0xf]
        %v920 = vld [vmem:[%s11 + $0x8] sm:$0xf]
        %v921 = vld [vmem:[%s11 + $0xc] sm:$0xf]
        %v922 = vld [vmem:[#allocation13] sm:$0x1]
        %v923 = vld [vmem:[#allocation14] sm:$0x1]
        %v924 = vld [vmem:[%s14] sm:$0x1]
        %v925 = vld [vmem:[#allocation10] sm:$0x1]
        %v926 = vld [vmem:[#allocation11] sm:$0x1]
        %v927 = vld [vmem:[%s15] sm:$0x1]
        %v928 = vld [vmem:[%s16] sm:$0x1]
        %v929 = vld [vmem:[%s17] sm:$0xf]
        %v930 = vld [vmem:[%s17 + $0x4] sm:$0xf]
        %v931 = vld [vmem:[%s17 + $0x8] sm:$0xf]
        %v932 = vld [vmem:[%s17 + $0xc] sm:$0xf]
        %v933 = vld [vmem:[%s18] sm:$0x1]
        %v934 = vld [vmem:[%s19] sm:$0xf]
        %v935 = vld [vmem:[%s19 + $0x4] sm:$0xf]
        %v936 = vld [vmem:[%s19 + $0x8] sm:$0xf]
        %v937 = vld [vmem:[%s19 + $0xc] sm:$0xf]
        %v938 = vld [vmem:[%s19 + $0x10] sm:$0xf]
        %v939 = vld [vmem:[%s19 + $0x14] sm:$0xf]
        %v940 = vld [vmem:[%s19 + $0x18] sm:$0xf]
        %v941 = vld [vmem:[%s19 + $0x1c] sm:$0xf]
        %v942 = vld [vmem:[%s19 + $0x20] sm:$0xf]
        %v943 = vld [vmem:[%s19 + $0x24] sm:$0xf]
        %v944 = vld [vmem:[%s19 + $0x28] sm:$0xf]
        %v945 = vld [vmem:[%s19 + $0x2c] sm:$0xf]
        %v946 = vld [vmem:[%s19 + $0x30] sm:$0xf]
        %v947 = vld [vmem:[%s19 + $0x34] sm:$0xf]
        %v948 = vld [vmem:[%s19 + $0x38] sm:$0xf]
        %v949 = vld [vmem:[%s19 + $0x3c] sm:$0xf]
        %v950 = vld [vmem:[%s20] sm:$0x1]
        %vm951 = vcmask 257024
        %v952 = vsel %vm951, %v909, 0.0
        %953 = vadd.xlane.f32.xlu0 %v952
        %v954 = vpop.xlane.xlu0 %953
        %v955 = vmul.f32 %v954, %v792
        %v956 = vsub.f32 %v909, %v955
        %v957 = vmul.f32 %v956, %v956
        %v958 = vsel %vm951, %v957, 0.0
        %959 = vadd.xlane.f32.xlu0 %v958
        %v960 = vpop.xlane.xlu0 %959
        %v961 = vmul.f32 %v960, %v792
        %v962 = vadd.f32 %v961, 1e-05
        %v963 = vrsqrt.pop %v962
        %v964 = vmul.f32 %v956, %v963
        %v966 = vlaneseq
        %v967 = vshrl.u32 %v966, 7
        %v968 = vsub.s32 0, %v967
        %v969 = vrot.slane %v925, %v968
        %v971 = vmul.f32 %v964, %v969
        %v973 = vlaneseq
        %v974 = vshrl.u32 %v973, 7
        %v975 = vsub.s32 0, %v974
        %v976 = vrot.slane %v926, %v975
        %v978 = vadd.f32 %v971, %v976
        %v979 = vpack.c.bf16 %v978, %v978
        %v984 = vunpack.c.l.b16 %v910
        %v985 = vunpack.c.l.b16 %v911
        %v986 = vunpack.c.l.b16 %v912
        %v987 = vunpack.c.l.b16 %v913
        %v988 = vpack.c.b16 %v985, %v984
        %v989 = vpack.c.b16 %v987, %v986
        %v993 = vsel %vm785, %v979, 0
        %995 = vmatprep.subr.bf16.mxu0 0
        %996 = vmatpush1.bf16.msra.mxu0 %v988
        %997 = vmatprep.subr.bf16.mxu0 0
        %998 = vmatpush1.bf16.msra.mxu0 %v989
        %999 = vmatprep.subr.bf16.mxu0 0
        %1000 = vmatpush1.bf16.msra.mxu0 0
        %1001 = vmatprep.subr.bf16.mxu0 0
        %1002 = vmatpush1.bf16.msra.mxu0 0
        %1003 = vmatprep.subr.bf16.mxu0 0
        %1004 = vmatpush1.bf16.msra.mxu0 0
        %1005 = vmatprep.subr.bf16.mxu0 0
        %1006 = vmatpush1.bf16.msra.mxu0 0
        %1007 = vmatprep.subr.bf16.mxu0 0
        %1008 = vmatpush1.bf16.msra.mxu0 0
        %1009 = vmatprep.subr.bf16.mxu0 0
        %1010 = vmatpush1.bf16.msra.mxu0 0
        %1011 = vmatprep.subr.bf16.mxu0 0
        %1012 = vmatpush1.bf16.msra.mxu0 0
        %1013 = vmatprep.subr.bf16.mxu0 0
        %1014 = vmatpush1.bf16.msra.mxu0 0
        %1015 = vmatprep.subr.bf16.mxu0 0
        %1016 = vmatpush1.bf16.msra.mxu0 0
        %1017 = vmatprep.subr.bf16.mxu0 0
        %1018 = vmatpush1.bf16.msra.mxu0 0
        %1019 = vmatprep.subr.bf16.mxu0 0
        %1020 = vmatpush1.bf16.msra.mxu0 0
        %1021 = vmatprep.subr.bf16.mxu0 0
        %1022 = vmatpush1.bf16.msra.mxu0 0
        %1023 = vmatprep.subr.bf16.mxu0 0
        %1024 = vmatpush1.bf16.msra.mxu0 0
        %1025 = vmatprep.subr.bf16.mxu0 0
        %1026 = vmatpush1.bf16.msra.mxu0 0
        %1027 = vmatprep.mubr.bf16.mxu0 0
        %1028 = vmatmul.mubr.bf16.gmra.mrb[0].mxu0 %v993
        %v1029 = vpop.f32.mrb[0].mxu0
        %v1030 = vadd.f32 0.0, %v1029
        %v1031 = vpop.f32.mrb[0].mxu0
        %v1032 = vpop.f32.mrb[0].mxu0
        %v1033 = vpop.f32.mrb[0].mxu0
        %1034 = vdwg.mxu0
        %v1035 = vpack.c.bf16 %v1030, %v1030
        %v1037 = vsel %vm785, %v1035, 0
        %v1040 = vsel %vm785, %v890, 0
        %1042 = vmatprep.subr.bf16.mxu0 0
        %1043 = vmatpush1.bf16.xpose.msra.mxu0 %v1040
        %1044 = vmatprep.subr.bf16.mxu0 0
        %1045 = vmatpush1.bf16.xpose.msra.mxu0 0
        %1046 = vmatprep.subr.bf16.mxu0 0
        %1047 = vmatpush1.bf16.xpose.msra.mxu0 0
        %1048 = vmatprep.subr.bf16.mxu0 0
        %1049 = vmatpush1.bf16.xpose.msra.mxu0 0
        %1050 = vmatprep.subr.bf16.mxu0 0
        %1051 = vmatpush1.bf16.xpose.msra.mxu0 0
        %1052 = vmatprep.subr.bf16.mxu0 0
        %1053 = vmatpush1.bf16.xpose.msra.mxu0 0
        %1054 = vmatprep.subr.bf16.mxu0 0
        %1055 = vmatpush1.bf16.xpose.msra.mxu0 0
        %1056 = vmatprep.subr.bf16.mxu0 0
        %1057 = vmatpush1.bf16.xpose.msra.mxu0 0
        %1058 = vmatprep.subr.bf16.mxu0 0
        %1059 = vmatpush1.bf16.xpose.msra.mxu0 0
        %1060 = vmatprep.subr.bf16.mxu0 0
        %1061 = vmatpush1.bf16.xpose.msra.mxu0 0
        %1062 = vmatprep.subr.bf16.mxu0 0
        %1063 = vmatpush1.bf16.xpose.msra.mxu0 0
        %1064 = vmatprep.subr.bf16.mxu0 0
        %1065 = vmatpush1.bf16.xpose.msra.mxu0 0
        %1066 = vmatprep.subr.bf16.mxu0 0
        %1067 = vmatpush1.bf16.xpose.msra.mxu0 0
        %1068 = vmatprep.subr.bf16.mxu0 0
        %1069 = vmatpush1.bf16.xpose.msra.mxu0 0
        %1070 = vmatprep.subr.bf16.mxu0 0
        %1071 = vmatpush1.bf16.xpose.msra.mxu0 0
        %1072 = vmatprep.subr.bf16.mxu0 0
        %1073 = vmatpush1.bf16.xpose.msra.mxu0 0
        %1074 = vmatprep.mubr.bf16.mxu0 0
        %1075 = vmatmul.mubr.bf16.gmra.mrb[0].mxu0 %v1037
        %v1076 = vpop.f32.mrb[0].mxu0
        %v1077 = vadd.f32 0.0, %v1076
        %v1078 = vpop.f32.mrb[0].mxu0
        %v1079 = vpop.f32.mrb[0].mxu0
        %v1080 = vpop.f32.mrb[0].mxu0
        %1081 = vdwg.mxu0
        %vm1082 = vcmask 125952
        %v1083 = vsel %vm1082, %v1077, -inf
        %v1084 = vrot.slane %v1083, 4
        %v1085 = vmax.f32 %v1083, %v1084
        %v1086 = vrot.slane %v1085, 2
        %v1087 = vmax.f32 %v1085, %v1086
        %v1088 = vrot.slane %v1087, 1
        %v1089 = vmax.f32 %v1087, %v1088
        %v1090 = vsub.f32 %v1077, %v1089
        %v1091 = vmul.f32 %v1090, 1.442695
        %v1092 = vpow.pop %v1091
        %v1093 = vsel %vm1082, %v1092, 0.0
        %v1094 = vrot.slane %v1093, 4
        %v1095 = vadd.f32 %v1093, %v1094
        %v1096 = vrot.slane %v1095, 2
        %v1097 = vadd.f32 %v1095, %v1096
        %v1098 = vrot.slane %v1097, 1
        %v1099 = vadd.f32 %v1097, %v1098
        %v1100 = vrcp.pop %v1099
        %v1101 = vmul.f32 %v1092, %v1100
        %v1102 = vadd.f32 %v1101, 1e-08
        %v1103 = vsel %vm1082, %v1102, 0.0
        %1104 = vadd.xlane.f32.xlu0 %v1103
        %v1105 = vpop.xlane.xlu0 %1104
        %v1106 = vrcp.pop %v1105
        %v1107 = vmul.f32 %v1102, %v1106
        %v1108 = vpack.c.bf16 %v1107, %v1107
        %1110 = vrot.lane.b32.xlu0 %v890, 96
        %v1111 = vpop.permute.xlu0 %1110
        %vm1113 = vcmask 130048
        %v1115 = vsel %vm1113, %v1108, 0
        %1117 = vmatprep.subr.bf16.mxu0 0
        %1118 = vmatpush1.bf16.msra.mxu0 %v1111
        %1119 = vmatprep.subr.bf16.mxu0 0
        %1120 = vmatpush1.bf16.msra.mxu0 0
        %1121 = vmatprep.subr.bf16.mxu0 0
        %1122 = vmatpush1.bf16.msra.mxu0 0
        %1123 = vmatprep.subr.bf16.mxu0 0
        %1124 = vmatpush1.bf16.msra.mxu0 0
        %1125 = vmatprep.subr.bf16.mxu0 0
        %1126 = vmatpush1.bf16.msra.mxu0 0
        %1127 = vmatprep.subr.bf16.mxu0 0
        %1128 = vmatpush1.bf16.msra.mxu0 0
        %1129 = vmatprep.subr.bf16.mxu0 0
        %1130 = vmatpush1.bf16.msra.mxu0 0
        %1131 = vmatprep.subr.bf16.mxu0 0
        %1132 = vmatpush1.bf16.msra.mxu0 0
        %1133 = vmatprep.subr.bf16.mxu0 0
        %1134 = vmatpush1.bf16.msra.mxu0 0
        %1135 = vmatprep.subr.bf16.mxu0 0
        %1136 = vmatpush1.bf16.msra.mxu0 0
        %1137 = vmatprep.subr.bf16.mxu0 0
        %1138 = vmatpush1.bf16.msra.mxu0 0
        %1139 = vmatprep.subr.bf16.mxu0 0
        %1140 = vmatpush1.bf16.msra.mxu0 0
        %1141 = vmatprep.subr.bf16.mxu0 0
        %1142 = vmatpush1.bf16.msra.mxu0 0
        %1143 = vmatprep.subr.bf16.mxu0 0
        %1144 = vmatpush1.bf16.msra.mxu0 0
        %1145 = vmatprep.subr.bf16.mxu0 0
        %1146 = vmatpush1.bf16.msra.mxu0 0
        %1147 = vmatprep.subr.bf16.mxu0 0
        %1148 = vmatpush1.bf16.msra.mxu0 0
        %1149 = vmatprep.mubr.bf16.mxu0 0
        %1150 = vmatmul.mubr.bf16.gmra.mrb[0].mxu0 %v1115
        %v1151 = vpop.f32.mrb[0].mxu0
        %v1152 = vadd.f32 0.0, %v1151
        %v1153 = vpop.f32.mrb[0].mxu0
        %v1154 = vpop.f32.mrb[0].mxu0
        %v1155 = vpop.f32.mrb[0].mxu0
        %1156 = vdwg.mxu0
        %v1157 = vpack.c.bf16 %v1152, %v1152
        %v1162 = vunpack.c.l.b16 %v914
        %v1163 = vunpack.c.l.b16 %v915
        %v1164 = vunpack.c.l.b16 %v916
        %v1165 = vunpack.c.l.b16 %v917
        %v1166 = vpack.c.b16 %v1163, %v1162
        %v1167 = vpack.c.b16 %v1165, %v1164
        %v1171 = vsel %vm785, %v1157, 0
        %1173 = vmatprep.subr.bf16.mxu0 0
        %1174 = vmatpush1.bf16.msra.mxu0 %v1166
        %1175 = vmatprep.subr.bf16.mxu0 0
        %1176 = vmatpush1.bf16.msra.mxu0 %v1167
        %1177 = vmatprep.subr.bf16.mxu0 0
        %1178 = vmatpush1.bf16.msra.mxu0 0
        %1179 = vmatprep.subr.bf16.mxu0 0
        %1180 = vmatpush1.bf16.msra.mxu0 0
        %1181 = vmatprep.subr.bf16.mxu0 0
        %1182 = vmatpush1.bf16.msra.mxu0 0
        %1183 = vmatprep.subr.bf16.mxu0 0
        %1184 = vmatpush1.bf16.msra.mxu0 0
        %1185 = vmatprep.subr.bf16.mxu0 0
        %1186 = vmatpush1.bf16.msra.mxu0 0
        %1187 = vmatprep.subr.bf16.mxu0 0
        %1188 = vmatpush1.bf16.msra.mxu0 0
        %1189 = vmatprep.subr.bf16.mxu0 0
        %1190 = vmatpush1.bf16.msra.mxu0 0
        %1191 = vmatprep.subr.bf16.mxu0 0
        %1192 = vmatpush1.bf16.msra.mxu0 0
        %1193 = vmatprep.subr.bf16.mxu0 0
        %1194 = vmatpush1.bf16.msra.mxu0 0
        %1195 = vmatprep.subr.bf16.mxu0 0
        %1196 = vmatpush1.bf16.msra.mxu0 0
        %1197 = vmatprep.subr.bf16.mxu0 0
        %1198 = vmatpush1.bf16.msra.mxu0 0
        %1199 = vmatprep.subr.bf16.mxu0 0
        %1200 = vmatpush1.bf16.msra.mxu0 0
        %1201 = vmatprep.subr.bf16.mxu0 0
        %1202 = vmatpush1.bf16.msra.mxu0 0
        %1203 = vmatprep.subr.bf16.mxu0 0
        %1204 = vmatpush1.bf16.msra.mxu0 0
        %1205 = vmatprep.mubr.bf16.mxu0 0
        %1206 = vmatmul.mubr.bf16.gmra.mrb[0].mxu0 %v1171
        %v1207 = vpop.f32.mrb[0].mxu0
        %v1208 = vadd.f32 0.0, %v1207
        %v1209 = vpop.f32.mrb[0].mxu0
        %v1210 = vpop.f32.mrb[0].mxu0
        %v1211 = vpop.f32.mrb[0].mxu0
        %1212 = vdwg.mxu0
        %v1213 = vpack.c.bf16 %v909, %v909
        %v1218 = vunpack.c.l.b16 %v918
        %v1219 = vunpack.c.l.b16 %v919
        %v1220 = vunpack.c.l.b16 %v920
        %v1221 = vunpack.c.l.b16 %v921
        %v1222 = vpack.c.b16 %v1219, %v1218
        %v1223 = vpack.c.b16 %v1221, %v1220
        %v1227 = vsel %vm785, %v1213, 0
        %1229 = vmatprep.subr.bf16.mxu0 0
        %1230 = vmatpush1.bf16.msra.mxu0 %v1222
        %1231 = vmatprep.subr.bf16.mxu0 0
        %1232 = vmatpush1.bf16.msra.mxu0 %v1223
        %1233 = vmatprep.subr.bf16.mxu0 0
        %1234 = vmatpush1.bf16.msra.mxu0 0
        %1235 = vmatprep.subr.bf16.mxu0 0
        %1236 = vmatpush1.bf16.msra.mxu0 0
        %1237 = vmatprep.subr.bf16.mxu0 0
        %1238 = vmatpush1.bf16.msra.mxu0 0
        %1239 = vmatprep.subr.bf16.mxu0 0
        %1240 = vmatpush1.bf16.msra.mxu0 0
        %1241 = vmatprep.subr.bf16.mxu0 0
        %1242 = vmatpush1.bf16.msra.mxu0 0
        %1243 = vmatprep.subr.bf16.mxu0 0
        %1244 = vmatpush1.bf16.msra.mxu0 0
        %1245 = vmatprep.subr.bf16.mxu0 0
        %1246 = vmatpush1.bf16.msra.mxu0 0
        %1247 = vmatprep.subr.bf16.mxu0 0
        %1248 = vmatpush1.bf16.msra.mxu0 0
        %1249 = vmatprep.subr.bf16.mxu0 0
        %1250 = vmatpush1.bf16.msra.mxu0 0
        %1251 = vmatprep.subr.bf16.mxu0 0
        %1252 = vmatpush1.bf16.msra.mxu0 0
        %1253 = vmatprep.subr.bf16.mxu0 0
        %1254 = vmatpush1.bf16.msra.mxu0 0
        %1255 = vmatprep.subr.bf16.mxu0 0
        %1256 = vmatpush1.bf16.msra.mxu0 0
        %1257 = vmatprep.subr.bf16.mxu0 0
        %1258 = vmatpush1.bf16.msra.mxu0 0
        %1259 = vmatprep.subr.bf16.mxu0 0
        %1260 = vmatpush1.bf16.msra.mxu0 0
        %1261 = vmatprep.mubr.bf16.mxu0 0
        %1262 = vmatmul.mubr.bf16.gmra.mrb[0].mxu0 %v1227
        %v1263 = vpop.f32.mrb[0].mxu0
        %v1264 = vadd.f32 0.0, %v1263
        %v1265 = vpop.f32.mrb[0].mxu0
        %v1266 = vpop.f32.mrb[0].mxu0
        %v1267 = vpop.f32.mrb[0].mxu0
        %1268 = vdwg.mxu0
        %v1269 = vadd.f32 %v1208, %v1264
        %v1271 = vlaneseq
        %v1272 = vshrl.u32 %v1271, 7
        %v1273 = vsub.s32 0, %v1272
        %v1274 = vrot.slane %v922, %v1273
        %v1276 = vadd.f32 %v1269, %v1274
        %v1277 = vxor.u32 %v1276, 2147483648
        %v1278 = vmul.f32 %v1277, 1.442695
        %v1279 = vpow.pop %v1278
        %v1280 = vadd.f32 %v1279, 1.0
        %v1281 = vrcp.pop %v1280
        %v1282 = vmul.f32 1.0, %v1281
        %v1284 = vlaneseq
        %v1285 = vshrl.u32 %v1284, 7
        %v1286 = vsub.s32 0, %v1285
        %v1287 = vrot.slane %v923, %v1286
        %1288 = vrot.lane.b32.xlu0 %v1287, 64
        %v1289 = vpop.permute.xlu0 %1288
        %v1291 = vadd.f32 %v1208, %v1289
        %v1293 = vlaneseq
        %v1294 = vshrl.u32 %v1293, 7
        %v1295 = vsub.s32 0, %v1294
        %v1296 = vrot.slane %v924, %v1295
        %1297 = vrot.lane.b32.xlu0 %v1296, 64
        %v1298 = vpop.permute.xlu0 %1297
        %v1300 = vadd.f32 %v1264, %v1298
        %1302 = vrot.lane.b32.xlu0 %v1300, 64
        %v1303 = vpop.permute.xlu0 %1302
        %v1305 = vmul.f32 %v1282, %v1303
        %1307 = vrot.lane.b32.xlu0 %v1305, 64
        %v1308 = vpop.permute.xlu0 %1307
        %v1310 = vadd.f32 %v1291, %v1308
        %v1311 = vtanh.pop %v1310
        %v1312 = vsub.f32 1.0, %v1282
        %1314 = vrot.lane.b32.xlu0 %v1311, 96
        %v1315 = vpop.permute.xlu0 %1314
        %v1317 = vmul.f32 %v1312, %v1315
        %1319 = vrot.lane.b32.xlu0 %v909, 32
        %v1320 = vpop.permute.xlu0 %1319
        %v1322 = vmul.f32 %v1282, %v1320
        %v1323 = vadd.f32 %v1317, %v1322
        %1325 = vrot.lane.b32.xlu0 %v1323, 96
        %v1326 = vpop.permute.xlu0 %1325
        %v1328 = vsel %vm951, %v1326, 0.0
        %1329 = vadd.xlane.f32.xlu0 %v1328
        %v1330 = vpop.xlane.xlu0 %1329
        %v1331 = vmul.f32 %v1330, %v792
        %v1332 = vsub.f32 %v1323, %v1331
        %v1333 = vmul.f32 %v1332, %v1332
        %1335 = vrot.lane.b32.xlu0 %v1333, 96
        %v1336 = vpop.permute.xlu0 %1335
        %v1338 = vsel %vm951, %v1336, 0.0
        %1339 = vadd.xlane.f32.xlu0 %v1338
        %v1340 = vpop.xlane.xlu0 %1339
        %v1341 = vmul.f32 %v1340, %v792
        %v1342 = vadd.f32 %v1341, 1e-05
        %v1343 = vrsqrt.pop %v1342
        %v1344 = vmul.f32 %v1332, %v1343
        %v1346 = vlaneseq
        %v1347 = vshrl.u32 %v1346, 7
        %v1348 = vsub.s32 0, %v1347
        %v1349 = vrot.slane %v927, %v1348
        %1350 = vrot.lane.b32.xlu0 %v1349, 32
        %v1351 = vpop.permute.xlu0 %1350
        %v1353 = vmul.f32 %v1344, %v1351
        %v1355 = vlaneseq
        %v1356 = vshrl.u32 %v1355, 7
        %v1357 = vsub.s32 0, %v1356
        %v1358 = vrot.slane %v928, %v1357
        %1359 = vrot.lane.b32.xlu0 %v1358, 32
        %v1360 = vpop.permute.xlu0 %1359
        %v1362 = vadd.f32 %v1353, %v1360
        %v1363 = vpack.c.bf16 %v1362, %v1362
        %v1365 = vlaneseq
        %v1366 = vshrl.u32 %v1365, 7
        %v1367 = vsub.s32 0, %v1366
        %v1368 = vrot.slane %v933, %v1367
        %1371 = vrot.lane.b32.xlu0 %v1363, 96
        %v1372 = vpop.permute.xlu0 %1371
        %v1377 = vunpack.c.l.b16 %v929
        %v1378 = vunpack.c.l.b16 %v930
        %v1379 = vunpack.c.l.b16 %v931
        %v1380 = vunpack.c.l.b16 %v932
        %v1381 = vpack.c.b16 %v1378, %v1377
        %v1382 = vpack.c.b16 %v1380, %v1379
        %v1386 = vsel %vm785, %v1372, 0
        %1388 = vmatprep.subr.bf16.mxu0 0
        %1389 = vmatpush1.bf16.msra.mxu0 %v1381
        %1390 = vmatprep.subr.bf16.mxu0 0
        %1391 = vmatpush1.bf16.msra.mxu0 %v1382
        %1392 = vmatprep.subr.bf16.mxu0 0
        %1393 = vmatpush1.bf16.msra.mxu0 0
        %1394 = vmatprep.subr.bf16.mxu0 0
        %1395 = vmatpush1.bf16.msra.mxu0 0
        %1396 = vmatprep.subr.bf16.mxu0 0
        %1397 = vmatpush1.bf16.msra.mxu0 0
        %1398 = vmatprep.subr.bf16.mxu0 0
        %1399 = vmatpush1.bf16.msra.mxu0 0
        %1400 = vmatprep.subr.bf16.mxu0 0
        %1401 = vmatpush1.bf16.msra.mxu0 0
        %1402 = vmatprep.subr.bf16.mxu0 0
        %1403 = vmatpush1.bf16.msra.mxu0 0
        %1404 = vmatprep.subr.bf16.mxu0 0
        %1405 = vmatpush1.bf16.msra.mxu0 0
        %1406 = vmatprep.subr.bf16.mxu0 0
        %1407 = vmatpush1.bf16.msra.mxu0 0
        %1408 = vmatprep.subr.bf16.mxu0 0
        %1409 = vmatpush1.bf16.msra.mxu0 0
        %1410 = vmatprep.subr.bf16.mxu0 0
        %1411 = vmatpush1.bf16.msra.mxu0 0
        %1412 = vmatprep.subr.bf16.mxu0 0
        %1413 = vmatpush1.bf16.msra.mxu0 0
        %1414 = vmatprep.subr.bf16.mxu0 0
        %1415 = vmatpush1.bf16.msra.mxu0 0
        %1416 = vmatprep.subr.bf16.mxu0 0
        %1417 = vmatpush1.bf16.msra.mxu0 0
        %1418 = vmatprep.subr.bf16.mxu0 0
        %1419 = vmatpush1.bf16.msra.mxu0 0
        %1420 = vmatprep.mubr.bf16.mxu0 0
        %1421 = vmatmul.mubr.bf16.gmra.mrb[0].mxu0 %v1386
        %v1422 = vpop.f32.mrb[0].mxu0
        %v1423 = vadd.f32 %v1368, %v1422
        %v1424 = vpop.f32.mrb[0].mxu0
        %v1425 = vpop.f32.mrb[0].mxu0
        %v1426 = vpop.f32.mrb[0].mxu0
        %1427 = vdwg.mxu0
        %v1428 = vmax.f32 %v1423, 0.0
        %v1429 = vpack.c.bf16 %v1428, %v1428
        %v1431 = vlaneseq
        %v1432 = vshrl.u32 %v1431, 7
        %v1433 = vsub.s32 0, %v1432
        %v1434 = vrot.slane %v950, %v1433
        %v1452 = vunpack.c.l.b16 %v934
        %v1453 = vunpack.c.l.b16 %v935
        %v1454 = vunpack.c.l.b16 %v936
        %v1455 = vunpack.c.l.b16 %v937
        %v1456 = vunpack.c.l.b16 %v938
        %v1457 = vunpack.c.l.b16 %v939
        %v1458 = vunpack.c.l.b16 %v940
        %v1459 = vunpack.c.l.b16 %v941
        %v1460 = vunpack.c.l.b16 %v942
        %v1461 = vunpack.c.l.b16 %v943
        %v1462 = vunpack.c.l.b16 %v944
        %v1463 = vunpack.c.l.b16 %v945
        %v1464 = vunpack.c.l.b16 %v946
        %v1465 = vunpack.c.l.b16 %v947
        %v1466 = vunpack.c.l.b16 %v948
        %v1467 = vunpack.c.l.b16 %v949
        %v1468 = vpack.c.b16 %v1453, %v1452
        %v1469 = vpack.c.b16 %v1455, %v1454
        %v1470 = vpack.c.b16 %v1457, %v1456
        %v1471 = vpack.c.b16 %v1459, %v1458
        %v1472 = vpack.c.b16 %v1461, %v1460
        %v1473 = vpack.c.b16 %v1463, %v1462
        %v1474 = vpack.c.b16 %v1465, %v1464
        %v1475 = vpack.c.b16 %v1467, %v1466
        %1484 = vmatprep.subr.bf16.mxu0 0
        %1485 = vmatpush1.bf16.msra.mxu0 %v1468
        %1486 = vmatprep.subr.bf16.mxu0 0
        %1487 = vmatpush1.bf16.msra.mxu0 %v1469
        %1488 = vmatprep.subr.bf16.mxu0 0
        %1489 = vmatpush1.bf16.msra.mxu0 %v1470
        %1490 = vmatprep.subr.bf16.mxu0 0
        %1491 = vmatpush1.bf16.msra.mxu0 %v1471
        %1492 = vmatprep.subr.bf16.mxu0 0
        %1493 = vmatpush1.bf16.msra.mxu0 %v1472
        %1494 = vmatprep.subr.bf16.mxu0 0
        %1495 = vmatpush1.bf16.msra.mxu0 %v1473
        %1496 = vmatprep.subr.bf16.mxu0 0
        %1497 = vmatpush1.bf16.msra.mxu0 %v1474
        %1498 = vmatprep.subr.bf16.mxu0 0
        %1499 = vmatpush1.bf16.msra.mxu0 %v1475
        %1500 = vmatprep.subr.bf16.mxu0 0
        %1501 = vmatpush1.bf16.msra.mxu0 0
        %1502 = vmatprep.subr.bf16.mxu0 0
        %1503 = vmatpush1.bf16.msra.mxu0 0
        %1504 = vmatprep.subr.bf16.mxu0 0
        %1505 = vmatpush1.bf16.msra.mxu0 0
        %1506 = vmatprep.subr.bf16.mxu0 0
        %1507 = vmatpush1.bf16.msra.mxu0 0
        %1508 = vmatprep.subr.bf16.mxu0 0
        %1509 = vmatpush1.bf16.msra.mxu0 0
        %1510 = vmatprep.subr.bf16.mxu0 0
        %1511 = vmatpush1.bf16.msra.mxu0 0
        %1512 = vmatprep.subr.bf16.mxu0 0
        %1513 = vmatpush1.bf16.msra.mxu0 0
        %1514 = vmatprep.subr.bf16.mxu0 0
        %1515 = vmatpush1.bf16.msra.mxu0 0
        %1516 = vmatprep.mubr.bf16.mxu0 0
        %1517 = vmatmul.mubr.bf16.gmra.mrb[0].mxu0 %v1429
        %v1518 = vpop.f32.mrb[0].mxu0
        %v1519 = vadd.f32 %v1434, %v1518
        %v1520 = vpop.f32.mrb[0].mxu0
        %v1521 = vpop.f32.mrb[0].mxu0
        %v1522 = vpop.f32.mrb[0].mxu0
        %1523 = vdwg.mxu0
        %1525 = vrot.lane.b32.xlu0 %v1519, 32
        %v1526 = vpop.permute.xlu0 %1525
        %v1528 = vadd.f32 %v1323, %v1526
        %1530 = vrot.lane.b32.xlu0 %v1528, 96
        %v1531 = vpop.permute.xlu0 %1530
        %v1533 = vsel %vm951, %v1531, 0.0
        %1534 = vadd.xlane.f32.xlu0 %v1533
        %v1535 = vpop.xlane.xlu0 %1534
        %v1536 = vmul.f32 %v1535, %v792
        %v1537 = vsub.f32 %v1528, %v1536
        %v1538 = vmul.f32 %v1537, %v1537
        %1540 = vrot.lane.b32.xlu0 %v1538, 96
        %v1541 = vpop.permute.xlu0 %1540
        %v1543 = vsel %vm951, %v1541, 0.0
        %1544 = vadd.xlane.f32.xlu0 %v1543
        %v1545 = vpop.xlane.xlu0 %1544
        %v1546 = vmul.f32 %v1545, %v792
        %v1547 = vadd.f32 %v1546, 1e-05
        %v1548 = vrsqrt.pop %v1547
        %v1549 = vmul.f32 %v1537, %v1548
        %1550 = vrot.lane.b32.xlu0 %v969, 32
        %v1551 = vpop.permute.xlu0 %1550
        %v1553 = vmul.f32 %v1549, %v1551
        %1554 = vrot.lane.b32.xlu0 %v976, 32
        %v1555 = vpop.permute.xlu0 %1554
        %v1557 = vadd.f32 %v1553, %v1555
        %v1558 = vpack.c.bf16 %v1557, %v1557
        %1560 = vrot.lane.b32.xlu0 %v1558, 96
        %v1561 = vpop.permute.xlu0 %1560
        %v1563 = vsel %vm785, %v1561, 0
        %1565 = vmatprep.subr.bf16.mxu0 0
        %1566 = vmatpush1.bf16.msra.mxu0 %v988
        %1567 = vmatprep.subr.bf16.mxu0 0
        %1568 = vmatpush1.bf16.msra.mxu0 %v989
        %1569 = vmatprep.subr.bf16.mxu0 0
        %1570 = vmatpush1.bf16.msra.mxu0 0
        %1571 = vmatprep.subr.bf16.mxu0 0
        %1572 = vmatpush1.bf16.msra.mxu0 0
        %1573 = vmatprep.subr.bf16.mxu0 0
        %1574 = vmatpush1.bf16.msra.mxu0 0
        %1575 = vmatprep.subr.bf16.mxu0 0
        %1576 = vmatpush1.bf16.msra.mxu0 0
        %1577 = vmatprep.subr.bf16.mxu0 0
        %1578 = vmatpush1.bf16.msra.mxu0 0
        %1579 = vmatprep.subr.bf16.mxu0 0
        %1580 = vmatpush1.bf16.msra.mxu0 0
        %1581 = vmatprep.subr.bf16.mxu0 0
        %1582 = vmatpush1.bf16.msra.mxu0 0
        %1583 = vmatprep.subr.bf16.mxu0 0
        %1584 = vmatpush1.bf16.msra.mxu0 0
        %1585 = vmatprep.subr.bf16.mxu0 0
        %1586 = vmatpush1.bf16.msra.mxu0 0
        %1587 = vmatprep.subr.bf16.mxu0 0
        %1588 = vmatpush1.bf16.msra.mxu0 0
        %1589 = vmatprep.subr.bf16.mxu0 0
        %1590 = vmatpush1.bf16.msra.mxu0 0
        %1591 = vmatprep.subr.bf16.mxu0 0
        %1592 = vmatpush1.bf16.msra.mxu0 0
        %1593 = vmatprep.subr.bf16.mxu0 0
        %1594 = vmatpush1.bf16.msra.mxu0 0
        %1595 = vmatprep.subr.bf16.mxu0 0
        %1596 = vmatpush1.bf16.msra.mxu0 0
        %1597 = vmatprep.mubr.bf16.mxu0 0
        %1598 = vmatmul.mubr.bf16.gmra.mrb[0].mxu0 %v1563
        %v1599 = vpop.f32.mrb[0].mxu0
        %v1600 = vadd.f32 0.0, %v1599
        %v1601 = vpop.f32.mrb[0].mxu0
        %v1602 = vpop.f32.mrb[0].mxu0
        %v1603 = vpop.f32.mrb[0].mxu0
        %1604 = vdwg.mxu0
        %v1605 = vpack.c.bf16 %v1600, %v1600
        %v1607 = vsel %vm785, %v1605, 0
        %1609 = vmatprep.subr.bf16.mxu0 0
        %1610 = vmatpush1.bf16.xpose.msra.mxu0 %v1040
        %1611 = vmatprep.subr.bf16.mxu0 0
        %1612 = vmatpush1.bf16.xpose.msra.mxu0 0
        %1613 = vmatprep.subr.bf16.mxu0 0
        %1614 = vmatpush1.bf16.xpose.msra.mxu0 0
        %1615 = vmatprep.subr.bf16.mxu0 0
        %1616 = vmatpush1.bf16.xpose.msra.mxu0 0
        %1617 = vmatprep.subr.bf16.mxu0 0
        %1618 = vmatpush1.bf16.xpose.msra.mxu0 0
        %1619 = vmatprep.subr.bf16.mxu0 0
        %1620 = vmatpush1.bf16.xpose.msra.mxu0 0
        %1621 = vmatprep.subr.bf16.mxu0 0
        %1622 = vmatpush1.bf16.xpose.msra.mxu0 0
        %1623 = vmatprep.subr.bf16.mxu0 0
        %1624 = vmatpush1.bf16.xpose.msra.mxu0 0
        %1625 = vmatprep.subr.bf16.mxu0 0
        %1626 = vmatpush1.bf16.xpose.msra.mxu0 0
        %1627 = vmatprep.subr.bf16.mxu0 0
        %1628 = vmatpush1.bf16.xpose.msra.mxu0 0
        %1629 = vmatprep.subr.bf16.mxu0 0
        %1630 = vmatpush1.bf16.xpose.msra.mxu0 0
        %1631 = vmatprep.subr.bf16.mxu0 0
        %1632 = vmatpush1.bf16.xpose.msra.mxu0 0
        %1633 = vmatprep.subr.bf16.mxu0 0
        %1634 = vmatpush1.bf16.xpose.msra.mxu0 0
        %1635 = vmatprep.subr.bf16.mxu0 0
        %1636 = vmatpush1.bf16.xpose.msra.mxu0 0
        %1637 = vmatprep.subr.bf16.mxu0 0
        %1638 = vmatpush1.bf16.xpose.msra.mxu0 0
        %1639 = vmatprep.subr.bf16.mxu0 0
        %1640 = vmatpush1.bf16.xpose.msra.mxu0 0
        %1641 = vmatprep.mubr.bf16.mxu0 0
        %1642 = vmatmul.mubr.bf16.gmra.mrb[0].mxu0 %v1607
        %v1643 = vpop.f32.mrb[0].mxu0
        %v1644 = vadd.f32 0.0, %v1643
        %v1645 = vpop.f32.mrb[0].mxu0
        %v1646 = vpop.f32.mrb[0].mxu0
        %v1647 = vpop.f32.mrb[0].mxu0
        %1648 = vdwg.mxu0
        %v1649 = vsel %vm1082, %v1644, -inf
        %v1650 = vrot.slane %v1649, 4
        %v1651 = vmax.f32 %v1649, %v1650
        %v1652 = vrot.slane %v1651, 2
        %v1653 = vmax.f32 %v1651, %v1652
        %v1654 = vrot.slane %v1653, 1
        %v1655 = vmax.f32 %v1653, %v1654
        %v1656 = vsub.f32 %v1644, %v1655
        %v1657 = vmul.f32 %v1656, 1.442695
        %v1658 = vpow.pop %v1657
        %v1659 = vsel %vm1082, %v1658, 0.0
        %v1660 = vrot.slane %v1659, 4
        %v1661 = vadd.f32 %v1659, %v1660
        %v1662 = vrot.slane %v1661, 2
        %v1663 = vadd.f32 %v1661, %v1662
        %v1664 = vrot.slane %v1663, 1
        %v1665 = vadd.f32 %v1663, %v1664
        %v1666 = vrcp.pop %v1665
        %v1667 = vmul.f32 %v1658, %v1666
        %v1668 = vadd.f32 %v1667, 1e-08
        %v1669 = vsel %vm1082, %v1668, 0.0
        %1670 = vadd.xlane.f32.xlu0 %v1669
        %v1671 = vpop.xlane.xlu0 %1670
        %v1672 = vrcp.pop %v1671
        %v1673 = vmul.f32 %v1668, %v1672
        %v1674 = vpack.c.bf16 %v1673, %v1673
        %v1676 = vsel %vm1113, %v1674, 0
        %1678 = vmatprep.subr.bf16.mxu0 0
        %1679 = vmatpush1.bf16.msra.mxu0 %v1111
        %1680 = vmatprep.subr.bf16.mxu0 0
        %1681 = vmatpush1.bf16.msra.mxu0 0
        %1682 = vmatprep.subr.bf16.mxu0 0
        %1683 = vmatpush1.bf16.msra.mxu0 0
        %1684 = vmatprep.subr.bf16.mxu0 0
        %1685 = vmatpush1.bf16.msra.mxu0 0
        %1686 = vmatprep.subr.bf16.mxu0 0
        %1687 = vmatpush1.bf16.msra.mxu0 0
        %1688 = vmatprep.subr.bf16.mxu0 0
        %1689 = vmatpush1.bf16.msra.mxu0 0
        %1690 = vmatprep.subr.bf16.mxu0 0
        %1691 = vmatpush1.bf16.msra.mxu0 0
        %1692 = vmatprep.subr.bf16.mxu0 0
        %1693 = vmatpush1.bf16.msra.mxu0 0
        %1694 = vmatprep.subr.bf16.mxu0 0
        %1695 = vmatpush1.bf16.msra.mxu0 0
        %1696 = vmatprep.subr.bf16.mxu0 0
        %1697 = vmatpush1.bf16.msra.mxu0 0
        %1698 = vmatprep.subr.bf16.mxu0 0
        %1699 = vmatpush1.bf16.msra.mxu0 0
        %1700 = vmatprep.subr.bf16.mxu0 0
        %1701 = vmatpush1.bf16.msra.mxu0 0
        %1702 = vmatprep.subr.bf16.mxu0 0
        %1703 = vmatpush1.bf16.msra.mxu0 0
        %1704 = vmatprep.subr.bf16.mxu0 0
        %1705 = vmatpush1.bf16.msra.mxu0 0
        %1706 = vmatprep.subr.bf16.mxu0 0
        %1707 = vmatpush1.bf16.msra.mxu0 0
        %1708 = vmatprep.subr.bf16.mxu0 0
        %1709 = vmatpush1.bf16.msra.mxu0 0
        %1710 = vmatprep.mubr.bf16.mxu0 0
        %1711 = vmatmul.mubr.bf16.gmra.mrb[0].mxu0 %v1676
        %v1712 = vpop.f32.mrb[0].mxu0
        %v1713 = vadd.f32 0.0, %v1712
        %v1714 = vpop.f32.mrb[0].mxu0
        %v1715 = vpop.f32.mrb[0].mxu0
        %v1716 = vpop.f32.mrb[0].mxu0
        %1717 = vdwg.mxu0
        %v1718 = vpack.c.bf16 %v1713, %v1713
        %v1720 = vsel %vm785, %v1718, 0
        %1722 = vmatprep.subr.bf16.mxu0 0
        %1723 = vmatpush1.bf16.msra.mxu0 %v1166
        %1724 = vmatprep.subr.bf16.mxu0 0
        %1725 = vmatpush1.bf16.msra.mxu0 %v1167
        %1726 = vmatprep.subr.bf16.mxu0 0
        %1727 = vmatpush1.bf16.msra.mxu0 0
        %1728 = vmatprep.subr.bf16.mxu0 0
        %1729 = vmatpush1.bf16.msra.mxu0 0
        %1730 = vmatprep.subr.bf16.mxu0 0
        %1731 = vmatpush1.bf16.msra.mxu0 0
        %1732 = vmatprep.subr.bf16.mxu0 0
        %1733 = vmatpush1.bf16.msra.mxu0 0
        %1734 = vmatprep.subr.bf16.mxu0 0
        %1735 = vmatpush1.bf16.msra.mxu0 0
        %1736 = vmatprep.subr.bf16.mxu0 0
        %1737 = vmatpush1.bf16.msra.mxu0 0
        %1738 = vmatprep.subr.bf16.mxu0 0
        %1739 = vmatpush1.bf16.msra.mxu0 0
        %1740 = vmatprep.subr.bf16.mxu0 0
        %1741 = vmatpush1.bf16.msra.mxu0 0
        %1742 = vmatprep.subr.bf16.mxu0 0
        %1743 = vmatpush1.bf16.msra.mxu0 0
        %1744 = vmatprep.subr.bf16.mxu0 0
        %1745 = vmatpush1.bf16.msra.mxu0 0
        %1746 = vmatprep.subr.bf16.mxu0 0
        %1747 = vmatpush1.bf16.msra.mxu0 0
        %1748 = vmatprep.subr.bf16.mxu0 0
        %1749 = vmatpush1.bf16.msra.mxu0 0
        %1750 = vmatprep.subr.bf16.mxu0 0
        %1751 = vmatpush1.bf16.msra.mxu0 0
        %1752 = vmatprep.subr.bf16.mxu0 0
        %1753 = vmatpush1.bf16.msra.mxu0 0
        %1754 = vmatprep.mubr.bf16.mxu0 0
        %1755 = vmatmul.mubr.bf16.gmra.mrb[0].mxu0 %v1720
        %v1756 = vpop.f32.mrb[0].mxu0
        %v1757 = vadd.f32 0.0, %v1756
        %v1758 = vpop.f32.mrb[0].mxu0
        %v1759 = vpop.f32.mrb[0].mxu0
        %v1760 = vpop.f32.mrb[0].mxu0
        %1761 = vdwg.mxu0
        %v1762 = vpack.c.bf16 %v1528, %v1528
        %1764 = vrot.lane.b32.xlu0 %v1762, 96
        %v1765 = vpop.permute.xlu0 %1764
        %v1767 = vsel %vm785, %v1765, 0
        %1769 = vmatprep.subr.bf16.mxu0 0
        %1770 = vmatpush1.bf16.msra.mxu0 %v1222
        %1771 = vmatprep.subr.bf16.mxu0 0
        %1772 = vmatpush1.bf16.msra.mxu0 %v1223
        %1773 = vmatprep.subr.bf16.mxu0 0
        %1774 = vmatpush1.bf16.msra.mxu0 0
        %1775 = vmatprep.subr.bf16.mxu0 0
        %1776 = vmatpush1.bf16.msra.mxu0 0
        %1777 = vmatprep.subr.bf16.mxu0 0
        %1778 = vmatpush1.bf16.msra.mxu0 0
        %1779 = vmatprep.subr.bf16.mxu0 0
        %1780 = vmatpush1.bf16.msra.mxu0 0
        %1781 = vmatprep.subr.bf16.mxu0 0
        %1782 = vmatpush1.bf16.msra.mxu0 0
        %1783 = vmatprep.subr.bf16.mxu0 0
        %1784 = vmatpush1.bf16.msra.mxu0 0
        %1785 = vmatprep.subr.bf16.mxu0 0
        %1786 = vmatpush1.bf16.msra.mxu0 0
        %1787 = vmatprep.subr.bf16.mxu0 0
        %1788 = vmatpush1.bf16.msra.mxu0 0
        %1789 = vmatprep.subr.bf16.mxu0 0
        %1790 = vmatpush1.bf16.msra.mxu0 0
        %1791 = vmatprep.subr.bf16.mxu0 0
        %1792 = vmatpush1.bf16.msra.mxu0 0
        %1793 = vmatprep.subr.bf16.mxu0 0
        %1794 = vmatpush1.bf16.msra.mxu0 0
        %1795 = vmatprep.subr.bf16.mxu0 0
        %1796 = vmatpush1.bf16.msra.mxu0 0
        %1797 = vmatprep.subr.bf16.mxu0 0
        %1798 = vmatpush1.bf16.msra.mxu0 0
        %1799 = vmatprep.subr.bf16.mxu0 0
        %1800 = vmatpush1.bf16.msra.mxu0 0
        %1801 = vmatprep.mubr.bf16.mxu0 0
        %1802 = vmatmul.mubr.bf16.gmra.mrb[0].mxu0 %v1767
        %v1803 = vpop.f32.mrb[0].mxu0
        %v1804 = vadd.f32 0.0, %v1803
        %v1805 = vpop.f32.mrb[0].mxu0
        %v1806 = vpop.f32.mrb[0].mxu0
        %v1807 = vpop.f32.mrb[0].mxu0
        %1808 = vdwg.mxu0
        %v1809 = vadd.f32 %v1757, %v1804
        %v1810 = vadd.f32 %v1809, %v1274
        %v1811 = vxor.u32 %v1810, 2147483648
        %v1812 = vmul.f32 %v1811, 1.442695
        %v1813 = vpow.pop %v1812
        %v1814 = vadd.f32 %v1813, 1.0
        %v1815 = vrcp.pop %v1814
        %v1816 = vmul.f32 1.0, %v1815
        %v1817 = vadd.f32 %v1757, %v1289
        %v1818 = vadd.f32 %v1804, %v1298
        %1820 = vrot.lane.b32.xlu0 %v1818, 64
        %v1821 = vpop.permute.xlu0 %1820
        %v1823 = vmul.f32 %v1816, %v1821
        %1825 = vrot.lane.b32.xlu0 %v1823, 64
        %v1826 = vpop.permute.xlu0 %1825
        %v1828 = vadd.f32 %v1817, %v1826
        %v1829 = vtanh.pop %v1828
        %v1830 = vsub.f32 1.0, %v1816
        %1832 = vrot.lane.b32.xlu0 %v1829, 96
        %v1833 = vpop.permute.xlu0 %1832
        %v1835 = vmul.f32 %v1830, %v1833
        %v1836 = vmul.f32 %v1816, %v1528
        %v1837 = vadd.f32 %v1835, %v1836
        %1839 = vrot.lane.b32.xlu0 %v1837, 96
        %v1840 = vpop.permute.xlu0 %1839
        %v1842 = vsel %vm951, %v1840, 0.0
        %1843 = vadd.xlane.f32.xlu0 %v1842
        %v1844 = vpop.xlane.xlu0 %1843
        %v1845 = vmul.f32 %v1844, %v792
        %v1846 = vsub.f32 %v1837, %v1845
        %v1847 = vmul.f32 %v1846, %v1846
        %1849 = vrot.lane.b32.xlu0 %v1847, 96
        %v1850 = vpop.permute.xlu0 %1849
        %v1852 = vsel %vm951, %v1850, 0.0
        %1853 = vadd.xlane.f32.xlu0 %v1852
        %v1854 = vpop.xlane.xlu0 %1853
        %v1855 = vmul.f32 %v1854, %v792
        %v1856 = vadd.f32 %v1855, 1e-05
        %v1857 = vrsqrt.pop %v1856
        %v1858 = vmul.f32 %v1846, %v1857
        %v1859 = vmul.f32 %v1858, %v1351
        %v1860 = vadd.f32 %v1859, %v1360
        %v1861 = vpack.c.bf16 %v1860, %v1860
        %1863 = vrot.lane.b32.xlu0 %v1861, 96
        %v1864 = vpop.permute.xlu0 %1863
        %v1866 = vsel %vm785, %v1864, 0
        %1868 = vmatprep.subr.bf16.mxu0 0
        %1869 = vmatpush1.bf16.msra.mxu0 %v1381
        %1870 = vmatprep.subr.bf16.mxu0 0
        %1871 = vmatpush1.bf16.msra.mxu0 %v1382
        %1872 = vmatprep.subr.bf16.mxu0 0
        %1873 = vmatpush1.bf16.msra.mxu0 0
        %1874 = vmatprep.subr.bf16.mxu0 0
        %1875 = vmatpush1.bf16.msra.mxu0 0
        %1876 = vmatprep.subr.bf16.mxu0 0
        %1877 = vmatpush1.bf16.msra.mxu0 0
        %1878 = vmatprep.subr.bf16.mxu0 0
        %1879 = vmatpush1.bf16.msra.mxu0 0
        %1880 = vmatprep.subr.bf16.mxu0 0
        %1881 = vmatpush1.bf16.msra.mxu0 0
        %1882 = vmatprep.subr.bf16.mxu0 0
        %1883 = vmatpush1.bf16.msra.mxu0 0
        %1884 = vmatprep.subr.bf16.mxu0 0
        %1885 = vmatpush1.bf16.msra.mxu0 0
        %1886 = vmatprep.subr.bf16.mxu0 0
        %1887 = vmatpush1.bf16.msra.mxu0 0
        %1888 = vmatprep.subr.bf16.mxu0 0
        %1889 = vmatpush1.bf16.msra.mxu0 0
        %1890 = vmatprep.subr.bf16.mxu0 0
        %1891 = vmatpush1.bf16.msra.mxu0 0
        %1892 = vmatprep.subr.bf16.mxu0 0
        %1893 = vmatpush1.bf16.msra.mxu0 0
        %1894 = vmatprep.subr.bf16.mxu0 0
        %1895 = vmatpush1.bf16.msra.mxu0 0
        %1896 = vmatprep.subr.bf16.mxu0 0
        %1897 = vmatpush1.bf16.msra.mxu0 0
        %1898 = vmatprep.subr.bf16.mxu0 0
        %1899 = vmatpush1.bf16.msra.mxu0 0
        %1900 = vmatprep.mubr.bf16.mxu0 0
        %1901 = vmatmul.mubr.bf16.gmra.mrb[0].mxu0 %v1866
        %v1902 = vpop.f32.mrb[0].mxu0
        %v1903 = vadd.f32 %v1368, %v1902
        %v1904 = vpop.f32.mrb[0].mxu0
        %v1905 = vpop.f32.mrb[0].mxu0
        %v1906 = vpop.f32.mrb[0].mxu0
        %1907 = vdwg.mxu0
        %v1908 = vmax.f32 %v1903, 0.0
        %v1909 = vpack.c.bf16 %v1908, %v1908
        %1910 = vmatprep.subr.bf16.mxu0 0
        %1911 = vmatpush1.bf16.msra.mxu0 %v1468
        %1912 = vmatprep.subr.bf16.mxu0 0
        %1913 = vmatpush1.bf16.msra.mxu0 %v1469
        %1914 = vmatprep.subr.bf16.mxu0 0
        %1915 = vmatpush1.bf16.msra.mxu0 %v1470
        %1916 = vmatprep.subr.bf16.mxu0 0
        %1917 = vmatpush1.bf16.msra.mxu0 %v1471
        %1918 = vmatprep.subr.bf16.mxu0 0
        %1919 = vmatpush1.bf16.msra.mxu0 %v1472
        %1920 = vmatprep.subr.bf16.mxu0 0
        %1921 = vmatpush1.bf16.msra.mxu0 %v1473
        %1922 = vmatprep.subr.bf16.mxu0 0
        %1923 = vmatpush1.bf16.msra.mxu0 %v1474
        %1924 = vmatprep.subr.bf16.mxu0 0
        %1925 = vmatpush1.bf16.msra.mxu0 %v1475
        %1926 = vmatprep.subr.bf16.mxu0 0
        %1927 = vmatpush1.bf16.msra.mxu0 0
        %1928 = vmatprep.subr.bf16.mxu0 0
        %1929 = vmatpush1.bf16.msra.mxu0 0
        %1930 = vmatprep.subr.bf16.mxu0 0
        %1931 = vmatpush1.bf16.msra.mxu0 0
        %1932 = vmatprep.subr.bf16.mxu0 0
        %1933 = vmatpush1.bf16.msra.mxu0 0
        %1934 = vmatprep.subr.bf16.mxu0 0
        %1935 = vmatpush1.bf16.msra.mxu0 0
        %1936 = vmatprep.subr.bf16.mxu0 0
        %1937 = vmatpush1.bf16.msra.mxu0 0
        %1938 = vmatprep.subr.bf16.mxu0 0
        %1939 = vmatpush1.bf16.msra.mxu0 0
        %1940 = vmatprep.subr.bf16.mxu0 0
        %1941 = vmatpush1.bf16.msra.mxu0 0
        %1942 = vmatprep.mubr.bf16.mxu0 0
        %1943 = vmatmul.mubr.bf16.gmra.mrb[0].mxu0 %v1909
        %v1944 = vpop.f32.mrb[0].mxu0
        %v1945 = vadd.f32 %v1434, %v1944
        %v1946 = vpop.f32.mrb[0].mxu0
        %v1947 = vpop.f32.mrb[0].mxu0
        %v1948 = vpop.f32.mrb[0].mxu0
        %1949 = vdwg.mxu0
        %1951 = vrot.lane.b32.xlu0 %v1945, 32
        %v1952 = vpop.permute.xlu0 %1951
        %v1954 = vadd.f32 %v1837, %v1952
        %1956 = vrot.lane.b32.xlu0 %v1954, 96
        %v1957 = vpop.permute.xlu0 %1956
        %v1959 = vsel %vm951, %v1957, 0.0
        %1960 = vadd.xlane.f32.xlu0 %v1959
        %v1961 = vpop.xlane.xlu0 %1960
        %v1962 = vmul.f32 %v1961, %v792
        %v1963 = vsub.f32 %v1954, %v1962
        %v1964 = vmul.f32 %v1963, %v1963
        %1966 = vrot.lane.b32.xlu0 %v1964, 96
        %v1967 = vpop.permute.xlu0 %1966
        %v1969 = vsel %vm951, %v1967, 0.0
        %1970 = vadd.xlane.f32.xlu0 %v1969
        %v1971 = vpop.xlane.xlu0 %1970
        %v1972 = vmul.f32 %v1971, %v792
        %v1973 = vadd.f32 %v1972, 1e-05
        %v1974 = vrsqrt.pop %v1973
        %v1975 = vmul.f32 %v1963, %v1974
        %v1976 = vmul.f32 %v1975, %v1551
        %v1977 = vadd.f32 %v1976, %v1555
        %v1978 = vpack.c.bf16 %v1977, %v1977
        %1980 = vrot.lane.b32.xlu0 %v1978, 96
        %v1981 = vpop.permute.xlu0 %1980
        %v1983 = vsel %vm785, %v1981, 0
        %1985 = vmatprep.subr.bf16.mxu0 0
        %1986 = vmatpush1.bf16.msra.mxu0 %v988
        %1987 = vmatprep.subr.bf16.mxu0 0
        %1988 = vmatpush1.bf16.msra.mxu0 %v989
        %1989 = vmatprep.subr.bf16.mxu0 0
        %1990 = vmatpush1.bf16.msra.mxu0 0
        %1991 = vmatprep.subr.bf16.mxu0 0
        %1992 = vmatpush1.bf16.msra.mxu0 0
        %1993 = vmatprep.subr.bf16.mxu0 0
        %1994 = vmatpush1.bf16.msra.mxu0 0
        %1995 = vmatprep.subr.bf16.mxu0 0
        %1996 = vmatpush1.bf16.msra.mxu0 0
        %1997 = vmatprep.subr.bf16.mxu0 0
        %1998 = vmatpush1.bf16.msra.mxu0 0
        %1999 = vmatprep.subr.bf16.mxu0 0
        %2000 = vmatpush1.bf16.msra.mxu0 0
        %2001 = vmatprep.subr.bf16.mxu0 0
        %2002 = vmatpush1.bf16.msra.mxu0 0
        %2003 = vmatprep.subr.bf16.mxu0 0
        %2004 = vmatpush1.bf16.msra.mxu0 0
        %2005 = vmatprep.subr.bf16.mxu0 0
        %2006 = vmatpush1.bf16.msra.mxu0 0
        %2007 = vmatprep.subr.bf16.mxu0 0
        %2008 = vmatpush1.bf16.msra.mxu0 0
        %2009 = vmatprep.subr.bf16.mxu0 0
        %2010 = vmatpush1.bf16.msra.mxu0 0
        %2011 = vmatprep.subr.bf16.mxu0 0
        %2012 = vmatpush1.bf16.msra.mxu0 0
        %2013 = vmatprep.subr.bf16.mxu0 0
        %2014 = vmatpush1.bf16.msra.mxu0 0
        %2015 = vmatprep.subr.bf16.mxu0 0
        %2016 = vmatpush1.bf16.msra.mxu0 0
        %2017 = vmatprep.mubr.bf16.mxu0 0
        %2018 = vmatmul.mubr.bf16.gmra.mrb[0].mxu0 %v1983
        %v2019 = vpop.f32.mrb[0].mxu0
        %v2020 = vadd.f32 0.0, %v2019
        %v2021 = vpop.f32.mrb[0].mxu0
        %v2022 = vpop.f32.mrb[0].mxu0
        %v2023 = vpop.f32.mrb[0].mxu0
        %2024 = vdwg.mxu0
        %v2025 = vpack.c.bf16 %v2020, %v2020
        %v2027 = vsel %vm785, %v2025, 0
        %2029 = vmatprep.subr.bf16.mxu0 0
        %2030 = vmatpush1.bf16.xpose.msra.mxu0 %v1040
        %2031 = vmatprep.subr.bf16.mxu0 0
        %2032 = vmatpush1.bf16.xpose.msra.mxu0 0
        %2033 = vmatprep.subr.bf16.mxu0 0
        %2034 = vmatpush1.bf16.xpose.msra.mxu0 0
        %2035 = vmatprep.subr.bf16.mxu0 0
        %2036 = vmatpush1.bf16.xpose.msra.mxu0 0
        %2037 = vmatprep.subr.bf16.mxu0 0
        %2038 = vmatpush1.bf16.xpose.msra.mxu0 0
        %2039 = vmatprep.subr.bf16.mxu0 0
        %2040 = vmatpush1.bf16.xpose.msra.mxu0 0
        %2041 = vmatprep.subr.bf16.mxu0 0
        %2042 = vmatpush1.bf16.xpose.msra.mxu0 0
        %2043 = vmatprep.subr.bf16.mxu0 0
        %2044 = vmatpush1.bf16.xpose.msra.mxu0 0
        %2045 = vmatprep.subr.bf16.mxu0 0
        %2046 = vmatpush1.bf16.xpose.msra.mxu0 0
        %2047 = vmatprep.subr.bf16.mxu0 0
        %2048 = vmatpush1.bf16.xpose.msra.mxu0 0
        %2049 = vmatprep.subr.bf16.mxu0 0
        %2050 = vmatpush1.bf16.xpose.msra.mxu0 0
        %2051 = vmatprep.subr.bf16.mxu0 0
        %2052 = vmatpush1.bf16.xpose.msra.mxu0 0
        %2053 = vmatprep.subr.bf16.mxu0 0
        %2054 = vmatpush1.bf16.xpose.msra.mxu0 0
        %2055 = vmatprep.subr.bf16.mxu0 0
        %2056 = vmatpush1.bf16.xpose.msra.mxu0 0
        %2057 = vmatprep.subr.bf16.mxu0 0
        %2058 = vmatpush1.bf16.xpose.msra.mxu0 0
        %2059 = vmatprep.subr.bf16.mxu0 0
        %2060 = vmatpush1.bf16.xpose.msra.mxu0 0
        %2061 = vmatprep.mubr.bf16.mxu0 0
        %2062 = vmatmul.mubr.bf16.gmra.mrb[0].mxu0 %v2027
        %v2063 = vpop.f32.mrb[0].mxu0
        %v2064 = vadd.f32 0.0, %v2063
        %v2065 = vpop.f32.mrb[0].mxu0
        %v2066 = vpop.f32.mrb[0].mxu0
        %v2067 = vpop.f32.mrb[0].mxu0
        %2068 = vdwg.mxu0
        %v2069 = vsel %vm1082, %v2064, -inf
        %v2070 = vrot.slane %v2069, 4
        %v2071 = vmax.f32 %v2069, %v2070
        %v2072 = vrot.slane %v2071, 2
        %v2073 = vmax.f32 %v2071, %v2072
        %v2074 = vrot.slane %v2073, 1
        %v2075 = vmax.f32 %v2073, %v2074
        %v2076 = vsub.f32 %v2064, %v2075
        %v2077 = vmul.f32 %v2076, 1.442695
        %v2078 = vpow.pop %v2077
        %v2079 = vsel %vm1082, %v2078, 0.0
        %v2080 = vrot.slane %v2079, 4
        %v2081 = vadd.f32 %v2079, %v2080
        %v2082 = vrot.slane %v2081, 2
        %v2083 = vadd.f32 %v2081, %v2082
        %v2084 = vrot.slane %v2083, 1
        %v2085 = vadd.f32 %v2083, %v2084
        %v2086 = vrcp.pop %v2085
        %v2087 = vmul.f32 %v2078, %v2086
        %v2088 = vadd.f32 %v2087, 1e-08
        %v2089 = vsel %vm1082, %v2088, 0.0
        %2090 = vadd.xlane.f32.xlu0 %v2089
        %v2091 = vpop.xlane.xlu0 %2090
        %v2092 = vrcp.pop %v2091
        %v2093 = vmul.f32 %v2088, %v2092
        %v2094 = vpack.c.bf16 %v2093, %v2093
        %v2096 = vsel %vm1113, %v2094, 0
        %2098 = vmatprep.subr.bf16.mxu0 0
        %2099 = vmatpush1.bf16.msra.mxu0 %v1111
        %2100 = vmatprep.subr.bf16.mxu0 0
        %2101 = vmatpush1.bf16.msra.mxu0 0
        %2102 = vmatprep.subr.bf16.mxu0 0
        %2103 = vmatpush1.bf16.msra.mxu0 0
        %2104 = vmatprep.subr.bf16.mxu0 0
        %2105 = vmatpush1.bf16.msra.mxu0 0
        %2106 = vmatprep.subr.bf16.mxu0 0
        %2107 = vmatpush1.bf16.msra.mxu0 0
        %2108 = vmatprep.subr.bf16.mxu0 0
        %2109 = vmatpush1.bf16.msra.mxu0 0
        %2110 = vmatprep.subr.bf16.mxu0 0
        %2111 = vmatpush1.bf16.msra.mxu0 0
        %2112 = vmatprep.subr.bf16.mxu0 0
        %2113 = vmatpush1.bf16.msra.mxu0 0
        %2114 = vmatprep.subr.bf16.mxu0 0
        %2115 = vmatpush1.bf16.msra.mxu0 0
        %2116 = vmatprep.subr.bf16.mxu0 0
        %2117 = vmatpush1.bf16.msra.mxu0 0
        %2118 = vmatprep.subr.bf16.mxu0 0
        %2119 = vmatpush1.bf16.msra.mxu0 0
        %2120 = vmatprep.subr.bf16.mxu0 0
        %2121 = vmatpush1.bf16.msra.mxu0 0
        %2122 = vmatprep.subr.bf16.mxu0 0
        %2123 = vmatpush1.bf16.msra.mxu0 0
        %2124 = vmatprep.subr.bf16.mxu0 0
        %2125 = vmatpush1.bf16.msra.mxu0 0
        %2126 = vmatprep.subr.bf16.mxu0 0
        %2127 = vmatpush1.bf16.msra.mxu0 0
        %2128 = vmatprep.subr.bf16.mxu0 0
        %2129 = vmatpush1.bf16.msra.mxu0 0
        %2130 = vmatprep.mubr.bf16.mxu0 0
        %2131 = vmatmul.mubr.bf16.gmra.mrb[0].mxu0 %v2096
        %v2132 = vpop.f32.mrb[0].mxu0
        %v2133 = vadd.f32 0.0, %v2132
        %v2134 = vpop.f32.mrb[0].mxu0
        %v2135 = vpop.f32.mrb[0].mxu0
        %v2136 = vpop.f32.mrb[0].mxu0
        %2137 = vdwg.mxu0
        %v2138 = vpack.c.bf16 %v2133, %v2133
        %v2140 = vsel %vm785, %v2138, 0
        %2142 = vmatprep.subr.bf16.mxu0 0
        %2143 = vmatpush1.bf16.msra.mxu0 %v1166
        %2144 = vmatprep.subr.bf16.mxu0 0
        %2145 = vmatpush1.bf16.msra.mxu0 %v1167
        %2146 = vmatprep.subr.bf16.mxu0 0
        %2147 = vmatpush1.bf16.msra.mxu0 0
        %2148 = vmatprep.subr.bf16.mxu0 0
        %2149 = vmatpush1.bf16.msra.mxu0 0
        %2150 = vmatprep.subr.bf16.mxu0 0
        %2151 = vmatpush1.bf16.msra.mxu0 0
        %2152 = vmatprep.subr.bf16.mxu0 0
        %2153 = vmatpush1.bf16.msra.mxu0 0
        %2154 = vmatprep.subr.bf16.mxu0 0
        %2155 = vmatpush1.bf16.msra.mxu0 0
        %2156 = vmatprep.subr.bf16.mxu0 0
        %2157 = vmatpush1.bf16.msra.mxu0 0
        %2158 = vmatprep.subr.bf16.mxu0 0
        %2159 = vmatpush1.bf16.msra.mxu0 0
        %2160 = vmatprep.subr.bf16.mxu0 0
        %2161 = vmatpush1.bf16.msra.mxu0 0
        %2162 = vmatprep.subr.bf16.mxu0 0
        %2163 = vmatpush1.bf16.msra.mxu0 0
        %2164 = vmatprep.subr.bf16.mxu0 0
        %2165 = vmatpush1.bf16.msra.mxu0 0
        %2166 = vmatprep.subr.bf16.mxu0 0
        %2167 = vmatpush1.bf16.msra.mxu0 0
        %2168 = vmatprep.subr.bf16.mxu0 0
        %2169 = vmatpush1.bf16.msra.mxu0 0
        %2170 = vmatprep.subr.bf16.mxu0 0
        %2171 = vmatpush1.bf16.msra.mxu0 0
        %2172 = vmatprep.subr.bf16.mxu0 0
        %2173 = vmatpush1.bf16.msra.mxu0 0
        %2174 = vmatprep.mubr.bf16.mxu0 0
        %2175 = vmatmul.mubr.bf16.gmra.mrb[0].mxu0 %v2140
        %v2176 = vpop.f32.mrb[0].mxu0
        %v2177 = vadd.f32 0.0, %v2176
        %v2178 = vpop.f32.mrb[0].mxu0
        %v2179 = vpop.f32.mrb[0].mxu0
        %v2180 = vpop.f32.mrb[0].mxu0
        %2181 = vdwg.mxu0
        %v2182 = vpack.c.bf16 %v1954, %v1954
        %2184 = vrot.lane.b32.xlu0 %v2182, 96
        %v2185 = vpop.permute.xlu0 %2184
        %v2187 = vsel %vm785, %v2185, 0
        %2189 = vmatprep.subr.bf16.mxu0 0
        %2190 = vmatpush1.bf16.msra.mxu0 %v1222
        %2191 = vmatprep.subr.bf16.mxu0 0
        %2192 = vmatpush1.bf16.msra.mxu0 %v1223
        %2193 = vmatprep.subr.bf16.mxu0 0
        %2194 = vmatpush1.bf16.msra.mxu0 0
        %2195 = vmatprep.subr.bf16.mxu0 0
        %2196 = vmatpush1.bf16.msra.mxu0 0
        %2197 = vmatprep.subr.bf16.mxu0 0
        %2198 = vmatpush1.bf16.msra.mxu0 0
        %2199 = vmatprep.subr.bf16.mxu0 0
        %2200 = vmatpush1.bf16.msra.mxu0 0
        %2201 = vmatprep.subr.bf16.mxu0 0
        %2202 = vmatpush1.bf16.msra.mxu0 0
        %2203 = vmatprep.subr.bf16.mxu0 0
        %2204 = vmatpush1.bf16.msra.mxu0 0
        %2205 = vmatprep.subr.bf16.mxu0 0
        %2206 = vmatpush1.bf16.msra.mxu0 0
        %2207 = vmatprep.subr.bf16.mxu0 0
        %2208 = vmatpush1.bf16.msra.mxu0 0
        %2209 = vmatprep.subr.bf16.mxu0 0
        %2210 = vmatpush1.bf16.msra.mxu0 0
        %2211 = vmatprep.subr.bf16.mxu0 0
        %2212 = vmatpush1.bf16.msra.mxu0 0
        %2213 = vmatprep.subr.bf16.mxu0 0
        %2214 = vmatpush1.bf16.msra.mxu0 0
        %2215 = vmatprep.subr.bf16.mxu0 0
        %2216 = vmatpush1.bf16.msra.mxu0 0
        %2217 = vmatprep.subr.bf16.mxu0 0
        %2218 = vmatpush1.bf16.msra.mxu0 0
        %2219 = vmatprep.subr.bf16.mxu0 0
        %2220 = vmatpush1.bf16.msra.mxu0 0
        %2221 = vmatprep.mubr.bf16.mxu0 0
        %2222 = vmatmul.mubr.bf16.gmra.mrb[0].mxu0 %v2187
        %v2223 = vpop.f32.mrb[0].mxu0
        %v2224 = vadd.f32 0.0, %v2223
        %v2225 = vpop.f32.mrb[0].mxu0
        %v2226 = vpop.f32.mrb[0].mxu0
        %v2227 = vpop.f32.mrb[0].mxu0
        %2228 = vdwg.mxu0
        %v2229 = vadd.f32 %v2177, %v2224
        %v2230 = vadd.f32 %v2229, %v1274
        %v2231 = vxor.u32 %v2230, 2147483648
        %v2232 = vmul.f32 %v2231, 1.442695
        %v2233 = vpow.pop %v2232
        %v2234 = vadd.f32 %v2233, 1.0
        %v2235 = vrcp.pop %v2234
        %v2236 = vmul.f32 1.0, %v2235
        %v2237 = vadd.f32 %v2177, %v1289
        %v2238 = vadd.f32 %v2224, %v1298
        %2240 = vrot.lane.b32.xlu0 %v2238, 64
        %v2241 = vpop.permute.xlu0 %2240
        %v2243 = vmul.f32 %v2236, %v2241
        %2245 = vrot.lane.b32.xlu0 %v2243, 64
        %v2246 = vpop.permute.xlu0 %2245
        %v2248 = vadd.f32 %v2237, %v2246
        %v2249 = vtanh.pop %v2248
        %v2250 = vsub.f32 1.0, %v2236
        %2252 = vrot.lane.b32.xlu0 %v2249, 96
        %v2253 = vpop.permute.xlu0 %2252
        %v2255 = vmul.f32 %v2250, %v2253
        %v2256 = vmul.f32 %v2236, %v1954
        %v2257 = vadd.f32 %v2255, %v2256
        %2259 = vrot.lane.b32.xlu0 %v2257, 96
        %v2260 = vpop.permute.xlu0 %2259
        %v2262 = vsel %vm951, %v2260, 0.0
        %2263 = vadd.xlane.f32.xlu0 %v2262
        %v2264 = vpop.xlane.xlu0 %2263
        %v2265 = vmul.f32 %v2264, %v792
        %v2266 = vsub.f32 %v2257, %v2265
        %v2267 = vmul.f32 %v2266, %v2266
        %2269 = vrot.lane.b32.xlu0 %v2267, 96
        %v2270 = vpop.permute.xlu0 %2269
        %v2272 = vsel %vm951, %v2270, 0.0
        %2273 = vadd.xlane.f32.xlu0 %v2272
        %v2274 = vpop.xlane.xlu0 %2273
        %v2275 = vmul.f32 %v2274, %v792
        %v2276 = vadd.f32 %v2275, 1e-05
        %v2277 = vrsqrt.pop %v2276
        %v2278 = vmul.f32 %v2266, %v2277
        %v2279 = vmul.f32 %v2278, %v1351
        %v2280 = vadd.f32 %v2279, %v1360
        %v2281 = vpack.c.bf16 %v2280, %v2280
        %2283 = vrot.lane.b32.xlu0 %v2281, 96
        %v2284 = vpop.permute.xlu0 %2283
        %v2286 = vsel %vm785, %v2284, 0
        %2288 = vmatprep.subr.bf16.mxu0 0
        %2289 = vmatpush1.bf16.msra.mxu0 %v1381
        %2290 = vmatprep.subr.bf16.mxu0 0
        %2291 = vmatpush1.bf16.msra.mxu0 %v1382
        %2292 = vmatprep.subr.bf16.mxu0 0
        %2293 = vmatpush1.bf16.msra.mxu0 0
        %2294 = vmatprep.subr.bf16.mxu0 0
        %2295 = vmatpush1.bf16.msra.mxu0 0
        %2296 = vmatprep.subr.bf16.mxu0 0
        %2297 = vmatpush1.bf16.msra.mxu0 0
        %2298 = vmatprep.subr.bf16.mxu0 0
        %2299 = vmatpush1.bf16.msra.mxu0 0
        %2300 = vmatprep.subr.bf16.mxu0 0
        %2301 = vmatpush1.bf16.msra.mxu0 0
        %2302 = vmatprep.subr.bf16.mxu0 0
        %2303 = vmatpush1.bf16.msra.mxu0 0
        %2304 = vmatprep.subr.bf16.mxu0 0
        %2305 = vmatpush1.bf16.msra.mxu0 0
        %2306 = vmatprep.subr.bf16.mxu0 0
        %2307 = vmatpush1.bf16.msra.mxu0 0
        %2308 = vmatprep.subr.bf16.mxu0 0
        %2309 = vmatpush1.bf16.msra.mxu0 0
        %2310 = vmatprep.subr.bf16.mxu0 0
        %2311 = vmatpush1.bf16.msra.mxu0 0
        %2312 = vmatprep.subr.bf16.mxu0 0
        %2313 = vmatpush1.bf16.msra.mxu0 0
        %2314 = vmatprep.subr.bf16.mxu0 0
        %2315 = vmatpush1.bf16.msra.mxu0 0
        %2316 = vmatprep.subr.bf16.mxu0 0
        %2317 = vmatpush1.bf16.msra.mxu0 0
        %2318 = vmatprep.subr.bf16.mxu0 0
        %2319 = vmatpush1.bf16.msra.mxu0 0
        %2320 = vmatprep.mubr.bf16.mxu0 0
        %2321 = vmatmul.mubr.bf16.gmra.mrb[0].mxu0 %v2286
        %v2322 = vpop.f32.mrb[0].mxu0
        %v2323 = vadd.f32 %v1368, %v2322
        %v2324 = vpop.f32.mrb[0].mxu0
        %v2325 = vpop.f32.mrb[0].mxu0
        %v2326 = vpop.f32.mrb[0].mxu0
        %2327 = vdwg.mxu0
        %v2328 = vmax.f32 %v2323, 0.0
        %v2329 = vpack.c.bf16 %v2328, %v2328
        %2330 = vmatprep.subr.bf16.mxu0 0
        %2331 = vmatpush1.bf16.msra.mxu0 %v1468
        %2332 = vmatprep.subr.bf16.mxu0 0
        %2333 = vmatpush1.bf16.msra.mxu0 %v1469
        %2334 = vmatprep.subr.bf16.mxu0 0
        %2335 = vmatpush1.bf16.msra.mxu0 %v1470
        %2336 = vmatprep.subr.bf16.mxu0 0
        %2337 = vmatpush1.bf16.msra.mxu0 %v1471
        %2338 = vmatprep.subr.bf16.mxu0 0
        %2339 = vmatpush1.bf16.msra.mxu0 %v1472
        %2340 = vmatprep.subr.bf16.mxu0 0
        %2341 = vmatpush1.bf16.msra.mxu0 %v1473
        %2342 = vmatprep.subr.bf16.mxu0 0
        %2343 = vmatpush1.bf16.msra.mxu0 %v1474
        %2344 = vmatprep.subr.bf16.mxu0 0
        %2345 = vmatpush1.bf16.msra.mxu0 %v1475
        %2346 = vmatprep.subr.bf16.mxu0 0
        %2347 = vmatpush1.bf16.msra.mxu0 0
        %2348 = vmatprep.subr.bf16.mxu0 0
        %2349 = vmatpush1.bf16.msra.mxu0 0
        %2350 = vmatprep.subr.bf16.mxu0 0
        %2351 = vmatpush1.bf16.msra.mxu0 0
        %2352 = vmatprep.subr.bf16.mxu0 0
        %2353 = vmatpush1.bf16.msra.mxu0 0
        %2354 = vmatprep.subr.bf16.mxu0 0
        %2355 = vmatpush1.bf16.msra.mxu0 0
        %2356 = vmatprep.subr.bf16.mxu0 0
        %2357 = vmatpush1.bf16.msra.mxu0 0
        %2358 = vmatprep.subr.bf16.mxu0 0
        %2359 = vmatpush1.bf16.msra.mxu0 0
        %2360 = vmatprep.subr.bf16.mxu0 0
        %2361 = vmatpush1.bf16.msra.mxu0 0
        %2362 = vmatprep.mubr.bf16.mxu0 0
        %2363 = vmatmul.mubr.bf16.gmra.mrb[0].mxu0 %v2329
        %v2364 = vpop.f32.mrb[0].mxu0
        %v2365 = vadd.f32 %v1434, %v2364
        %v2366 = vpop.f32.mrb[0].mxu0
        %v2367 = vpop.f32.mrb[0].mxu0
        %v2368 = vpop.f32.mrb[0].mxu0
        %2369 = vdwg.mxu0
        %2371 = vrot.lane.b32.xlu0 %v2365, 32
        %v2372 = vpop.permute.xlu0 %2371
        %v2374 = vadd.f32 %v2257, %v2372
        %2376 = vrot.lane.b32.xlu0 %v2374, 96
        %v2377 = vpop.permute.xlu0 %2376
        %2379 = vst.msk [vmem:[%s774] sm:$0xf] %vm951, %v2377
        %s2380 = sand.u32 %s501, 1
        %s2381 = scalar_lea.sflag [#allocation4], %s2380
        %s2382 = sand.u32 %s501, 1
        %s2383 = smul.addr %s2382, 4
        %s2384 = scalar_lea.vmem [#allocation16], %s2383
        // Predicated region
        $region137: #{tpu_custom_call.1} parent=103 // pred_check
          %p2385 = pneg %p511
        $region138: #{tpu_custom_call.1} parent=103 // pred_check_branch
          %2387 = sbr.rel (%p2385) target = $region140
        $region139: #{tpu_custom_call.1} parent=103 // pred_region
          %s2389 = ssub.s32 64, 64
          %2390 = vsyncadd %s2381, %s2389
          %s2391 = smul.addr %s42, 64
          %s2392 = scalar_lea.hbm %s21, %s2391
          %s2394 = sshll.u32 %s2384, 4
          %s2395 = int_to_ptr.vmem [resolvable:$true] %s2394
          %2397 = dma.vmem_to_hbm [thread:$0]  %s2395, 64, %s2392, %s2381
        $region140: #{tpu_custom_call.1} parent=103 // pred_fallthru
          _
      $region104: #{tpu_custom_call.1} parent=5 // pred_fallthru
        _
      %p2398 = scmp.le.s32.totalorder 2, %s37
      // Predicated region
      $region141: #{tpu_custom_call.1} parent=5 // pred_check
        %p2399 = pneg %p2398
      $region142: #{tpu_custom_call.1} parent=5 // pred_check_branch
        %2401 = sbr.rel (%p2399) target = $region144
      $region143: #{tpu_custom_call.1} parent=5 // pred_region
        %s2402 = ssub.s32 %s37, 2
        // Predicated region
        $region145: #{tpu_custom_call.1} parent=143 // pred_check
          %p2403 = pneg %p517
        $region146: #{tpu_custom_call.1} parent=143 // pred_check_branch
          %2405 = sbr.rel (%p2403) target = $region148
        $region147: #{tpu_custom_call.1} parent=143 // pred_region
          %s2406 = sand.u32 %s502, 1
          %s2407 = scalar_lea.sflag [#allocation4], %s2406
          %s2408 = sand.u32 %s502, 1
          %s2409 = smul.addr %s2408, 4
          %s2410 = scalar_lea.vmem [#allocation16], %s2409
          %2411 = dma.done %s2407, 64
        $region148: #{tpu_custom_call.1} parent=143 // pred_fallthru
          _
      $region144: #{tpu_custom_call.1} parent=5 // pred_fallthru
        _
    $region6: #{tpu_custom_call.1} parent=1 // loop_footer
      %s41 = sadd.s32 1, %s37
    $region7: #{tpu_custom_call.1} parent=1 // loop_footer_branch
      %36 = sbr.rel target = $region3
    $region8: #{tpu_custom_call.1} parent=1 // loop_exit
      _
    %2412 = vsyncpa [#allocation3], 1
    %s2413 = scalar_lea.sflag [#allocation3], 1
    %2414 = vsyncpa %s2413, 1
    %2415 = vsyncpa [#allocation6], 1
    %2416 = vsyncpa [#allocation9], 1
    %2417 = vsyncpa [#allocation12], 1
    %2418 = vsyncpa [#allocation15], 1
    %2419 = vsyncpa [#allocation4], 1
    %s2420 = scalar_lea.sflag [#allocation4], 1
    %2421 = vsyncpa %s2420, 1

</llo_original>
